<compile_context>
chip_gen: v7x
topology: tpu7x:2x2x1
jax: 0.10.0
libtpu: 0.0.40
codegen_flags: <defaults>
</compile_context>

<pallas_src>
import math
from functools import partial

import jax
import jax.numpy as jnp
import numpy as np
from jax.experimental import pallas as pl
from jax.experimental.pallas import tpu as pltpu


# ----------------------------------------------------------------------------
# In-kernel helpers (traced inside the Pallas kernel body)
# ----------------------------------------------------------------------------
def _layernorm(x, gamma, beta, eps=1e-5):
    mean = jnp.mean(x, axis=-1, keepdims=True)
    var = jnp.mean(jnp.square(x - mean), axis=-1, keepdims=True)
    return (x - mean) * jax.lax.rsqrt(var + eps) * gamma + beta


def _mha_heads(q_t, k_t, v_t, wo_h, num_heads, mask=None, causal=False):
    """Multi-head attention with all heads batched into MXU contractions.

    q_t: (E, T) f32 feature-major queries (projected, bias added)
    k_t, v_t: (E, S) f32 feature-major keys / values
    wo_h: (H, dh, E) bf16 output projection split per head
    Returns (T, E) f32 = concat_heads(attn) @ Wo (output bias NOT added here).
    """
    E, T = q_t.shape
    S = k_t.shape[1]
    H = num_heads
    dh = E // H
    scale = 1.0 / math.sqrt(dh)
    bf = jnp.bfloat16

    # (E, *) -> (H, dh, *) is a pure re-tiling of the leading (sublane) dim.
    qh = jnp.swapaxes((q_t * scale).reshape(H, dh, T), 1, 2).astype(bf)  # (H,T,dh)
    kh = k_t.reshape(H, dh, S).astype(bf)                                # (H,dh,S)
    vh = v_t.reshape(H, dh, S).astype(bf)                                # (H,dh,S)

    # scores for all heads in one batched MXU contraction: (H, T, S)
    s = jax.lax.dot_general(qh, kh, (((2,), (1,)), ((0,), (0,))),
                            preferred_element_type=jnp.float32)
    if causal:
        row = jax.lax.broadcasted_iota(jnp.int32, (T, S), 0)
        col = jax.lax.broadcasted_iota(jnp.int32, (T, S), 1)
        s = s + jnp.where(row >= col, 0.0, -1e9)       # additive causal bias
    elif mask is not None:
        s = jnp.where(mask[None] == 0.0, -1e9, s)       # masked_fill semantics

    # softmax statistics in f32
    s = s - jnp.max(s, axis=-1, keepdims=True)
    p = jnp.exp(s)
    p = p * pl.reciprocal(jnp.sum(p, axis=-1, keepdims=True), approx=True)

    # attention-weighted values, all heads batched: (H, T, dh)
    o = jax.lax.dot_general(p.astype(bf), vh, (((2,), (2,)), ((0,), (0,))),
                            preferred_element_type=jnp.float32)
    # per-head slice of the output projection, summed over heads -> (T, E)
    y = jax.lax.dot_general(o.astype(bf), wo_h, (((2,), (1,)), ((0,), (0,))),
                            preferred_element_type=jnp.float32)
    return jnp.sum(y, axis=0)


# ----------------------------------------------------------------------------
# Fused decoder-layer kernel (one grid step per batch element)
# ----------------------------------------------------------------------------
def decoder_layer_kernel(num_heads, causal, *refs):
    if causal:
        x_ref, mem_ref = refs[0], refs[1]
        mask_ref = None
        params = refs[2:-1]
    else:
        x_ref, mask_ref, mem_ref = refs[0], refs[1], refs[2]
        params = refs[3:-1]
    o_ref = refs[-1]
    (g1_ref, be1_ref, wqkv1_ref, bqkv1_ref, wo1_ref, bo1_ref,
     g2_ref, be2_ref, wq2_ref, bq2_ref, wkv2_ref, bkv2_ref, wo2_ref, bo2_ref,
     g3_ref, be3_ref, w1_ref, b1_ref, w2_ref, b2_ref) = params

    bf = jnp.bfloat16
    x = x_ref[0]                          # (T, E) f32 residual stream
    E = x.shape[-1]

    # ---- sub-block 1: masked self-attention --------------------------------
    x2 = _layernorm(x, g1_ref[0], be1_ref[0]).astype(bf)
    # fused QKV projection in feature-major form: (3E, T)
    qkv_t = jax.lax.dot_general(wqkv1_ref[...], x2, (((1,), (1,)), ((), ())),
                                preferred_element_type=jnp.float32) + bqkv1_ref[...]
    attn = _mha_heads(qkv_t[:E], qkv_t[E:2 * E], qkv_t[2 * E:], wo1_ref[...],
                      num_heads,
                      mask=None if causal else mask_ref[0],
                      causal=causal)
    x = x + attn + bo1_ref[0]

    # ---- sub-block 2: cross-attention over encoder memory ------------------
    x2 = _layernorm(x, g2_ref[0], be2_ref[0]).astype(bf)
    mem = mem_ref[0].astype(bf)
    q_t = jax.lax.dot_general(wq2_ref[...], x2, (((1,), (1,)), ((), ())),
                              preferred_element_type=jnp.float32) + bq2_ref[...]
    kv_t = jax.lax.dot_general(wkv2_ref[...], mem, (((1,), (1,)), ((), ())),
                               preferred_element_type=jnp.float32) + bkv2_ref[...]
    attn = _mha_heads(q_t, kv_t[:E], kv_t[E:], wo2_ref[...], num_heads)
    x = x + attn + bo2_ref[0]

    # ---- sub-block 3: position-wise feed-forward ----------------------------
    x2 = _layernorm(x, g3_ref[0], be3_ref[0]).astype(bf)
    h = jax.lax.dot_general(x2, w1_ref[...], (((1,), (1,)), ((), ())),
                            preferred_element_type=jnp.float32) + b1_ref[0]
    h = jnp.maximum(h, 0.0).astype(bf)
    y = jax.lax.dot_general(h, w2_ref[...], (((1,), (1,)), ((), ())),
                            preferred_element_type=jnp.float32) + b2_ref[0]

    o_ref[0] = x + y


# ----------------------------------------------------------------------------
# Wrapper
# ----------------------------------------------------------------------------
def _full_spec(shape):
    # grid-invariant parameter BlockSpec: full array, block index 0
    return pl.BlockSpec(shape, lambda b: (0,) * len(shape))


def prepare_params(p, num_heads):
    """Fuse / cast parameters into the kernel-friendly layout (bf16 weights)."""
    bf = jnp.bfloat16
    E = p["wq1"].shape[0]
    dh = E // num_heads
    kp = {
        "g1": p["g1"], "be1": p["be1"],
        "wqkv1": jnp.concatenate([p["wq1"], p["wk1"], p["wv1"]], 0).astype(bf),
        "bqkv1": jnp.concatenate([p["bq1"], p["bk1"], p["bv1"]], 1).reshape(-1, 1),
        "wo1": p["wo1"].T.reshape(num_heads, dh, E).astype(bf),
        "bo1": p["bo1"],
        "g2": p["g2"], "be2": p["be2"],
        "wq2": p["wq2"].astype(bf),
        "bq2": p["bq2"].reshape(-1, 1),
        "wkv2": jnp.concatenate([p["wk2"], p["wv2"]], 0).astype(bf),
        "bkv2": jnp.concatenate([p["bk2"], p["bv2"]], 1).reshape(-1, 1),
        "wo2": p["wo2"].T.reshape(num_heads, dh, E).astype(bf),
        "bo2": p["bo2"],
        "g3": p["g3"], "be3": p["be3"],
        "w1": p["w1_ff"].astype(bf), "b1": p["b1_ff"],
        "w2": p["w2_ff"].astype(bf), "b2": p["b2_ff"],
    }
    return kp


def decoder_layer(x, memory, target_mask, params, num_heads, *,
                  assume_causal_mask=False):
    B, T, E = x.shape
    S = memory.shape[1]
    kp = prepare_params(params, num_heads)

    param_order = ["g1", "be1", "wqkv1", "bqkv1", "wo1", "bo1",
                   "g2", "be2", "wq2", "bq2", "wkv2", "bkv2", "wo2", "bo2",
                   "g3", "be3", "w1", "b1", "w2", "b2"]
    param_args = [kp[k] for k in param_order]
    param_specs = [_full_spec(kp[k].shape) for k in param_order]

    data_args = [x] + ([] if assume_causal_mask else [target_mask]) + [memory]
    data_specs = [pl.BlockSpec((1, T, E), lambda b: (b, 0, 0))]
    if not assume_causal_mask:
        data_specs.append(pl.BlockSpec((1, T, T), lambda b: (b, 0, 0)))
    data_specs.append(pl.BlockSpec((1, S, E), lambda b: (b, 0, 0)))

    kernel = partial(decoder_layer_kernel, num_heads, assume_causal_mask)
    return pl.pallas_call(
        kernel,
        out_shape=jax.ShapeDtypeStruct((B, T, E), jnp.float32),
        grid=(B,),
        in_specs=data_specs + param_specs,
        out_specs=pl.BlockSpec((1, T, E), lambda b: (b, 0, 0)),
        input_output_aliases={0: 0},
        compiler_params=pltpu.CompilerParams(
            dimension_semantics=("parallel",),
            vmem_limit_bytes=48 * 1024 * 1024),
    )(*data_args, *param_args)


# ----------------------------------------------------------------------------
# Pure-JAX f32 reference (mirrors the PyTorch module exactly)
# ----------------------------------------------------------------------------
def reference(x, memory, mask, p, num_heads):
    def ln(x, g, b):
        mean = x.mean(-1, keepdims=True)
        var = ((x - mean) ** 2).mean(-1, keepdims=True)
        return (x - mean) / jnp.sqrt(var + 1e-5) * g + b

    def mha(q_in, kv_in, mask, wq, bq, wk, bk, wv, bv, wo, bo):
        B, T, E = q_in.shape
        S = kv_in.shape[1]
        H = num_heads
        dh = E // H
        q = (q_in @ wq.T + bq).reshape(B, T, H, dh).transpose(0, 2, 1, 3)
        k = (kv_in @ wk.T + bk).reshape(B, S, H, dh).transpose(0, 2, 1, 3)
        v = (kv_in @ wv.T + bv).reshape(B, S, H, dh).transpose(0, 2, 1, 3)
        s = jnp.einsum("bhtd,bhsd->bhts", q / math.sqrt(dh), k)
        if mask is not None:
            s = jnp.where(mask[:, None] == 0.0, -1e9, s)
        a = jax.nn.softmax(s, axis=-1)
        o = jnp.einsum("bhts,bhsd->bhtd", a, v).transpose(0, 2, 1, 3).reshape(B, T, E)
        return o @ wo.T + bo

    x2 = ln(x, p["g1"], p["be1"])
    x = x + mha(x2, x2, mask, p["wq1"], p["bq1"], p["wk1"], p["bk1"],
                p["wv1"], p["bv1"], p["wo1"], p["bo1"])
    x2 = ln(x, p["g2"], p["be2"])
    x = x + mha(x2, memory, None, p["wq2"], p["bq2"], p["wk2"], p["bk2"],
                p["wv2"], p["bv2"], p["wo2"], p["bo2"])
    x2 = ln(x, p["g3"], p["be3"])
    h = jnp.maximum(x2 @ p["w1_ff"].T + p["b1_ff"], 0.0)
    x = x + (h @ p["w2_ff"].T + p["b2_ff"])
    return x


# ----------------------------------------------------------------------------
# Deterministic parameter init (PyTorch-style layouts) + example run
# ----------------------------------------------------------------------------
def init_params(key, E, F):
    ks = iter(jax.random.split(key, 32))

    def lin(out_dim, in_dim):
        bound = 1.0 / math.sqrt(in_dim)
        w = jax.random.uniform(next(ks), (out_dim, in_dim), jnp.float32,
                               -bound, bound)
        b = jax.random.uniform(next(ks), (1, out_dim), jnp.float32,
                               -bound, bound)
        return w, b

    p = {}
    for i in (1, 2, 3):                    # nn.LayerNorm default init
        p[f"g{i}"] = jnp.ones((1, E), jnp.float32)
        p[f"be{i}"] = jnp.zeros((1, E), jnp.float32)
    for blk in (1, 2):                     # two MHA blocks
        for name in ("q", "k", "v", "o"):
            p[f"w{name}{blk}"], p[f"b{name}{blk}"] = lin(E, E)
    p["w1_ff"], p["b1_ff"] = lin(F, E)
    p["w2_ff"], p["b2_ff"] = lin(E, F)
    return p


if __name__ == "__main__":
    B, T, S, E, H, F = 2, 8, 8, 32, 4, 64
    key = jax.random.PRNGKey(0)
    kx, km, kp = jax.random.split(key, 3)

    x = jax.random.normal(kx, (B, T, E), jnp.float32)
    memory = jax.random.normal(km, (B, S, E), jnp.float32)
    # causal target mask (B, T, T), float32 {0,1}
    target_mask = jnp.broadcast_to(
        jnp.tril(jnp.ones((T, T), jnp.float32)), (B, T, T))

    params = init_params(kp, E, F)
    ref = reference(x, memory, target_mask, params, H)

    # Fast path: causal mask generated in-kernel (no (B,T,T) mask DMA).
    out = jax.block_until_ready(
        decoder_layer(x, memory, None, params, H, assume_causal_mask=True))
    # General path: arbitrary user-supplied target_mask.
    out_masked = jax.block_until_ready(
        decoder_layer(x, memory, target_mask, params, H,
                      assume_causal_mask=False))

    assert out.shape == (B, T, E)
    # Matmuls run in bf16 (f32 accumulation) -> compare at bf16-level tolerance.
    np.testing.assert_allclose(np.asarray(out), np.asarray(ref),
                               rtol=5e-2, atol=5e-2)
    np.testing.assert_allclose(np.asarray(out_masked), np.asarray(ref),
                               rtol=5e-2, atol=5e-2)
    print("KERNEL_OK")
</pallas_src>

<mosaic_0001>
module attributes {stable_mosaic.version = 11 : i64} {
  func.func @decoder_layer_kernel(%arg0: i32, %arg1: memref<1x8x32xf32, #tpu.memory_space<vmem>>, %arg2: memref<1x8x32xf32, #tpu.memory_space<vmem>>, %arg3: memref<1x32xf32, #tpu.memory_space<vmem>>, %arg4: memref<1x32xf32, #tpu.memory_space<vmem>>, %arg5: memref<96x32xbf16, #tpu.memory_space<vmem>>, %arg6: memref<96x1xf32, #tpu.memory_space<vmem>>, %arg7: memref<4x8x32xbf16, #tpu.memory_space<vmem>>, %arg8: memref<1x32xf32, #tpu.memory_space<vmem>>, %arg9: memref<1x32xf32, #tpu.memory_space<vmem>>, %arg10: memref<1x32xf32, #tpu.memory_space<vmem>>, %arg11: memref<32x32xbf16, #tpu.memory_space<vmem>>, %arg12: memref<32x1xf32, #tpu.memory_space<vmem>>, %arg13: memref<64x32xbf16, #tpu.memory_space<vmem>>, %arg14: memref<64x1xf32, #tpu.memory_space<vmem>>, %arg15: memref<4x8x32xbf16, #tpu.memory_space<vmem>>, %arg16: memref<1x32xf32, #tpu.memory_space<vmem>>, %arg17: memref<1x32xf32, #tpu.memory_space<vmem>>, %arg18: memref<1x32xf32, #tpu.memory_space<vmem>>, %arg19: memref<64x32xbf16, #tpu.memory_space<vmem>>, %arg20: memref<1x64xf32, #tpu.memory_space<vmem>>, %arg21: memref<32x64xbf16, #tpu.memory_space<vmem>>, %arg22: memref<1x32xf32, #tpu.memory_space<vmem>>, %arg23: memref<1x8x32xf32, #tpu.memory_space<vmem>>) attributes {dimension_semantics = [#tpu.dimension_semantics<parallel>], iteration_bounds = array<i64: 2>, scalar_prefetch = 0 : i64, scratch_operands = 0 : i64, tpu.core_type = #tpu.core_type<tc>, window_params = [{transform_indices = @transform_0, window_bounds = array<i64: 1, 8, 32>}, {transform_indices = @transform_1, window_bounds = array<i64: 1, 8, 32>}, {pipeline_mode = #tpu.pipeline_mode<synchronous>, transform_indices = @transform_2, window_bounds = array<i64: 1, 32>}, {pipeline_mode = #tpu.pipeline_mode<synchronous>, transform_indices = @transform_3, window_bounds = array<i64: 1, 32>}, {pipeline_mode = #tpu.pipeline_mode<synchronous>, transform_indices = @transform_4, window_bounds = array<i64: 96, 32>}, {pipeline_mode = #tpu.pipeline_mode<synchronous>, transform_indices = @transform_5, window_bounds = array<i64: 96, 1>}, {pipeline_mode = #tpu.pipeline_mode<synchronous>, transform_indices = @transform_6, window_bounds = array<i64: 4, 8, 32>}, {pipeline_mode = #tpu.pipeline_mode<synchronous>, transform_indices = @transform_7, window_bounds = array<i64: 1, 32>}, {pipeline_mode = #tpu.pipeline_mode<synchronous>, transform_indices = @transform_8, window_bounds = array<i64: 1, 32>}, {pipeline_mode = #tpu.pipeline_mode<synchronous>, transform_indices = @transform_9, window_bounds = array<i64: 1, 32>}, {pipeline_mode = #tpu.pipeline_mode<synchronous>, transform_indices = @transform_10, window_bounds = array<i64: 32, 32>}, {pipeline_mode = #tpu.pipeline_mode<synchronous>, transform_indices = @transform_11, window_bounds = array<i64: 32, 1>}, {pipeline_mode = #tpu.pipeline_mode<synchronous>, transform_indices = @transform_12, window_bounds = array<i64: 64, 32>}, {pipeline_mode = #tpu.pipeline_mode<synchronous>, transform_indices = @transform_13, window_bounds = array<i64: 64, 1>}, {pipeline_mode = #tpu.pipeline_mode<synchronous>, transform_indices = @transform_14, window_bounds = array<i64: 4, 8, 32>}, {pipeline_mode = #tpu.pipeline_mode<synchronous>, transform_indices = @transform_15, window_bounds = array<i64: 1, 32>}, {pipeline_mode = #tpu.pipeline_mode<synchronous>, transform_indices = @transform_16, window_bounds = array<i64: 1, 32>}, {pipeline_mode = #tpu.pipeline_mode<synchronous>, transform_indices = @transform_17, window_bounds = array<i64: 1, 32>}, {pipeline_mode = #tpu.pipeline_mode<synchronous>, transform_indices = @transform_18, window_bounds = array<i64: 64, 32>}, {pipeline_mode = #tpu.pipeline_mode<synchronous>, transform_indices = @transform_19, window_bounds = array<i64: 1, 64>}, {pipeline_mode = #tpu.pipeline_mode<synchronous>, transform_indices = @transform_20, window_bounds = array<i64: 32, 64>}, {pipeline_mode = #tpu.pipeline_mode<synchronous>, transform_indices = @transform_21, window_bounds = array<i64: 1, 32>}, {transform_indices = @transform_22, window_bounds = array<i64: 1, 8, 32>}]} {
    %c0 = arith.constant 0 : index
    %c0_0 = arith.constant 0 : index
    %c0_1 = arith.constant 0 : index
    %0 = vector.load %arg1[%c0, %c0_0, %c0_1] : memref<1x8x32xf32, #tpu.memory_space<vmem>>, vector<1x8x32xf32>
    %1 = vector.shape_cast %0 : vector<1x8x32xf32> to vector<8x32xf32>
    %c0_2 = arith.constant 0 : index
    %c0_3 = arith.constant 0 : index
    %2 = vector.load %arg3[%c0_2, %c0_3] : memref<1x32xf32, #tpu.memory_space<vmem>>, vector<1x32xf32>
    %3 = vector.shape_cast %2 : vector<1x32xf32> to vector<32xf32>
    %c0_4 = arith.constant 0 : index
    %c0_5 = arith.constant 0 : index
    %4 = vector.load %arg4[%c0_4, %c0_5] : memref<1x32xf32, #tpu.memory_space<vmem>>, vector<1x32xf32>
    %5 = vector.shape_cast %4 : vector<1x32xf32> to vector<32xf32>
    %cst = arith.constant dense<0.000000e+00> : vector<8xf32>
    %6 = vector.multi_reduction <add>, %1, %cst [1] : vector<8x32xf32> to vector<8xf32>
    %7 = vector.shape_cast %6 : vector<8xf32> to vector<8x1xf32>
    %cst_6 = arith.constant 3.200000e+01 : f32
    %8 = vector.broadcast %cst_6 : f32 to vector<8x1xf32>
    %9 = arith.divf %7, %8 : vector<8x1xf32>
    %10 = vector.broadcast %9 : vector<8x1xf32> to vector<8x32xf32>
    %11 = arith.subf %1, %10 : vector<8x32xf32>
    %12 = arith.mulf %11, %11 : vector<8x32xf32>
    %cst_7 = arith.constant dense<0.000000e+00> : vector<8xf32>
    %13 = vector.multi_reduction <add>, %12, %cst_7 [1] : vector<8x32xf32> to vector<8xf32>
    %14 = vector.shape_cast %13 : vector<8xf32> to vector<8x1xf32>
    %cst_8 = arith.constant 3.200000e+01 : f32
    %15 = vector.broadcast %cst_8 : f32 to vector<8x1xf32>
    %16 = arith.divf %14, %15 : vector<8x1xf32>
    %17 = vector.broadcast %9 : vector<8x1xf32> to vector<8x32xf32>
    %18 = arith.subf %1, %17 : vector<8x32xf32>
    %cst_9 = arith.constant 9.99999974E-6 : f32
    %19 = vector.broadcast %cst_9 : f32 to vector<8x1xf32>
    %20 = arith.addf %16, %19 : vector<8x1xf32>
    %21 = math.rsqrt %20 : vector<8x1xf32>
    %22 = vector.broadcast %21 : vector<8x1xf32> to vector<8x32xf32>
    %23 = arith.mulf %18, %22 : vector<8x32xf32>
    %24 = vector.shape_cast %3 : vector<32xf32> to vector<1x32xf32>
    %25 = vector.broadcast %24 : vector<1x32xf32> to vector<8x32xf32>
    %26 = arith.mulf %23, %25 : vector<8x32xf32>
    %27 = vector.shape_cast %5 : vector<32xf32> to vector<1x32xf32>
    %28 = vector.broadcast %27 : vector<1x32xf32> to vector<8x32xf32>
    %29 = arith.addf %26, %28 : vector<8x32xf32>
    %30 = arith.truncf %29 : vector<8x32xf32> to vector<8x32xbf16>
    %c0_10 = arith.constant 0 : index
    %c0_11 = arith.constant 0 : index
    %31 = vector.load %arg5[%c0_10, %c0_11] : memref<96x32xbf16, #tpu.memory_space<vmem>>, vector<96x32xbf16>
    %cst_12 = arith.constant dense<0.000000e+00> : vector<96x8xf32>
    %32 = tpu.matmul %31, %30, %cst_12 {dimension_numbers = #tpu.dot_dimension_numbers<[1], [1], [0], [0], [0, 0, 1, 0], [], []>} : vector<96x32xbf16>, vector<8x32xbf16>, vector<96x8xf32> -> vector<96x8xf32>
    %c0_13 = arith.constant 0 : index
    %c0_14 = arith.constant 0 : index
    %33 = vector.load %arg6[%c0_13, %c0_14] : memref<96x1xf32, #tpu.memory_space<vmem>>, vector<96x1xf32>
    %34 = vector.broadcast %33 : vector<96x1xf32> to vector<96x8xf32>
    %35 = arith.addf %32, %34 : vector<96x8xf32>
    %36 = vector.extract_strided_slice %35 {offsets = [0, 0], sizes = [32, 8], strides = [1, 1]} : vector<96x8xf32> to vector<32x8xf32>
    %37 = vector.extract_strided_slice %35 {offsets = [32, 0], sizes = [32, 8], strides = [1, 1]} : vector<96x8xf32> to vector<32x8xf32>
    %38 = vector.extract_strided_slice %35 {offsets = [64, 0], sizes = [32, 8], strides = [1, 1]} : vector<96x8xf32> to vector<32x8xf32>
    %c0_15 = arith.constant 0 : index
    %c0_16 = arith.constant 0 : index
    %c0_17 = arith.constant 0 : index
    %39 = vector.load %arg7[%c0_15, %c0_16, %c0_17] : memref<4x8x32xbf16, #tpu.memory_space<vmem>>, vector<4x8x32xbf16>
    %cst_18 = arith.constant 0.353553385 : f32
    %40 = vector.broadcast %cst_18 : f32 to vector<32x8xf32>
    %41 = arith.mulf %36, %40 : vector<32x8xf32>
    %42 = vector.shape_cast %41 : vector<32x8xf32> to vector<4x8x8xf32>
    %43 = tpu.transpose %42, [0, 2, 1] : vector<4x8x8xf32> -> vector<4x8x8xf32>
    %44 = arith.truncf %43 : vector<4x8x8xf32> to vector<4x8x8xbf16>
    %45 = vector.shape_cast %37 : vector<32x8xf32> to vector<4x8x8xf32>
    %46 = arith.truncf %45 : vector<4x8x8xf32> to vector<4x8x8xbf16>
    %47 = vector.shape_cast %38 : vector<32x8xf32> to vector<4x8x8xf32>
    %48 = arith.truncf %47 : vector<4x8x8xf32> to vector<4x8x8xbf16>
    %cst_19 = arith.constant dense<0.000000e+00> : vector<4x8x8xf32>
    %49 = tpu.matmul %44, %46, %cst_19 {dimension_numbers = #tpu.dot_dimension_numbers<[2], [1], [1], [2], [0, 0, 0, 1, 1, 2], [0], [0]>} : vector<4x8x8xbf16>, vector<4x8x8xbf16>, vector<4x8x8xf32> -> vector<4x8x8xf32>
    %50 = tpu.iota {dimensions = array<i32: 0>} : vector<8x8xi32>
    %51 = tpu.iota {dimensions = array<i32: 1>} : vector<8x8xi32>
    %52 = arith.cmpi sge, %50, %51 : vector<8x8xi32>
    %cst_20 = arith.constant 0.000000e+00 : f32
    %cst_21 = arith.constant -1.000000e+09 : f32
    %53 = vector.broadcast %cst_20 : f32 to vector<8x8xf32>
    %54 = vector.broadcast %cst_21 : f32 to vector<8x8xf32>
    %55 = arith.select %52, %53, %54 : vector<8x8xi1>, vector<8x8xf32>
    %56 = vector.shape_cast %55 : vector<8x8xf32> to vector<1x8x8xf32>
    %57 = vector.broadcast %56 : vector<1x8x8xf32> to vector<4x8x8xf32>
    %58 = arith.addf %49, %57 : vector<4x8x8xf32>
    %cst_22 = arith.constant dense<0xFF800000> : vector<4x8xf32>
    %59 = vector.multi_reduction <maximumf>, %58, %cst_22 [2] : vector<4x8x8xf32> to vector<4x8xf32>
    %60 = vector.shape_cast %59 : vector<4x8xf32> to vector<4x8x1xf32>
    %61 = vector.broadcast %60 : vector<4x8x1xf32> to vector<4x8x8xf32>
    %62 = arith.subf %58, %61 : vector<4x8x8xf32>
    %63 = math.exp %62 : vector<4x8x8xf32>
    %cst_23 = arith.constant dense<0.000000e+00> : vector<4x8xf32>
    %64 = vector.multi_reduction <add>, %63, %cst_23 [2] : vector<4x8x8xf32> to vector<4x8xf32>
    %65 = vector.shape_cast %64 : vector<4x8xf32> to vector<4x8x1xf32>
    %66 = tpu.reciprocal %65 {approx = true} : vector<4x8x1xf32> -> vector<4x8x1xf32>
    %67 = vector.broadcast %66 : vector<4x8x1xf32> to vector<4x8x8xf32>
    %68 = arith.mulf %63, %67 : vector<4x8x8xf32>
    %69 = arith.truncf %68 : vector<4x8x8xf32> to vector<4x8x8xbf16>
    %cst_24 = arith.constant dense<0.000000e+00> : vector<4x8x8xf32>
    %70 = tpu.matmul %69, %48, %cst_24 {dimension_numbers = #tpu.dot_dimension_numbers<[2], [2], [1], [1], [0, 0, 0, 1, 1, 1], [0], [0]>} : vector<4x8x8xbf16>, vector<4x8x8xbf16>, vector<4x8x8xf32> -> vector<4x8x8xf32>
    %71 = arith.truncf %70 : vector<4x8x8xf32> to vector<4x8x8xbf16>
    %cst_25 = arith.constant dense<0.000000e+00> : vector<4x8x32xf32>
    %72 = tpu.matmul %71, %39, %cst_25 {dimension_numbers = #tpu.dot_dimension_numbers<[2], [1], [1], [2], [0, 0, 0, 1, 1, 2], [0], [0]>} : vector<4x8x8xbf16>, vector<4x8x32xbf16>, vector<4x8x32xf32> -> vector<4x8x32xf32>
    %cst_26 = arith.constant dense<0.000000e+00> : vector<8x32xf32>
    %73 = vector.multi_reduction <add>, %72, %cst_26 [0] : vector<4x8x32xf32> to vector<8x32xf32>
    %74 = arith.addf %1, %73 : vector<8x32xf32>
    %c0_27 = arith.constant 0 : index
    %c0_28 = arith.constant 0 : index
    %75 = vector.load %arg8[%c0_27, %c0_28] : memref<1x32xf32, #tpu.memory_space<vmem>>, vector<1x32xf32>
    %76 = vector.shape_cast %75 : vector<1x32xf32> to vector<32xf32>
    %77 = vector.shape_cast %76 : vector<32xf32> to vector<1x32xf32>
    %78 = vector.broadcast %77 : vector<1x32xf32> to vector<8x32xf32>
    %79 = arith.addf %74, %78 : vector<8x32xf32>
    %c0_29 = arith.constant 0 : index
    %c0_30 = arith.constant 0 : index
    %80 = vector.load %arg9[%c0_29, %c0_30] : memref<1x32xf32, #tpu.memory_space<vmem>>, vector<1x32xf32>
    %81 = vector.shape_cast %80 : vector<1x32xf32> to vector<32xf32>
    %c0_31 = arith.constant 0 : index
    %c0_32 = arith.constant 0 : index
    %82 = vector.load %arg10[%c0_31, %c0_32] : memref<1x32xf32, #tpu.memory_space<vmem>>, vector<1x32xf32>
    %83 = vector.shape_cast %82 : vector<1x32xf32> to vector<32xf32>
    %cst_33 = arith.constant dense<0.000000e+00> : vector<8xf32>
    %84 = vector.multi_reduction <add>, %79, %cst_33 [1] : vector<8x32xf32> to vector<8xf32>
    %85 = vector.shape_cast %84 : vector<8xf32> to vector<8x1xf32>
    %cst_34 = arith.constant 3.200000e+01 : f32
    %86 = vector.broadcast %cst_34 : f32 to vector<8x1xf32>
    %87 = arith.divf %85, %86 : vector<8x1xf32>
    %88 = vector.broadcast %87 : vector<8x1xf32> to vector<8x32xf32>
    %89 = arith.subf %79, %88 : vector<8x32xf32>
    %90 = arith.mulf %89, %89 : vector<8x32xf32>
    %cst_35 = arith.constant dense<0.000000e+00> : vector<8xf32>
    %91 = vector.multi_reduction <add>, %90, %cst_35 [1] : vector<8x32xf32> to vector<8xf32>
    %92 = vector.shape_cast %91 : vector<8xf32> to vector<8x1xf32>
    %cst_36 = arith.constant 3.200000e+01 : f32
    %93 = vector.broadcast %cst_36 : f32 to vector<8x1xf32>
    %94 = arith.divf %92, %93 : vector<8x1xf32>
    %95 = vector.broadcast %87 : vector<8x1xf32> to vector<8x32xf32>
    %96 = arith.subf %79, %95 : vector<8x32xf32>
    %cst_37 = arith.constant 9.99999974E-6 : f32
    %97 = vector.broadcast %cst_37 : f32 to vector<8x1xf32>
    %98 = arith.addf %94, %97 : vector<8x1xf32>
    %99 = math.rsqrt %98 : vector<8x1xf32>
    %100 = vector.broadcast %99 : vector<8x1xf32> to vector<8x32xf32>
    %101 = arith.mulf %96, %100 : vector<8x32xf32>
    %102 = vector.shape_cast %81 : vector<32xf32> to vector<1x32xf32>
    %103 = vector.broadcast %102 : vector<1x32xf32> to vector<8x32xf32>
    %104 = arith.mulf %101, %103 : vector<8x32xf32>
    %105 = vector.shape_cast %83 : vector<32xf32> to vector<1x32xf32>
    %106 = vector.broadcast %105 : vector<1x32xf32> to vector<8x32xf32>
    %107 = arith.addf %104, %106 : vector<8x32xf32>
    %108 = arith.truncf %107 : vector<8x32xf32> to vector<8x32xbf16>
    %c0_38 = arith.constant 0 : index
    %c0_39 = arith.constant 0 : index
    %c0_40 = arith.constant 0 : index
    %109 = vector.load %arg2[%c0_38, %c0_39, %c0_40] : memref<1x8x32xf32, #tpu.memory_space<vmem>>, vector<1x8x32xf32>
    %110 = vector.shape_cast %109 : vector<1x8x32xf32> to vector<8x32xf32>
    %111 = arith.truncf %110 : vector<8x32xf32> to vector<8x32xbf16>
    %c0_41 = arith.constant 0 : index
    %c0_42 = arith.constant 0 : index
    %112 = vector.load %arg11[%c0_41, %c0_42] : memref<32x32xbf16, #tpu.memory_space<vmem>>, vector<32x32xbf16>
    %cst_43 = arith.constant dense<0.000000e+00> : vector<32x8xf32>
    %113 = tpu.matmul %112, %108, %cst_43 {dimension_numbers = #tpu.dot_dimension_numbers<[1], [1], [0], [0], [0, 0, 1, 0], [], []>} : vector<32x32xbf16>, vector<8x32xbf16>, vector<32x8xf32> -> vector<32x8xf32>
    %c0_44 = arith.constant 0 : index
    %c0_45 = arith.constant 0 : index
    %114 = vector.load %arg12[%c0_44, %c0_45] : memref<32x1xf32, #tpu.memory_space<vmem>>, vector<32x1xf32>
    %115 = vector.broadcast %114 : vector<32x1xf32> to vector<32x8xf32>
    %116 = arith.addf %113, %115 : vector<32x8xf32>
    %c0_46 = arith.constant 0 : index
    %c0_47 = arith.constant 0 : index
    %117 = vector.load %arg13[%c0_46, %c0_47] : memref<64x32xbf16, #tpu.memory_space<vmem>>, vector<64x32xbf16>
    %cst_48 = arith.constant dense<0.000000e+00> : vector<64x8xf32>
    %118 = tpu.matmul %117, %111, %cst_48 {dimension_numbers = #tpu.dot_dimension_numbers<[1], [1], [0], [0], [0, 0, 1, 0], [], []>} : vector<64x32xbf16>, vector<8x32xbf16>, vector<64x8xf32> -> vector<64x8xf32>
    %c0_49 = arith.constant 0 : index
    %c0_50 = arith.constant 0 : index
    %119 = vector.load %arg14[%c0_49, %c0_50] : memref<64x1xf32, #tpu.memory_space<vmem>>, vector<64x1xf32>
    %120 = vector.broadcast %119 : vector<64x1xf32> to vector<64x8xf32>
    %121 = arith.addf %118, %120 : vector<64x8xf32>
    %122 = vector.extract_strided_slice %121 {offsets = [0, 0], sizes = [32, 8], strides = [1, 1]} : vector<64x8xf32> to vector<32x8xf32>
    %123 = vector.extract_strided_slice %121 {offsets = [32, 0], sizes = [32, 8], strides = [1, 1]} : vector<64x8xf32> to vector<32x8xf32>
    %c0_51 = arith.constant 0 : index
    %c0_52 = arith.constant 0 : index
    %c0_53 = arith.constant 0 : index
    %124 = vector.load %arg15[%c0_51, %c0_52, %c0_53] : memref<4x8x32xbf16, #tpu.memory_space<vmem>>, vector<4x8x32xbf16>
    %cst_54 = arith.constant 0.353553385 : f32
    %125 = vector.broadcast %cst_54 : f32 to vector<32x8xf32>
    %126 = arith.mulf %116, %125 : vector<32x8xf32>
    %127 = vector.shape_cast %126 : vector<32x8xf32> to vector<4x8x8xf32>
    %128 = tpu.transpose %127, [0, 2, 1] : vector<4x8x8xf32> -> vector<4x8x8xf32>
    %129 = arith.truncf %128 : vector<4x8x8xf32> to vector<4x8x8xbf16>
    %130 = vector.shape_cast %122 : vector<32x8xf32> to vector<4x8x8xf32>
    %131 = arith.truncf %130 : vector<4x8x8xf32> to vector<4x8x8xbf16>
    %132 = vector.shape_cast %123 : vector<32x8xf32> to vector<4x8x8xf32>
    %133 = arith.truncf %132 : vector<4x8x8xf32> to vector<4x8x8xbf16>
    %cst_55 = arith.constant dense<0.000000e+00> : vector<4x8x8xf32>
    %134 = tpu.matmul %129, %131, %cst_55 {dimension_numbers = #tpu.dot_dimension_numbers<[2], [1], [1], [2], [0, 0, 0, 1, 1, 2], [0], [0]>} : vector<4x8x8xbf16>, vector<4x8x8xbf16>, vector<4x8x8xf32> -> vector<4x8x8xf32>
    %cst_56 = arith.constant dense<0xFF800000> : vector<4x8xf32>
    %135 = vector.multi_reduction <maximumf>, %134, %cst_56 [2] : vector<4x8x8xf32> to vector<4x8xf32>
    %136 = vector.shape_cast %135 : vector<4x8xf32> to vector<4x8x1xf32>
    %137 = vector.broadcast %136 : vector<4x8x1xf32> to vector<4x8x8xf32>
    %138 = arith.subf %134, %137 : vector<4x8x8xf32>
    %139 = math.exp %138 : vector<4x8x8xf32>
    %cst_57 = arith.constant dense<0.000000e+00> : vector<4x8xf32>
    %140 = vector.multi_reduction <add>, %139, %cst_57 [2] : vector<4x8x8xf32> to vector<4x8xf32>
    %141 = vector.shape_cast %140 : vector<4x8xf32> to vector<4x8x1xf32>
    %142 = tpu.reciprocal %141 {approx = true} : vector<4x8x1xf32> -> vector<4x8x1xf32>
    %143 = vector.broadcast %142 : vector<4x8x1xf32> to vector<4x8x8xf32>
    %144 = arith.mulf %139, %143 : vector<4x8x8xf32>
    %145 = arith.truncf %144 : vector<4x8x8xf32> to vector<4x8x8xbf16>
    %cst_58 = arith.constant dense<0.000000e+00> : vector<4x8x8xf32>
    %146 = tpu.matmul %145, %133, %cst_58 {dimension_numbers = #tpu.dot_dimension_numbers<[2], [2], [1], [1], [0, 0, 0, 1, 1, 1], [0], [0]>} : vector<4x8x8xbf16>, vector<4x8x8xbf16>, vector<4x8x8xf32> -> vector<4x8x8xf32>
    %147 = arith.truncf %146 : vector<4x8x8xf32> to vector<4x8x8xbf16>
    %cst_59 = arith.constant dense<0.000000e+00> : vector<4x8x32xf32>
    %148 = tpu.matmul %147, %124, %cst_59 {dimension_numbers = #tpu.dot_dimension_numbers<[2], [1], [1], [2], [0, 0, 0, 1, 1, 2], [0], [0]>} : vector<4x8x8xbf16>, vector<4x8x32xbf16>, vector<4x8x32xf32> -> vector<4x8x32xf32>
    %cst_60 = arith.constant dense<0.000000e+00> : vector<8x32xf32>
    %149 = vector.multi_reduction <add>, %148, %cst_60 [0] : vector<4x8x32xf32> to vector<8x32xf32>
    %150 = arith.addf %79, %149 : vector<8x32xf32>
    %c0_61 = arith.constant 0 : index
    %c0_62 = arith.constant 0 : index
    %151 = vector.load %arg16[%c0_61, %c0_62] : memref<1x32xf32, #tpu.memory_space<vmem>>, vector<1x32xf32>
    %152 = vector.shape_cast %151 : vector<1x32xf32> to vector<32xf32>
    %153 = vector.shape_cast %152 : vector<32xf32> to vector<1x32xf32>
    %154 = vector.broadcast %153 : vector<1x32xf32> to vector<8x32xf32>
    %155 = arith.addf %150, %154 : vector<8x32xf32>
    %c0_63 = arith.constant 0 : index
    %c0_64 = arith.constant 0 : index
    %156 = vector.load %arg17[%c0_63, %c0_64] : memref<1x32xf32, #tpu.memory_space<vmem>>, vector<1x32xf32>
    %157 = vector.shape_cast %156 : vector<1x32xf32> to vector<32xf32>
    %c0_65 = arith.constant 0 : index
    %c0_66 = arith.constant 0 : index
    %158 = vector.load %arg18[%c0_65, %c0_66] : memref<1x32xf32, #tpu.memory_space<vmem>>, vector<1x32xf32>
    %159 = vector.shape_cast %158 : vector<1x32xf32> to vector<32xf32>
    %cst_67 = arith.constant dense<0.000000e+00> : vector<8xf32>
    %160 = vector.multi_reduction <add>, %155, %cst_67 [1] : vector<8x32xf32> to vector<8xf32>
    %161 = vector.shape_cast %160 : vector<8xf32> to vector<8x1xf32>
    %cst_68 = arith.constant 3.200000e+01 : f32
    %162 = vector.broadcast %cst_68 : f32 to vector<8x1xf32>
    %163 = arith.divf %161, %162 : vector<8x1xf32>
    %164 = vector.broadcast %163 : vector<8x1xf32> to vector<8x32xf32>
    %165 = arith.subf %155, %164 : vector<8x32xf32>
    %166 = arith.mulf %165, %165 : vector<8x32xf32>
    %cst_69 = arith.constant dense<0.000000e+00> : vector<8xf32>
    %167 = vector.multi_reduction <add>, %166, %cst_69 [1] : vector<8x32xf32> to vector<8xf32>
    %168 = vector.shape_cast %167 : vector<8xf32> to vector<8x1xf32>
    %cst_70 = arith.constant 3.200000e+01 : f32
    %169 = vector.broadcast %cst_70 : f32 to vector<8x1xf32>
    %170 = arith.divf %168, %169 : vector<8x1xf32>
    %171 = vector.broadcast %163 : vector<8x1xf32> to vector<8x32xf32>
    %172 = arith.subf %155, %171 : vector<8x32xf32>
    %cst_71 = arith.constant 9.99999974E-6 : f32
    %173 = vector.broadcast %cst_71 : f32 to vector<8x1xf32>
    %174 = arith.addf %170, %173 : vector<8x1xf32>
    %175 = math.rsqrt %174 : vector<8x1xf32>
    %176 = vector.broadcast %175 : vector<8x1xf32> to vector<8x32xf32>
    %177 = arith.mulf %172, %176 : vector<8x32xf32>
    %178 = vector.shape_cast %157 : vector<32xf32> to vector<1x32xf32>
    %179 = vector.broadcast %178 : vector<1x32xf32> to vector<8x32xf32>
    %180 = arith.mulf %177, %179 : vector<8x32xf32>
    %181 = vector.shape_cast %159 : vector<32xf32> to vector<1x32xf32>
    %182 = vector.broadcast %181 : vector<1x32xf32> to vector<8x32xf32>
    %183 = arith.addf %180, %182 : vector<8x32xf32>
    %184 = arith.truncf %183 : vector<8x32xf32> to vector<8x32xbf16>
    %c0_72 = arith.constant 0 : index
    %c0_73 = arith.constant 0 : index
    %185 = vector.load %arg19[%c0_72, %c0_73] : memref<64x32xbf16, #tpu.memory_space<vmem>>, vector<64x32xbf16>
    %cst_74 = arith.constant dense<0.000000e+00> : vector<8x64xf32>
    %186 = tpu.matmul %184, %185, %cst_74 {dimension_numbers = #tpu.dot_dimension_numbers<[1], [1], [0], [0], [0, 0, 1, 0], [], []>} : vector<8x32xbf16>, vector<64x32xbf16>, vector<8x64xf32> -> vector<8x64xf32>
    %c0_75 = arith.constant 0 : index
    %c0_76 = arith.constant 0 : index
    %187 = vector.load %arg20[%c0_75, %c0_76] : memref<1x64xf32, #tpu.memory_space<vmem>>, vector<1x64xf32>
    %188 = vector.shape_cast %187 : vector<1x64xf32> to vector<64xf32>
    %189 = vector.shape_cast %188 : vector<64xf32> to vector<1x64xf32>
    %190 = vector.broadcast %189 : vector<1x64xf32> to vector<8x64xf32>
    %191 = arith.addf %186, %190 : vector<8x64xf32>
    %cst_77 = arith.constant 0.000000e+00 : f32
    %192 = vector.broadcast %cst_77 : f32 to vector<8x64xf32>
    %193 = arith.maximumf %191, %192 : vector<8x64xf32>
    %194 = arith.truncf %193 : vector<8x64xf32> to vector<8x64xbf16>
    %c0_78 = arith.constant 0 : index
    %c0_79 = arith.constant 0 : index
    %195 = vector.load %arg21[%c0_78, %c0_79] : memref<32x64xbf16, #tpu.memory_space<vmem>>, vector<32x64xbf16>
    %cst_80 = arith.constant dense<0.000000e+00> : vector<8x32xf32>
    %196 = tpu.matmul %194, %195, %cst_80 {dimension_numbers = #tpu.dot_dimension_numbers<[1], [1], [0], [0], [0, 0, 1, 0], [], []>} : vector<8x64xbf16>, vector<32x64xbf16>, vector<8x32xf32> -> vector<8x32xf32>
    %c0_81 = arith.constant 0 : index
    %c0_82 = arith.constant 0 : index
    %197 = vector.load %arg22[%c0_81, %c0_82] : memref<1x32xf32, #tpu.memory_space<vmem>>, vector<1x32xf32>
    %198 = vector.shape_cast %197 : vector<1x32xf32> to vector<32xf32>
    %199 = vector.shape_cast %198 : vector<32xf32> to vector<1x32xf32>
    %200 = vector.broadcast %199 : vector<1x32xf32> to vector<8x32xf32>
    %201 = arith.addf %196, %200 : vector<8x32xf32>
    %202 = arith.addf %155, %201 : vector<8x32xf32>
    %c0_83 = arith.constant 0 : index
    %c0_84 = arith.constant 0 : index
    %c0_85 = arith.constant 0 : index
    %203 = vector.load %arg23[%c0_83, %c0_84, %c0_85] : memref<1x8x32xf32, #tpu.memory_space<vmem>>, vector<1x8x32xf32>
    %204 = vector.shape_cast %203 : vector<1x8x32xf32> to vector<8x32xf32>
    %205 = vector.shape_cast %202 : vector<8x32xf32> to vector<1x8x32xf32>
    tpu.vector_store %arg23[%c0_83, %c0_84, %c0_85], %205 {strides = array<i32>} : memref<1x8x32xf32, #tpu.memory_space<vmem>>, vector<1x8x32xf32>,
    return
  }
  func.func @transform_0(%arg0: i32) -> (i32, i32, i32) {
    %c0_i32 = arith.constant 0 : i32
    %c0_i32_0 = arith.constant 0 : i32
    %c0_i32_1 = arith.constant 0 : i32
    return %arg0, %c0_i32, %c0_i32_0 : i32, i32, i32
  }
  func.func @transform_1(%arg0: i32) -> (i32, i32, i32) {
    %c0_i32 = arith.constant 0 : i32
    %c0_i32_0 = arith.constant 0 : i32
    %c0_i32_1 = arith.constant 0 : i32
    return %arg0, %c0_i32, %c0_i32_0 : i32, i32, i32
  }
  func.func @transform_2(%arg0: i32) -> (i32, i32) {
    %c0_i32 = arith.constant 0 : i32
    %c0_i32_0 = arith.constant 0 : i32
    %c0_i32_1 = arith.constant 0 : i32
    return %c0_i32, %c0_i32_0 : i32, i32
  }
  func.func @transform_3(%arg0: i32) -> (i32, i32) {
    %c0_i32 = arith.constant 0 : i32
    %c0_i32_0 = arith.constant 0 : i32
    %c0_i32_1 = arith.constant 0 : i32
    return %c0_i32, %c0_i32_0 : i32, i32
  }
  func.func @transform_4(%arg0: i32) -> (i32, i32) {
    %c0_i32 = arith.constant 0 : i32
    %c0_i32_0 = arith.constant 0 : i32
    %c0_i32_1 = arith.constant 0 : i32
    return %c0_i32, %c0_i32_0 : i32, i32
  }
  func.func @transform_5(%arg0: i32) -> (i32, i32) {
    %c0_i32 = arith.constant 0 : i32
    %c0_i32_0 = arith.constant 0 : i32
    %c0_i32_1 = arith.constant 0 : i32
    return %c0_i32, %c0_i32_0 : i32, i32
  }
  func.func @transform_6(%arg0: i32) -> (i32, i32, i32) {
    %c0_i32 = arith.constant 0 : i32
    %c0_i32_0 = arith.constant 0 : i32
    %c0_i32_1 = arith.constant 0 : i32
    %c0_i32_2 = arith.constant 0 : i32
    return %c0_i32, %c0_i32_0, %c0_i32_1 : i32, i32, i32
  }
  func.func @transform_7(%arg0: i32) -> (i32, i32) {
    %c0_i32 = arith.constant 0 : i32
    %c0_i32_0 = arith.constant 0 : i32
    %c0_i32_1 = arith.constant 0 : i32
    return %c0_i32, %c0_i32_0 : i32, i32
  }
  func.func @transform_8(%arg0: i32) -> (i32, i32) {
    %c0_i32 = arith.constant 0 : i32
    %c0_i32_0 = arith.constant 0 : i32
    %c0_i32_1 = arith.constant 0 : i32
    return %c0_i32, %c0_i32_0 : i32, i32
  }
  func.func @transform_9(%arg0: i32) -> (i32, i32) {
    %c0_i32 = arith.constant 0 : i32
    %c0_i32_0 = arith.constant 0 : i32
    %c0_i32_1 = arith.constant 0 : i32
    return %c0_i32, %c0_i32_0 : i32, i32
  }
  func.func @transform_10(%arg0: i32) -> (i32, i32) {
    %c0_i32 = arith.constant 0 : i32
    %c0_i32_0 = arith.constant 0 : i32
    %c0_i32_1 = arith.constant 0 : i32
    return %c0_i32, %c0_i32_0 : i32, i32
  }
  func.func @transform_11(%arg0: i32) -> (i32, i32) {
    %c0_i32 = arith.constant 0 : i32
    %c0_i32_0 = arith.constant 0 : i32
    %c0_i32_1 = arith.constant 0 : i32
    return %c0_i32, %c0_i32_0 : i32, i32
  }
  func.func @transform_12(%arg0: i32) -> (i32, i32) {
    %c0_i32 = arith.constant 0 : i32
    %c0_i32_0 = arith.constant 0 : i32
    %c0_i32_1 = arith.constant 0 : i32
    return %c0_i32, %c0_i32_0 : i32, i32
  }
  func.func @transform_13(%arg0: i32) -> (i32, i32) {
    %c0_i32 = arith.constant 0 : i32
    %c0_i32_0 = arith.constant 0 : i32
    %c0_i32_1 = arith.constant 0 : i32
    return %c0_i32, %c0_i32_0 : i32, i32
  }
  func.func @transform_14(%arg0: i32) -> (i32, i32, i32) {
    %c0_i32 = arith.constant 0 : i32
    %c0_i32_0 = arith.constant 0 : i32
    %c0_i32_1 = arith.constant 0 : i32
    %c0_i32_2 = arith.constant 0 : i32
    return %c0_i32, %c0_i32_0, %c0_i32_1 : i32, i32, i32
  }
  func.func @transform_15(%arg0: i32) -> (i32, i32) {
    %c0_i32 = arith.constant 0 : i32
    %c0_i32_0 = arith.constant 0 : i32
    %c0_i32_1 = arith.constant 0 : i32
    return %c0_i32, %c0_i32_0 : i32, i32
  }
  func.func @transform_16(%arg0: i32) -> (i32, i32) {
    %c0_i32 = arith.constant 0 : i32
    %c0_i32_0 = arith.constant 0 : i32
    %c0_i32_1 = arith.constant 0 : i32
    return %c0_i32, %c0_i32_0 : i32, i32
  }
  func.func @transform_17(%arg0: i32) -> (i32, i32) {
    %c0_i32 = arith.constant 0 : i32
    %c0_i32_0 = arith.constant 0 : i32
    %c0_i32_1 = arith.constant 0 : i32
    return %c0_i32, %c0_i32_0 : i32, i32
  }
  func.func @transform_18(%arg0: i32) -> (i32, i32) {
    %c0_i32 = arith.constant 0 : i32
    %c0_i32_0 = arith.constant 0 : i32
    %c0_i32_1 = arith.constant 0 : i32
    return %c0_i32, %c0_i32_0 : i32, i32
  }
  func.func @transform_19(%arg0: i32) -> (i32, i32) {
    %c0_i32 = arith.constant 0 : i32
    %c0_i32_0 = arith.constant 0 : i32
    %c0_i32_1 = arith.constant 0 : i32
    return %c0_i32, %c0_i32_0 : i32, i32
  }
  func.func @transform_20(%arg0: i32) -> (i32, i32) {
    %c0_i32 = arith.constant 0 : i32
    %c0_i32_0 = arith.constant 0 : i32
    %c0_i32_1 = arith.constant 0 : i32
    return %c0_i32, %c0_i32_0 : i32, i32
  }
  func.func @transform_21(%arg0: i32) -> (i32, i32) {
    %c0_i32 = arith.constant 0 : i32
    %c0_i32_0 = arith.constant 0 : i32
    %c0_i32_1 = arith.constant 0 : i32
    return %c0_i32, %c0_i32_0 : i32, i32
  }
  func.func @transform_22(%arg0: i32) -> (i32, i32, i32) {
    %c0_i32 = arith.constant 0 : i32
    %c0_i32_0 = arith.constant 0 : i32
    %c0_i32_1 = arith.constant 0 : i32
    return %arg0, %c0_i32, %c0_i32_0 : i32, i32, i32
  }
}

</mosaic_0001>

<llo_original>
// kernel: tpu_custom_call.1
$region0: #{tpu_custom_call.1}
  #allocation0 [shape = 'u32[]', space=smem, size = 0x4, offset = 0x4, fixed_abs, tag = 'smem constant byte address 0x4 - core index']
  #allocation1 [shape = 'u32[144,128]{1,0:T(1,128)}', space=vmem, size = 0x12000, scoped, tag = 'internal scratch']
  %s0 = inlined_call_operand.hbm [shape: f32[2,8,32], index: 0, kind: input, shape index: {}, may-alias: {0,22}]
  %s1 = inlined_call_operand.vmem [shape: f32[2,8,32], index: 1, kind: input, shape index: {}]
  %s2 = inlined_call_operand.vmem [shape: f32[1,32], index: 2, kind: input, shape index: {}]
  %s3 = inlined_call_operand.vmem [shape: f32[1,32], index: 3, kind: input, shape index: {}]
  %s4 = inlined_call_operand.vmem [shape: bf16[96,32], index: 4, kind: input, shape index: {}]
  %s5 = inlined_call_operand.vmem [shape: f32[96,1], index: 5, kind: input, shape index: {}]
  %s6 = inlined_call_operand.vmem [shape: bf16[4,8,32], index: 6, kind: input, shape index: {}]
  %s7 = inlined_call_operand.vmem [shape: f32[1,32], index: 7, kind: input, shape index: {}]
  %s8 = inlined_call_operand.vmem [shape: f32[1,32], index: 8, kind: input, shape index: {}]
  %s9 = inlined_call_operand.vmem [shape: f32[1,32], index: 9, kind: input, shape index: {}]
  %s10 = inlined_call_operand.vmem [shape: bf16[32,32], index: 10, kind: input, shape index: {}]
  %s11 = inlined_call_operand.vmem [shape: f32[32,1], index: 11, kind: input, shape index: {}]
  %s12 = inlined_call_operand.vmem [shape: bf16[64,32], index: 12, kind: input, shape index: {}]
  %s13 = inlined_call_operand.vmem [shape: f32[64,1], index: 13, kind: input, shape index: {}]
  %s14 = inlined_call_operand.vmem [shape: bf16[4,8,32], index: 14, kind: input, shape index: {}]
  %s15 = inlined_call_operand.vmem [shape: f32[1,32], index: 15, kind: input, shape index: {}]
  %s16 = inlined_call_operand.vmem [shape: f32[1,32], index: 16, kind: input, shape index: {}]
  %s17 = inlined_call_operand.vmem [shape: f32[1,32], index: 17, kind: input, shape index: {}]
  %s18 = inlined_call_operand.vmem [shape: bf16[64,32], index: 18, kind: input, shape index: {}]
  %s19 = inlined_call_operand.vmem [shape: f32[1,64], index: 19, kind: input, shape index: {}]
  %s20 = inlined_call_operand.vmem [shape: bf16[32,64], index: 20, kind: input, shape index: {}]
  %s21 = inlined_call_operand.vmem [shape: f32[1,32], index: 21, kind: input, shape index: {}]
  %s22 = inlined_call_operand.hbm [shape: f32[2,8,32], index: 22, kind: output, shape index: {}, may-alias: {0,22}]
  %s23 = sld [smem:[#allocation0]]
  $region125: #{tpu_custom_call.1} parent=0
    _
  %s25 = ssub.s32 1, %s23
  %s26 = scalar_select 0, %s25, %s23
  $region1: #{tpu_custom_call.1} parent=0
    #allocation2 [shape = 'u8[8192]{0}', space=vmem, size = 0x2000, scoped, tag = 'input window, operand 0']
    #allocation3 [shape = 's32[2]{0}', space=sflag, size = 0x8, scoped, tag = 'scoped memory for tpu_custom_call.1']
    #allocation4 [shape = 's32[2]{0}', space=sflag, size = 0x8, scoped, tag = 'scoped memory for tpu_custom_call.1']
    #allocation5 [shape = 'u8[8192]{0}', space=vmem, size = 0x2000, scoped, tag = 'output window, operand 0']
    %27 = vsyncpa [#allocation3], 0
    %s28 = scalar_lea.sflag [#allocation3], 1
    %29 = vsyncpa %s28, 0
    %30 = vsyncpa [#allocation4], 0
    %s31 = scalar_lea.sflag [#allocation4], 1
    %32 = vsyncpa %s31, 0
    loop: start=0, step=1, limit=4
    $region2: #{tpu_custom_call.1} parent=1 // loop_pre_header
      _
    $region3: #{tpu_custom_call.1} parent=1 // loop_header
      %s34 = sphi 0, %s38
      %p35 = scmp.ge.s32.totalorder %s34, 4
      %s44 = sphi 0, %s46
      %s47 = sphi 0, %s44
      %s48 = sphi 0, %s47
      %s64 = sphi 0, %s48
      %s70 = sphi 0, %s72
      %s73 = sphi 0, %s70
      %s74 = sphi 0, %s73
      %s90 = sphi 0, %s74
      %s94 = sphi 0, %s94
      %s96 = sphi 0, %s94
      %s97 = sphi 0, %s96
      %s111 = sphi 0, %s97
      %s115 = sphi 0, %s115
      %s117 = sphi 0, %s115
      %s118 = sphi 0, %s117
      %s132 = sphi 0, %s118
      %s136 = sphi 0, %s136
      %s138 = sphi 0, %s136
      %s139 = sphi 0, %s138
      %s153 = sphi 0, %s139
      %s157 = sphi 0, %s157
      %s159 = sphi 0, %s157
      %s160 = sphi 0, %s159
      %s174 = sphi 0, %s160
      %s178 = sphi 0, %s178
      %s180 = sphi 0, %s178
      %s181 = sphi 0, %s180
      %s195 = sphi 0, %s181
      %s199 = sphi 0, %s199
      %s201 = sphi 0, %s199
      %s202 = sphi 0, %s201
      %s216 = sphi 0, %s202
      %s220 = sphi 0, %s220
      %s222 = sphi 0, %s220
      %s223 = sphi 0, %s222
      %s237 = sphi 0, %s223
      %s241 = sphi 0, %s241
      %s243 = sphi 0, %s241
      %s244 = sphi 0, %s243
      %s258 = sphi 0, %s244
      %s262 = sphi 0, %s262
      %s264 = sphi 0, %s262
      %s265 = sphi 0, %s264
      %s279 = sphi 0, %s265
      %s283 = sphi 0, %s283
      %s285 = sphi 0, %s283
      %s286 = sphi 0, %s285
      %s300 = sphi 0, %s286
      %s304 = sphi 0, %s304
      %s306 = sphi 0, %s304
      %s307 = sphi 0, %s306
      %s321 = sphi 0, %s307
      %s325 = sphi 0, %s325
      %s327 = sphi 0, %s325
      %s328 = sphi 0, %s327
      %s342 = sphi 0, %s328
      %s346 = sphi 0, %s346
      %s348 = sphi 0, %s346
      %s349 = sphi 0, %s348
      %s363 = sphi 0, %s349
      %s367 = sphi 0, %s367
      %s369 = sphi 0, %s367
      %s370 = sphi 0, %s369
      %s384 = sphi 0, %s370
      %s388 = sphi 0, %s388
      %s390 = sphi 0, %s388
      %s391 = sphi 0, %s390
      %s405 = sphi 0, %s391
      %s409 = sphi 0, %s409
      %s411 = sphi 0, %s409
      %s412 = sphi 0, %s411
      %s426 = sphi 0, %s412
      %s430 = sphi 0, %s430
      %s432 = sphi 0, %s430
      %s433 = sphi 0, %s432
      %s447 = sphi 0, %s433
      %s451 = sphi 0, %s451
      %s453 = sphi 0, %s451
      %s454 = sphi 0, %s453
      %s468 = sphi 0, %s454
      %s472 = sphi 0, %s472
      %s474 = sphi 0, %s472
      %s475 = sphi 0, %s474
      %s489 = sphi 0, %s475
      %s493 = sphi 0, %s493
      %s495 = sphi 0, %s493
      %s496 = sphi 0, %s495
      %s510 = sphi 0, %s496
      %s516 = sphi 0, %s518
      %s519 = sphi 0, %s516
      %s520 = sphi 0, %s519
      %s536 = sphi 0, %s520
    $region4: #{tpu_custom_call.1} parent=1 // loop_header_branch
      %37 = sbr.rel (%p35) target = $region8
    $region5: #{tpu_custom_call.1} parent=1 // loop_body
      %s39 = ssub.s32 %s34, 1
      %s40 = ssub.s32 %s34, 2
      %s41 = sadd.s32 %s34, 1
      %s42 = ssub.s32 %s34, %s41
      %p43 = scmp.eq.s32.totalorder %s42, 0
      %s45 = sadd.s32 %s44, 1
      %s46 = scalar_select %p43, %s44, %s45
      %p49 = pneg %p43
      %p50 = scmp.eq.s32.totalorder %s34, 1
      %p51 = por %p49, %p50
      %p52 = scmp.ne.s32.totalorder %s44, %s47
      %p53 = scmp.eq.s32.totalorder %s34, 0
      %p54 = por %p52, %p53
      %p55 = scmp.ne.s32.totalorder %s44, %s47
      %p56 = scmp.eq.s32.totalorder %s39, 1
      %p57 = por %p55, %p56
      %p58 = scmp.ne.s32.totalorder %s47, %s48
      %p59 = scmp.eq.s32.totalorder %s39, 0
      %p60 = por %p58, %p59
      %p61 = scmp.ne.s32.totalorder %s47, %s48
      %p62 = scmp.eq.s32.totalorder %s40, 1
      %p63 = por %p61, %p62
      %p65 = scmp.ne.s32.totalorder %s48, %s64
      %p66 = scmp.eq.s32.totalorder %s40, 0
      %p67 = por %p65, %p66
      %s68 = ssub.s32 %s34, %s41
      %p69 = scmp.eq.s32.totalorder %s68, 0
      %s71 = sadd.s32 %s70, 1
      %s72 = scalar_select %p69, %s70, %s71
      %p75 = pneg %p69
      %p76 = scmp.eq.s32.totalorder %s34, 1
      %p77 = por %p75, %p76
      %p78 = scmp.ne.s32.totalorder %s70, %s73
      %p79 = scmp.eq.s32.totalorder %s34, 0
      %p80 = por %p78, %p79
      %p81 = scmp.ne.s32.totalorder %s70, %s73
      %p82 = scmp.eq.s32.totalorder %s39, 1
      %p83 = por %p81, %p82
      %p84 = scmp.ne.s32.totalorder %s73, %s74
      %p85 = scmp.eq.s32.totalorder %s39, 0
      %p86 = por %p84, %p85
      %p87 = scmp.ne.s32.totalorder %s73, %s74
      %p88 = scmp.eq.s32.totalorder %s40, 1
      %p89 = por %p87, %p88
      %p91 = scmp.ne.s32.totalorder %s74, %s90
      %p92 = scmp.eq.s32.totalorder %s40, 0
      %p93 = por %p91, %p92
      %s95 = sadd.s32 %s94, 1
      %p98 = scmp.eq.s32.totalorder %s34, 1
      %p99 = scmp.ne.s32.totalorder %s94, %s96
      %p100 = scmp.eq.s32.totalorder %s34, 0
      %p101 = por %p99, %p100
      %p102 = scmp.ne.s32.totalorder %s94, %s96
      %p103 = scmp.eq.s32.totalorder %s39, 1
      %p104 = por %p102, %p103
      %p105 = scmp.ne.s32.totalorder %s96, %s97
      %p106 = scmp.eq.s32.totalorder %s39, 0
      %p107 = por %p105, %p106
      %p108 = scmp.ne.s32.totalorder %s96, %s97
      %p109 = scmp.eq.s32.totalorder %s40, 1
      %p110 = por %p108, %p109
      %p112 = scmp.ne.s32.totalorder %s97, %s111
      %p113 = scmp.eq.s32.totalorder %s40, 0
      %p114 = por %p112, %p113
      %s116 = sadd.s32 %s115, 1
      %p119 = scmp.eq.s32.totalorder %s34, 1
      %p120 = scmp.ne.s32.totalorder %s115, %s117
      %p121 = scmp.eq.s32.totalorder %s34, 0
      %p122 = por %p120, %p121
      %p123 = scmp.ne.s32.totalorder %s115, %s117
      %p124 = scmp.eq.s32.totalorder %s39, 1
      %p125 = por %p123, %p124
      %p126 = scmp.ne.s32.totalorder %s117, %s118
      %p127 = scmp.eq.s32.totalorder %s39, 0
      %p128 = por %p126, %p127
      %p129 = scmp.ne.s32.totalorder %s117, %s118
      %p130 = scmp.eq.s32.totalorder %s40, 1
      %p131 = por %p129, %p130
      %p133 = scmp.ne.s32.totalorder %s118, %s132
      %p134 = scmp.eq.s32.totalorder %s40, 0
      %p135 = por %p133, %p134
      %s137 = sadd.s32 %s136, 1
      %p140 = scmp.eq.s32.totalorder %s34, 1
      %p141 = scmp.ne.s32.totalorder %s136, %s138
      %p142 = scmp.eq.s32.totalorder %s34, 0
      %p143 = por %p141, %p142
      %p144 = scmp.ne.s32.totalorder %s136, %s138
      %p145 = scmp.eq.s32.totalorder %s39, 1
      %p146 = por %p144, %p145
      %p147 = scmp.ne.s32.totalorder %s138, %s139
      %p148 = scmp.eq.s32.totalorder %s39, 0
      %p149 = por %p147, %p148
      %p150 = scmp.ne.s32.totalorder %s138, %s139
      %p151 = scmp.eq.s32.totalorder %s40, 1
      %p152 = por %p150, %p151
      %p154 = scmp.ne.s32.totalorder %s139, %s153
      %p155 = scmp.eq.s32.totalorder %s40, 0
      %p156 = por %p154, %p155
      %s158 = sadd.s32 %s157, 1
      %p161 = scmp.eq.s32.totalorder %s34, 1
      %p162 = scmp.ne.s32.totalorder %s157, %s159
      %p163 = scmp.eq.s32.totalorder %s34, 0
      %p164 = por %p162, %p163
      %p165 = scmp.ne.s32.totalorder %s157, %s159
      %p166 = scmp.eq.s32.totalorder %s39, 1
      %p167 = por %p165, %p166
      %p168 = scmp.ne.s32.totalorder %s159, %s160
      %p169 = scmp.eq.s32.totalorder %s39, 0
      %p170 = por %p168, %p169
      %p171 = scmp.ne.s32.totalorder %s159, %s160
      %p172 = scmp.eq.s32.totalorder %s40, 1
      %p173 = por %p171, %p172
      %p175 = scmp.ne.s32.totalorder %s160, %s174
      %p176 = scmp.eq.s32.totalorder %s40, 0
      %p177 = por %p175, %p176
      %s179 = sadd.s32 %s178, 1
      %p182 = scmp.eq.s32.totalorder %s34, 1
      %p183 = scmp.ne.s32.totalorder %s178, %s180
      %p184 = scmp.eq.s32.totalorder %s34, 0
      %p185 = por %p183, %p184
      %p186 = scmp.ne.s32.totalorder %s178, %s180
      %p187 = scmp.eq.s32.totalorder %s39, 1
      %p188 = por %p186, %p187
      %p189 = scmp.ne.s32.totalorder %s180, %s181
      %p190 = scmp.eq.s32.totalorder %s39, 0
      %p191 = por %p189, %p190
      %p192 = scmp.ne.s32.totalorder %s180, %s181
      %p193 = scmp.eq.s32.totalorder %s40, 1
      %p194 = por %p192, %p193
      %p196 = scmp.ne.s32.totalorder %s181, %s195
      %p197 = scmp.eq.s32.totalorder %s40, 0
      %p198 = por %p196, %p197
      %s200 = sadd.s32 %s199, 1
      %p203 = scmp.eq.s32.totalorder %s34, 1
      %p204 = scmp.ne.s32.totalorder %s199, %s201
      %p205 = scmp.eq.s32.totalorder %s34, 0
      %p206 = por %p204, %p205
      %p207 = scmp.ne.s32.totalorder %s199, %s201
      %p208 = scmp.eq.s32.totalorder %s39, 1
      %p209 = por %p207, %p208
      %p210 = scmp.ne.s32.totalorder %s201, %s202
      %p211 = scmp.eq.s32.totalorder %s39, 0
      %p212 = por %p210, %p211
      %p213 = scmp.ne.s32.totalorder %s201, %s202
      %p214 = scmp.eq.s32.totalorder %s40, 1
      %p215 = por %p213, %p214
      %p217 = scmp.ne.s32.totalorder %s202, %s216
      %p218 = scmp.eq.s32.totalorder %s40, 0
      %p219 = por %p217, %p218
      %s221 = sadd.s32 %s220, 1
      %p224 = scmp.eq.s32.totalorder %s34, 1
      %p225 = scmp.ne.s32.totalorder %s220, %s222
      %p226 = scmp.eq.s32.totalorder %s34, 0
      %p227 = por %p225, %p226
      %p228 = scmp.ne.s32.totalorder %s220, %s222
      %p229 = scmp.eq.s32.totalorder %s39, 1
      %p230 = por %p228, %p229
      %p231 = scmp.ne.s32.totalorder %s222, %s223
      %p232 = scmp.eq.s32.totalorder %s39, 0
      %p233 = por %p231, %p232
      %p234 = scmp.ne.s32.totalorder %s222, %s223
      %p235 = scmp.eq.s32.totalorder %s40, 1
      %p236 = por %p234, %p235
      %p238 = scmp.ne.s32.totalorder %s223, %s237
      %p239 = scmp.eq.s32.totalorder %s40, 0
      %p240 = por %p238, %p239
      %s242 = sadd.s32 %s241, 1
      %p245 = scmp.eq.s32.totalorder %s34, 1
      %p246 = scmp.ne.s32.totalorder %s241, %s243
      %p247 = scmp.eq.s32.totalorder %s34, 0
      %p248 = por %p246, %p247
      %p249 = scmp.ne.s32.totalorder %s241, %s243
      %p250 = scmp.eq.s32.totalorder %s39, 1
      %p251 = por %p249, %p250
      %p252 = scmp.ne.s32.totalorder %s243, %s244
      %p253 = scmp.eq.s32.totalorder %s39, 0
      %p254 = por %p252, %p253
      %p255 = scmp.ne.s32.totalorder %s243, %s244
      %p256 = scmp.eq.s32.totalorder %s40, 1
      %p257 = por %p255, %p256
      %p259 = scmp.ne.s32.totalorder %s244, %s258
      %p260 = scmp.eq.s32.totalorder %s40, 0
      %p261 = por %p259, %p260
      %s263 = sadd.s32 %s262, 1
      %p266 = scmp.eq.s32.totalorder %s34, 1
      %p267 = scmp.ne.s32.totalorder %s262, %s264
      %p268 = scmp.eq.s32.totalorder %s34, 0
      %p269 = por %p267, %p268
      %p270 = scmp.ne.s32.totalorder %s262, %s264
      %p271 = scmp.eq.s32.totalorder %s39, 1
      %p272 = por %p270, %p271
      %p273 = scmp.ne.s32.totalorder %s264, %s265
      %p274 = scmp.eq.s32.totalorder %s39, 0
      %p275 = por %p273, %p274
      %p276 = scmp.ne.s32.totalorder %s264, %s265
      %p277 = scmp.eq.s32.totalorder %s40, 1
      %p278 = por %p276, %p277
      %p280 = scmp.ne.s32.totalorder %s265, %s279
      %p281 = scmp.eq.s32.totalorder %s40, 0
      %p282 = por %p280, %p281
      %s284 = sadd.s32 %s283, 1
      %p287 = scmp.eq.s32.totalorder %s34, 1
      %p288 = scmp.ne.s32.totalorder %s283, %s285
      %p289 = scmp.eq.s32.totalorder %s34, 0
      %p290 = por %p288, %p289
      %p291 = scmp.ne.s32.totalorder %s283, %s285
      %p292 = scmp.eq.s32.totalorder %s39, 1
      %p293 = por %p291, %p292
      %p294 = scmp.ne.s32.totalorder %s285, %s286
      %p295 = scmp.eq.s32.totalorder %s39, 0
      %p296 = por %p294, %p295
      %p297 = scmp.ne.s32.totalorder %s285, %s286
      %p298 = scmp.eq.s32.totalorder %s40, 1
      %p299 = por %p297, %p298
      %p301 = scmp.ne.s32.totalorder %s286, %s300
      %p302 = scmp.eq.s32.totalorder %s40, 0
      %p303 = por %p301, %p302
      %s305 = sadd.s32 %s304, 1
      %p308 = scmp.eq.s32.totalorder %s34, 1
      %p309 = scmp.ne.s32.totalorder %s304, %s306
      %p310 = scmp.eq.s32.totalorder %s34, 0
      %p311 = por %p309, %p310
      %p312 = scmp.ne.s32.totalorder %s304, %s306
      %p313 = scmp.eq.s32.totalorder %s39, 1
      %p314 = por %p312, %p313
      %p315 = scmp.ne.s32.totalorder %s306, %s307
      %p316 = scmp.eq.s32.totalorder %s39, 0
      %p317 = por %p315, %p316
      %p318 = scmp.ne.s32.totalorder %s306, %s307
      %p319 = scmp.eq.s32.totalorder %s40, 1
      %p320 = por %p318, %p319
      %p322 = scmp.ne.s32.totalorder %s307, %s321
      %p323 = scmp.eq.s32.totalorder %s40, 0
      %p324 = por %p322, %p323
      %s326 = sadd.s32 %s325, 1
      %p329 = scmp.eq.s32.totalorder %s34, 1
      %p330 = scmp.ne.s32.totalorder %s325, %s327
      %p331 = scmp.eq.s32.totalorder %s34, 0
      %p332 = por %p330, %p331
      %p333 = scmp.ne.s32.totalorder %s325, %s327
      %p334 = scmp.eq.s32.totalorder %s39, 1
      %p335 = por %p333, %p334
      %p336 = scmp.ne.s32.totalorder %s327, %s328
      %p337 = scmp.eq.s32.totalorder %s39, 0
      %p338 = por %p336, %p337
      %p339 = scmp.ne.s32.totalorder %s327, %s328
      %p340 = scmp.eq.s32.totalorder %s40, 1
      %p341 = por %p339, %p340
      %p343 = scmp.ne.s32.totalorder %s328, %s342
      %p344 = scmp.eq.s32.totalorder %s40, 0
      %p345 = por %p343, %p344
      %s347 = sadd.s32 %s346, 1
      %p350 = scmp.eq.s32.totalorder %s34, 1
      %p351 = scmp.ne.s32.totalorder %s346, %s348
      %p352 = scmp.eq.s32.totalorder %s34, 0
      %p353 = por %p351, %p352
      %p354 = scmp.ne.s32.totalorder %s346, %s348
      %p355 = scmp.eq.s32.totalorder %s39, 1
      %p356 = por %p354, %p355
      %p357 = scmp.ne.s32.totalorder %s348, %s349
      %p358 = scmp.eq.s32.totalorder %s39, 0
      %p359 = por %p357, %p358
      %p360 = scmp.ne.s32.totalorder %s348, %s349
      %p361 = scmp.eq.s32.totalorder %s40, 1
      %p362 = por %p360, %p361
      %p364 = scmp.ne.s32.totalorder %s349, %s363
      %p365 = scmp.eq.s32.totalorder %s40, 0
      %p366 = por %p364, %p365
      %s368 = sadd.s32 %s367, 1
      %p371 = scmp.eq.s32.totalorder %s34, 1
      %p372 = scmp.ne.s32.totalorder %s367, %s369
      %p373 = scmp.eq.s32.totalorder %s34, 0
      %p374 = por %p372, %p373
      %p375 = scmp.ne.s32.totalorder %s367, %s369
      %p376 = scmp.eq.s32.totalorder %s39, 1
      %p377 = por %p375, %p376
      %p378 = scmp.ne.s32.totalorder %s369, %s370
      %p379 = scmp.eq.s32.totalorder %s39, 0
      %p380 = por %p378, %p379
      %p381 = scmp.ne.s32.totalorder %s369, %s370
      %p382 = scmp.eq.s32.totalorder %s40, 1
      %p383 = por %p381, %p382
      %p385 = scmp.ne.s32.totalorder %s370, %s384
      %p386 = scmp.eq.s32.totalorder %s40, 0
      %p387 = por %p385, %p386
      %s389 = sadd.s32 %s388, 1
      %p392 = scmp.eq.s32.totalorder %s34, 1
      %p393 = scmp.ne.s32.totalorder %s388, %s390
      %p394 = scmp.eq.s32.totalorder %s34, 0
      %p395 = por %p393, %p394
      %p396 = scmp.ne.s32.totalorder %s388, %s390
      %p397 = scmp.eq.s32.totalorder %s39, 1
      %p398 = por %p396, %p397
      %p399 = scmp.ne.s32.totalorder %s390, %s391
      %p400 = scmp.eq.s32.totalorder %s39, 0
      %p401 = por %p399, %p400
      %p402 = scmp.ne.s32.totalorder %s390, %s391
      %p403 = scmp.eq.s32.totalorder %s40, 1
      %p404 = por %p402, %p403
      %p406 = scmp.ne.s32.totalorder %s391, %s405
      %p407 = scmp.eq.s32.totalorder %s40, 0
      %p408 = por %p406, %p407
      %s410 = sadd.s32 %s409, 1
      %p413 = scmp.eq.s32.totalorder %s34, 1
      %p414 = scmp.ne.s32.totalorder %s409, %s411
      %p415 = scmp.eq.s32.totalorder %s34, 0
      %p416 = por %p414, %p415
      %p417 = scmp.ne.s32.totalorder %s409, %s411
      %p418 = scmp.eq.s32.totalorder %s39, 1
      %p419 = por %p417, %p418
      %p420 = scmp.ne.s32.totalorder %s411, %s412
      %p421 = scmp.eq.s32.totalorder %s39, 0
      %p422 = por %p420, %p421
      %p423 = scmp.ne.s32.totalorder %s411, %s412
      %p424 = scmp.eq.s32.totalorder %s40, 1
      %p425 = por %p423, %p424
      %p427 = scmp.ne.s32.totalorder %s412, %s426
      %p428 = scmp.eq.s32.totalorder %s40, 0
      %p429 = por %p427, %p428
      %s431 = sadd.s32 %s430, 1
      %p434 = scmp.eq.s32.totalorder %s34, 1
      %p435 = scmp.ne.s32.totalorder %s430, %s432
      %p436 = scmp.eq.s32.totalorder %s34, 0
      %p437 = por %p435, %p436
      %p438 = scmp.ne.s32.totalorder %s430, %s432
      %p439 = scmp.eq.s32.totalorder %s39, 1
      %p440 = por %p438, %p439
      %p441 = scmp.ne.s32.totalorder %s432, %s433
      %p442 = scmp.eq.s32.totalorder %s39, 0
      %p443 = por %p441, %p442
      %p444 = scmp.ne.s32.totalorder %s432, %s433
      %p445 = scmp.eq.s32.totalorder %s40, 1
      %p446 = por %p444, %p445
      %p448 = scmp.ne.s32.totalorder %s433, %s447
      %p449 = scmp.eq.s32.totalorder %s40, 0
      %p450 = por %p448, %p449
      %s452 = sadd.s32 %s451, 1
      %p455 = scmp.eq.s32.totalorder %s34, 1
      %p456 = scmp.ne.s32.totalorder %s451, %s453
      %p457 = scmp.eq.s32.totalorder %s34, 0
      %p458 = por %p456, %p457
      %p459 = scmp.ne.s32.totalorder %s451, %s453
      %p460 = scmp.eq.s32.totalorder %s39, 1
      %p461 = por %p459, %p460
      %p462 = scmp.ne.s32.totalorder %s453, %s454
      %p463 = scmp.eq.s32.totalorder %s39, 0
      %p464 = por %p462, %p463
      %p465 = scmp.ne.s32.totalorder %s453, %s454
      %p466 = scmp.eq.s32.totalorder %s40, 1
      %p467 = por %p465, %p466
      %p469 = scmp.ne.s32.totalorder %s454, %s468
      %p470 = scmp.eq.s32.totalorder %s40, 0
      %p471 = por %p469, %p470
      %s473 = sadd.s32 %s472, 1
      %p476 = scmp.eq.s32.totalorder %s34, 1
      %p477 = scmp.ne.s32.totalorder %s472, %s474
      %p478 = scmp.eq.s32.totalorder %s34, 0
      %p479 = por %p477, %p478
      %p480 = scmp.ne.s32.totalorder %s472, %s474
      %p481 = scmp.eq.s32.totalorder %s39, 1
      %p482 = por %p480, %p481
      %p483 = scmp.ne.s32.totalorder %s474, %s475
      %p484 = scmp.eq.s32.totalorder %s39, 0
      %p485 = por %p483, %p484
      %p486 = scmp.ne.s32.totalorder %s474, %s475
      %p487 = scmp.eq.s32.totalorder %s40, 1
      %p488 = por %p486, %p487
      %p490 = scmp.ne.s32.totalorder %s475, %s489
      %p491 = scmp.eq.s32.totalorder %s40, 0
      %p492 = por %p490, %p491
      %s494 = sadd.s32 %s493, 1
      %p497 = scmp.eq.s32.totalorder %s34, 1
      %p498 = scmp.ne.s32.totalorder %s493, %s495
      %p499 = scmp.eq.s32.totalorder %s34, 0
      %p500 = por %p498, %p499
      %p501 = scmp.ne.s32.totalorder %s493, %s495
      %p502 = scmp.eq.s32.totalorder %s39, 1
      %p503 = por %p501, %p502
      %p504 = scmp.ne.s32.totalorder %s495, %s496
      %p505 = scmp.eq.s32.totalorder %s39, 0
      %p506 = por %p504, %p505
      %p507 = scmp.ne.s32.totalorder %s495, %s496
      %p508 = scmp.eq.s32.totalorder %s40, 1
      %p509 = por %p507, %p508
      %p511 = scmp.ne.s32.totalorder %s496, %s510
      %p512 = scmp.eq.s32.totalorder %s40, 0
      %p513 = por %p511, %p512
      %s514 = ssub.s32 %s34, %s41
      %p515 = scmp.eq.s32.totalorder %s514, 0
      %s517 = sadd.s32 %s516, 1
      %s518 = scalar_select %p515, %s516, %s517
      %p521 = pneg %p515
      %p522 = scmp.eq.s32.totalorder %s34, 1
      %p523 = por %p521, %p522
      %p524 = scmp.ne.s32.totalorder %s516, %s519
      %p525 = scmp.eq.s32.totalorder %s34, 0
      %p526 = por %p524, %p525
      %p527 = scmp.ne.s32.totalorder %s516, %s519
      %p528 = scmp.eq.s32.totalorder %s39, 1
      %p529 = por %p527, %p528
      %p530 = scmp.ne.s32.totalorder %s519, %s520
      %p531 = scmp.eq.s32.totalorder %s39, 0
      %p532 = por %p530, %p531
      %p533 = scmp.ne.s32.totalorder %s519, %s520
      %p534 = scmp.eq.s32.totalorder %s40, 1
      %p535 = por %p533, %p534
      %p537 = scmp.ne.s32.totalorder %s520, %s536
      %p538 = scmp.eq.s32.totalorder %s40, 0
      %p539 = por %p537, %p538
      %p540 = scmp.le.s32.totalorder 1, %s34
      %p541 = scmp.lt.s32.totalorder %s34, 3
      %p542 = pnand %p540, %p541
      %p543 = pneg %p542
      // Predicated region
      $region9: #{tpu_custom_call.1} parent=5 // pred_check
        _
      $region10: #{tpu_custom_call.1} parent=5 // pred_check_branch
        %545 = sbr.rel (%p542) target = $region12
      $region11: #{tpu_custom_call.1} parent=5 // pred_region
        %s546 = ssub.s32 %s34, 1
        // Predicated region
        $region13: #{tpu_custom_call.1} parent=11 // pred_check
          %p547 = pneg %p107
        $region14: #{tpu_custom_call.1} parent=11 // pred_check_branch
          %549 = sbr.rel (%p547) target = $region16
        $region15: #{tpu_custom_call.1} parent=11 // pred_region
          _
        $region16: #{tpu_custom_call.1} parent=11 // pred_fallthru
          _
        // Predicated region
        $region17: #{tpu_custom_call.1} parent=11 // pred_check
          %p550 = pneg %p128
        $region18: #{tpu_custom_call.1} parent=11 // pred_check_branch
          %552 = sbr.rel (%p550) target = $region20
        $region19: #{tpu_custom_call.1} parent=11 // pred_region
          _
        $region20: #{tpu_custom_call.1} parent=11 // pred_fallthru
          _
        // Predicated region
        $region21: #{tpu_custom_call.1} parent=11 // pred_check
          %p553 = pneg %p149
        $region22: #{tpu_custom_call.1} parent=11 // pred_check_branch
          %555 = sbr.rel (%p553) target = $region24
        $region23: #{tpu_custom_call.1} parent=11 // pred_region
          _
        $region24: #{tpu_custom_call.1} parent=11 // pred_fallthru
          _
        // Predicated region
        $region25: #{tpu_custom_call.1} parent=11 // pred_check
          %p556 = pneg %p170
        $region26: #{tpu_custom_call.1} parent=11 // pred_check_branch
          %558 = sbr.rel (%p556) target = $region28
        $region27: #{tpu_custom_call.1} parent=11 // pred_region
          _
        $region28: #{tpu_custom_call.1} parent=11 // pred_fallthru
          _
        // Predicated region
        $region29: #{tpu_custom_call.1} parent=11 // pred_check
          %p559 = pneg %p191
        $region30: #{tpu_custom_call.1} parent=11 // pred_check_branch
          %561 = sbr.rel (%p559) target = $region32
        $region31: #{tpu_custom_call.1} parent=11 // pred_region
          _
        $region32: #{tpu_custom_call.1} parent=11 // pred_fallthru
          _
        // Predicated region
        $region33: #{tpu_custom_call.1} parent=11 // pred_check
          %p562 = pneg %p212
        $region34: #{tpu_custom_call.1} parent=11 // pred_check_branch
          %564 = sbr.rel (%p562) target = $region36
        $region35: #{tpu_custom_call.1} parent=11 // pred_region
          _
        $region36: #{tpu_custom_call.1} parent=11 // pred_fallthru
          _
        // Predicated region
        $region37: #{tpu_custom_call.1} parent=11 // pred_check
          %p565 = pneg %p233
        $region38: #{tpu_custom_call.1} parent=11 // pred_check_branch
          %567 = sbr.rel (%p565) target = $region40
        $region39: #{tpu_custom_call.1} parent=11 // pred_region
          _
        $region40: #{tpu_custom_call.1} parent=11 // pred_fallthru
          _
        // Predicated region
        $region41: #{tpu_custom_call.1} parent=11 // pred_check
          %p568 = pneg %p254
        $region42: #{tpu_custom_call.1} parent=11 // pred_check_branch
          %570 = sbr.rel (%p568) target = $region44
        $region43: #{tpu_custom_call.1} parent=11 // pred_region
          _
        $region44: #{tpu_custom_call.1} parent=11 // pred_fallthru
          _
        // Predicated region
        $region45: #{tpu_custom_call.1} parent=11 // pred_check
          %p571 = pneg %p275
        $region46: #{tpu_custom_call.1} parent=11 // pred_check_branch
          %573 = sbr.rel (%p571) target = $region48
        $region47: #{tpu_custom_call.1} parent=11 // pred_region
          _
        $region48: #{tpu_custom_call.1} parent=11 // pred_fallthru
          _
        // Predicated region
        $region49: #{tpu_custom_call.1} parent=11 // pred_check
          %p574 = pneg %p296
        $region50: #{tpu_custom_call.1} parent=11 // pred_check_branch
          %576 = sbr.rel (%p574) target = $region52
        $region51: #{tpu_custom_call.1} parent=11 // pred_region
          _
        $region52: #{tpu_custom_call.1} parent=11 // pred_fallthru
          _
        // Predicated region
        $region53: #{tpu_custom_call.1} parent=11 // pred_check
          %p577 = pneg %p317
        $region54: #{tpu_custom_call.1} parent=11 // pred_check_branch
          %579 = sbr.rel (%p577) target = $region56
        $region55: #{tpu_custom_call.1} parent=11 // pred_region
          _
        $region56: #{tpu_custom_call.1} parent=11 // pred_fallthru
          _
        // Predicated region
        $region57: #{tpu_custom_call.1} parent=11 // pred_check
          %p580 = pneg %p338
        $region58: #{tpu_custom_call.1} parent=11 // pred_check_branch
          %582 = sbr.rel (%p580) target = $region60
        $region59: #{tpu_custom_call.1} parent=11 // pred_region
          _
        $region60: #{tpu_custom_call.1} parent=11 // pred_fallthru
          _
        // Predicated region
        $region61: #{tpu_custom_call.1} parent=11 // pred_check
          %p583 = pneg %p359
        $region62: #{tpu_custom_call.1} parent=11 // pred_check_branch
          %585 = sbr.rel (%p583) target = $region64
        $region63: #{tpu_custom_call.1} parent=11 // pred_region
          _
        $region64: #{tpu_custom_call.1} parent=11 // pred_fallthru
          _
        // Predicated region
        $region65: #{tpu_custom_call.1} parent=11 // pred_check
          %p586 = pneg %p380
        $region66: #{tpu_custom_call.1} parent=11 // pred_check_branch
          %588 = sbr.rel (%p586) target = $region68
        $region67: #{tpu_custom_call.1} parent=11 // pred_region
          _
        $region68: #{tpu_custom_call.1} parent=11 // pred_fallthru
          _
        // Predicated region
        $region69: #{tpu_custom_call.1} parent=11 // pred_check
          %p589 = pneg %p401
        $region70: #{tpu_custom_call.1} parent=11 // pred_check_branch
          %591 = sbr.rel (%p589) target = $region72
        $region71: #{tpu_custom_call.1} parent=11 // pred_region
          _
        $region72: #{tpu_custom_call.1} parent=11 // pred_fallthru
          _
        // Predicated region
        $region73: #{tpu_custom_call.1} parent=11 // pred_check
          %p592 = pneg %p422
        $region74: #{tpu_custom_call.1} parent=11 // pred_check_branch
          %594 = sbr.rel (%p592) target = $region76
        $region75: #{tpu_custom_call.1} parent=11 // pred_region
          _
        $region76: #{tpu_custom_call.1} parent=11 // pred_fallthru
          _
        // Predicated region
        $region77: #{tpu_custom_call.1} parent=11 // pred_check
          %p595 = pneg %p443
        $region78: #{tpu_custom_call.1} parent=11 // pred_check_branch
          %597 = sbr.rel (%p595) target = $region80
        $region79: #{tpu_custom_call.1} parent=11 // pred_region
          _
        $region80: #{tpu_custom_call.1} parent=11 // pred_fallthru
          _
        // Predicated region
        $region81: #{tpu_custom_call.1} parent=11 // pred_check
          %p598 = pneg %p464
        $region82: #{tpu_custom_call.1} parent=11 // pred_check_branch
          %600 = sbr.rel (%p598) target = $region84
        $region83: #{tpu_custom_call.1} parent=11 // pred_region
          _
        $region84: #{tpu_custom_call.1} parent=11 // pred_fallthru
          _
        // Predicated region
        $region85: #{tpu_custom_call.1} parent=11 // pred_check
          %p601 = pneg %p485
        $region86: #{tpu_custom_call.1} parent=11 // pred_check_branch
          %603 = sbr.rel (%p601) target = $region88
        $region87: #{tpu_custom_call.1} parent=11 // pred_region
          _
        $region88: #{tpu_custom_call.1} parent=11 // pred_fallthru
          _
        // Predicated region
        $region89: #{tpu_custom_call.1} parent=11 // pred_check
          %p604 = pneg %p506
        $region90: #{tpu_custom_call.1} parent=11 // pred_check_branch
          %606 = sbr.rel (%p604) target = $region92
        $region91: #{tpu_custom_call.1} parent=11 // pred_region
          _
        $region92: #{tpu_custom_call.1} parent=11 // pred_fallthru
          _
      $region12: #{tpu_custom_call.1} parent=5 // pred_fallthru
        _
      %p607 = scmp.lt.s32.totalorder %s34, 2
      // Predicated region
      $region93: #{tpu_custom_call.1} parent=5 // pred_check
        %p608 = pneg %p607
      $region94: #{tpu_custom_call.1} parent=5 // pred_check_branch
        %610 = sbr.rel (%p608) target = $region96
      $region95: #{tpu_custom_call.1} parent=5 // pred_region
        // Predicated region
        $region97: #{tpu_custom_call.1} parent=95 // pred_check
          %p611 = pneg %p54
        $region98: #{tpu_custom_call.1} parent=95 // pred_check_branch
          %613 = sbr.rel (%p611) target = $region100
        $region99: #{tpu_custom_call.1} parent=95 // pred_region
          %s614 = sand.u32 %s44, 1
          %s615 = scalar_lea.sflag [#allocation3], %s614
          %s616 = sand.u32 %s44, 1
          %s617 = smul.addr %s616, 8
          %s618 = scalar_lea.vmem [#allocation2], %s617
          %s620 = ssub.s32 128, 128
          %621 = vsyncadd %s615, %s620
          %s622 = smul.addr %s34, 128
          %s623 = scalar_lea.hbm %s0, %s622
          %s625 = sshll.u32 %s618, 4
          %s626 = int_to_ptr.vmem [resolvable:$true] %s625
          %628 = dma.hbm_to_vmem [thread:$0]  %s623, 128, %s626, %s615
        $region100: #{tpu_custom_call.1} parent=95 // pred_fallthru
          _
        // Predicated region
        $region101: #{tpu_custom_call.1} parent=95 // pred_check
          %p629 = pneg %p80
        $region102: #{tpu_custom_call.1} parent=95 // pred_check_branch
          %631 = sbr.rel (%p629) target = $region104
        $region103: #{tpu_custom_call.1} parent=95 // pred_region
          %p632 = scmp.lt.s32.totalorder %s34, 1
          %s633 = scalar_select %p632, %s34, 1
          %s634 = smul.addr %s633, 8
          %s635 = scalar_lea.vmem %s1, %s634
        $region104: #{tpu_custom_call.1} parent=95 // pred_fallthru
          _
      $region96: #{tpu_custom_call.1} parent=5 // pred_fallthru
        _
      %p636 = scmp.le.s32.totalorder 1, %s34
      %p637 = scmp.lt.s32.totalorder %s34, 3
      %p638 = pnand %p636, %p637
      %p639 = pneg %p638
      // Predicated region
      $region105: #{tpu_custom_call.1} parent=5 // pred_check
        _
      $region106: #{tpu_custom_call.1} parent=5 // pred_check_branch
        %641 = sbr.rel (%p638) target = $region108
      $region107: #{tpu_custom_call.1} parent=5 // pred_region
        %s642 = ssub.s32 %s34, 1
        %s643 = sand.u32 %s47, 1
        %s644 = scalar_lea.sflag [#allocation3], %s643
        %s645 = sand.u32 %s47, 1
        %s646 = smul.addr %s645, 8
        %s647 = scalar_lea.vmem [#allocation2], %s646
        // Predicated region
        $region109: #{tpu_custom_call.1} parent=107 // pred_check
          %p648 = pneg %p60
        $region110: #{tpu_custom_call.1} parent=107 // pred_check_branch
          %650 = sbr.rel (%p648) target = $region112
        $region111: #{tpu_custom_call.1} parent=107 // pred_region
          %651 = dma.done %s644, 128
        $region112: #{tpu_custom_call.1} parent=107 // pred_fallthru
          _
        %s652 = sand.u32 %s47, 1
        %s653 = scalar_lea.sflag [#allocation3], %s652
        %s654 = sand.u32 %s47, 1
        %s655 = smul.addr %s654, 8
        %s656 = scalar_lea.vmem [#allocation2], %s655
        %p657 = pneg %p60
        %p658 = pneg %p57
        %p659 = scmp.lt.s32.totalorder %s39, 1
        %s660 = scalar_select %p659, %s39, 1
        %s661 = smul.addr %s660, 8
        %s662 = scalar_lea.vmem %s1, %s661
        %p663 = pneg %p86
        %p664 = pneg %p83
        %p665 = pneg %p107
        %p666 = pneg %p104
        %p667 = pneg %p128
        %p668 = pneg %p125
        %p669 = pneg %p149
        %p670 = pneg %p146
        %p671 = pneg %p170
        %p672 = pneg %p167
        %p673 = pneg %p191
        %p674 = pneg %p188
        %p675 = pneg %p212
        %p676 = pneg %p209
        %p677 = pneg %p233
        %p678 = pneg %p230
        %p679 = pneg %p254
        %p680 = pneg %p251
        %p681 = pneg %p275
        %p682 = pneg %p272
        %p683 = pneg %p296
        %p684 = pneg %p293
        %p685 = pneg %p317
        %p686 = pneg %p314
        %p687 = pneg %p338
        %p688 = pneg %p335
        %p689 = pneg %p359
        %p690 = pneg %p356
        %p691 = pneg %p380
        %p692 = pneg %p377
        %p693 = pneg %p401
        %p694 = pneg %p398
        %p695 = pneg %p422
        %p696 = pneg %p419
        %p697 = pneg %p443
        %p698 = pneg %p440
        %p699 = pneg %p464
        %p700 = pneg %p461
        %p701 = pneg %p485
        %p702 = pneg %p482
        %p703 = pneg %p506
        %p704 = pneg %p503
        %p705 = pneg %p532
        %p706 = pneg %p529
        %s707 = sand.u32 %s519, 1
        %s708 = scalar_lea.sflag [#allocation4], %s707
        %s709 = sand.u32 %s519, 1
        %s710 = smul.addr %s709, 8
        %s711 = scalar_lea.vmem [#allocation5], %s710
        %p712 = scmp.lt.s32.totalorder %s39, 1
        %s713 = scalar_select %p712, %s39, 1
        %s714 = smul.addr %s713, 8
        %s715 = scalar_lea.vmem %s1, %s714
        %v717 = vld [vmem:[%s647] sm:$0xff]
        %v718 = vld [vmem:[%s2] sm:$0x1]
        %v719 = vld [vmem:[%s3] sm:$0x1]
        %vm720 = vcmask 261120
        %v721 = vsel %vm720, %v717, 0.0
        %722 = vadd.xlane.f32.xlu0 %v721
        %v723 = vpop.xlane.xlu0 %722
        %v724 = vrcp.pop 32.0
        %v725 = vmul.f32 %v723, %v724
        %v726 = vsub.f32 %v717, %v725
        %v727 = vmul.f32 %v726, %v726
        %v728 = vsel %vm720, %v727, 0.0
        %729 = vadd.xlane.f32.xlu0 %v728
        %v730 = vpop.xlane.xlu0 %729
        %v731 = vmul.f32 %v730, %v724
        %v732 = vadd.f32 %v731, 1e-05
        %v733 = vrsqrt.pop %v732
        %v734 = vmul.f32 %v726, %v733
        %v736 = vlaneseq
        %v737 = vshrl.u32 %v736, 7
        %v738 = vsub.s32 0, %v737
        %v739 = vrot.slane %v718, %v738
        %v741 = vmul.f32 %v734, %v739
        %v743 = vlaneseq
        %v744 = vshrl.u32 %v743, 7
        %v745 = vsub.s32 0, %v744
        %v746 = vrot.slane %v719, %v745
        %v748 = vadd.f32 %v741, %v746
        %v749 = vpack.c.bf16 %v748, %v748
        %v750 = vld [vmem:[%s4] sm:$0xf]
        %v751 = vld [vmem:[%s4 + $0x4] sm:$0xf]
        %v752 = vld [vmem:[%s4 + $0x8] sm:$0xf]
        %v753 = vld [vmem:[%s4 + $0xc] sm:$0xf]
        %v754 = vld [vmem:[%s4 + $0x10] sm:$0xf]
        %v755 = vld [vmem:[%s4 + $0x14] sm:$0xf]
        %v756 = vld [vmem:[%s4 + $0x18] sm:$0xf]
        %v757 = vld [vmem:[%s4 + $0x1c] sm:$0xf]
        %v758 = vld [vmem:[%s4 + $0x20] sm:$0xf]
        %v759 = vld [vmem:[%s4 + $0x24] sm:$0xf]
        %v760 = vld [vmem:[%s4 + $0x28] sm:$0xf]
        %v761 = vld [vmem:[%s4 + $0x2c] sm:$0xf]
        %v762 = vld [vmem:[%s5] sm:$0xff]
        %v763 = vld [vmem:[%s5 + $0x8] sm:$0xff]
        %v764 = vld [vmem:[%s5 + $0x10] sm:$0xff]
        %v765 = vld [vmem:[%s5 + $0x18] sm:$0xff]
        %v766 = vld [vmem:[%s5 + $0x20] sm:$0xff]
        %v767 = vld [vmem:[%s5 + $0x28] sm:$0xff]
        %v768 = vld [vmem:[%s5 + $0x30] sm:$0xff]
        %v769 = vld [vmem:[%s5 + $0x38] sm:$0xff]
        %v770 = vld [vmem:[%s5 + $0x40] sm:$0xff]
        %v771 = vld [vmem:[%s5 + $0x48] sm:$0xff]
        %v772 = vld [vmem:[%s5 + $0x50] sm:$0xff]
        %v773 = vld [vmem:[%s5 + $0x58] sm:$0xff]
        %775 = vset.pattern.permute.xlu0 0
        %776 = vperm.xlu0 %775, %v762
        %v777 = vpop.permute.xlu0 %776
        %780 = vset.pattern.permute.xlu0 0
        %781 = vperm.xlu0 %780, %v763
        %v782 = vpop.permute.xlu0 %781
        %785 = vset.pattern.permute.xlu0 0
        %786 = vperm.xlu0 %785, %v764
        %v787 = vpop.permute.xlu0 %786
        %790 = vset.pattern.permute.xlu0 0
        %791 = vperm.xlu0 %790, %v765
        %v792 = vpop.permute.xlu0 %791
        %795 = vset.pattern.permute.xlu0 0
        %796 = vperm.xlu0 %795, %v766
        %v797 = vpop.permute.xlu0 %796
        %800 = vset.pattern.permute.xlu0 0
        %801 = vperm.xlu0 %800, %v767
        %v802 = vpop.permute.xlu0 %801
        %805 = vset.pattern.permute.xlu0 0
        %806 = vperm.xlu0 %805, %v768
        %v807 = vpop.permute.xlu0 %806
        %810 = vset.pattern.permute.xlu0 0
        %811 = vperm.xlu0 %810, %v769
        %v812 = vpop.permute.xlu0 %811
        %815 = vset.pattern.permute.xlu0 0
        %816 = vperm.xlu0 %815, %v770
        %v817 = vpop.permute.xlu0 %816
        %820 = vset.pattern.permute.xlu0 0
        %821 = vperm.xlu0 %820, %v771
        %v822 = vpop.permute.xlu0 %821
        %825 = vset.pattern.permute.xlu0 0
        %826 = vperm.xlu0 %825, %v772
        %v827 = vpop.permute.xlu0 %826
        %830 = vset.pattern.permute.xlu0 0
        %831 = vperm.xlu0 %830, %v773
        %v832 = vpop.permute.xlu0 %831
        %v846 = vunpack.c.l.b16 %v750
        %v847 = vunpack.c.l.b16 %v751
        %v848 = vunpack.c.l.b16 %v752
        %v849 = vunpack.c.l.b16 %v753
        %v850 = vunpack.c.l.b16 %v754
        %v851 = vunpack.c.l.b16 %v755
        %v852 = vunpack.c.l.b16 %v756
        %v853 = vunpack.c.l.b16 %v757
        %v854 = vunpack.c.l.b16 %v758
        %v855 = vunpack.c.l.b16 %v759
        %v856 = vunpack.c.l.b16 %v760
        %v857 = vunpack.c.l.b16 %v761
        %v858 = vpack.c.b16 %v847, %v846
        %v859 = vpack.c.b16 %v849, %v848
        %v860 = vpack.c.b16 %v851, %v850
        %v861 = vpack.c.b16 %v853, %v852
        %v862 = vpack.c.b16 %v855, %v854
        %v863 = vpack.c.b16 %v857, %v856
        %v865 = vsel %vm720, %v858, 0
        %v868 = vsel %vm720, %v859, 0
        %v871 = vsel %vm720, %v860, 0
        %v874 = vsel %vm720, %v861, 0
        %v877 = vsel %vm720, %v862, 0
        %v880 = vsel %vm720, %v863, 0
        %v883 = vsel %vm720, %v749, 0
        %885 = vmatprep.subr.bf16.mxu0 0
        %886 = vmatpush1.bf16.xpose.msra.mxu0 %v883
        %887 = vmatprep.subr.bf16.mxu0 0
        %888 = vmatpush1.bf16.xpose.msra.mxu0 0
        %889 = vmatprep.subr.bf16.mxu0 0
        %890 = vmatpush1.bf16.xpose.msra.mxu0 0
        %891 = vmatprep.subr.bf16.mxu0 0
        %892 = vmatpush1.bf16.xpose.msra.mxu0 0
        %893 = vmatprep.subr.bf16.mxu0 0
        %894 = vmatpush1.bf16.xpose.msra.mxu0 0
        %895 = vmatprep.subr.bf16.mxu0 0
        %896 = vmatpush1.bf16.xpose.msra.mxu0 0
        %897 = vmatprep.subr.bf16.mxu0 0
        %898 = vmatpush1.bf16.xpose.msra.mxu0 0
        %899 = vmatprep.subr.bf16.mxu0 0
        %900 = vmatpush1.bf16.xpose.msra.mxu0 0
        %901 = vmatprep.subr.bf16.mxu0 0
        %902 = vmatpush1.bf16.xpose.msra.mxu0 0
        %903 = vmatprep.subr.bf16.mxu0 0
        %904 = vmatpush1.bf16.xpose.msra.mxu0 0
        %905 = vmatprep.subr.bf16.mxu0 0
        %906 = vmatpush1.bf16.xpose.msra.mxu0 0
        %907 = vmatprep.subr.bf16.mxu0 0
        %908 = vmatpush1.bf16.xpose.msra.mxu0 0
        %909 = vmatprep.subr.bf16.mxu0 0
        %910 = vmatpush1.bf16.xpose.msra.mxu0 0
        %911 = vmatprep.subr.bf16.mxu0 0
        %912 = vmatpush1.bf16.xpose.msra.mxu0 0
        %913 = vmatprep.subr.bf16.mxu0 0
        %914 = vmatpush1.bf16.xpose.msra.mxu0 0
        %915 = vmatprep.subr.bf16.mxu0 0
        %916 = vmatpush1.bf16.xpose.msra.mxu0 0
        %917 = vmatprep.mubr.bf16.mxu0 0
        %918 = vmatmul.mubr.bf16.gmra.mrb[0].mxu0 %v865
        %v919 = vpop.f32.mrb[0].mxu0
        %v920 = vadd.f32 %v777, %v919
        %v921 = vpop.f32.mrb[0].mxu0
        %v922 = vpop.f32.mrb[0].mxu0
        %v923 = vadd.f32 %v782, %v922
        %v924 = vpop.f32.mrb[0].mxu0
        %925 = vmatprep.mubr.bf16.mxu0 0
        %926 = vmatmul.mubr.bf16.gmra.mrb[0].mxu0 %v868
        %v927 = vpop.f32.mrb[0].mxu0
        %v928 = vadd.f32 %v787, %v927
        %v929 = vpop.f32.mrb[0].mxu0
        %v930 = vpop.f32.mrb[0].mxu0
        %v931 = vadd.f32 %v792, %v930
        %v932 = vpop.f32.mrb[0].mxu0
        %933 = vmatprep.mubr.bf16.mxu0 0
        %934 = vmatmul.mubr.bf16.gmra.mrb[0].mxu0 %v871
        %v935 = vpop.f32.mrb[0].mxu0
        %v936 = vadd.f32 %v797, %v935
        %v937 = vpop.f32.mrb[0].mxu0
        %v938 = vpop.f32.mrb[0].mxu0
        %v939 = vadd.f32 %v802, %v938
        %v940 = vpop.f32.mrb[0].mxu0
        %941 = vmatprep.mubr.bf16.mxu0 0
        %942 = vmatmul.mubr.bf16.gmra.mrb[0].mxu0 %v874
        %v943 = vpop.f32.mrb[0].mxu0
        %v944 = vadd.f32 %v807, %v943
        %v945 = vpop.f32.mrb[0].mxu0
        %v946 = vpop.f32.mrb[0].mxu0
        %v947 = vadd.f32 %v812, %v946
        %v948 = vpop.f32.mrb[0].mxu0
        %949 = vmatprep.mubr.bf16.mxu0 0
        %950 = vmatmul.mubr.bf16.gmra.mrb[0].mxu0 %v877
        %v951 = vpop.f32.mrb[0].mxu0
        %v952 = vadd.f32 %v817, %v951
        %v953 = vpop.f32.mrb[0].mxu0
        %v954 = vpop.f32.mrb[0].mxu0
        %v955 = vadd.f32 %v822, %v954
        %v956 = vpop.f32.mrb[0].mxu0
        %957 = vmatprep.mubr.bf16.mxu0 0
        %958 = vmatmul.mubr.bf16.gmra.mrb[0].mxu0 %v880
        %v959 = vpop.f32.mrb[0].mxu0
        %v960 = vadd.f32 %v827, %v959
        %v961 = vpop.f32.mrb[0].mxu0
        %v962 = vpop.f32.mrb[0].mxu0
        %v963 = vadd.f32 %v832, %v962
        %v964 = vpop.f32.mrb[0].mxu0
        %965 = vdwg.mxu0
        %v966 = vld [vmem:[%s6] sm:$0xf]
        %v967 = vld [vmem:[%s6 + $0x4] sm:$0xf]
        %v968 = vld [vmem:[%s6 + $0x8] sm:$0xf]
        %v969 = vld [vmem:[%s6 + $0xc] sm:$0xf]
        %v970 = vmul.f32 %v920, 0.35355338
        %v971 = vmul.f32 %v923, 0.35355338
        %v972 = vmul.f32 %v928, 0.35355338
        %v973 = vmul.f32 %v931, 0.35355338
        %974 = vxpose.xlu0.b32.start [1/16] %v970, 128
        %975 = vxpose.xlu0.b32.cont [2/16] 0.0, 128
        %976 = vxpose.xlu0.b32.cont [3/16] 0.0, 128
        %977 = vxpose.xlu0.b32.cont [4/16] 0.0, 128
        %978 = vxpose.xlu0.b32.cont [5/16] 0.0, 128
        %979 = vxpose.xlu0.b32.cont [6/16] 0.0, 128
        %980 = vxpose.xlu0.b32.cont [7/16] 0.0, 128
        %981 = vxpose.xlu0.b32.cont [8/16] 0.0, 128
        %982 = vxpose.xlu0.b32.cont [9/16] 0.0, 128
        %983 = vxpose.xlu0.b32.cont [10/16] 0.0, 128
        %984 = vxpose.xlu0.b32.cont [11/16] 0.0, 128
        %985 = vxpose.xlu0.b32.cont [12/16] 0.0, 128
        %986 = vxpose.xlu0.b32.cont [13/16] 0.0, 128
        %987 = vxpose.xlu0.b32.cont [14/16] 0.0, 128
        %988 = vxpose.xlu0.b32.cont [15/16] 0.0, 128
        %989 = vxpose.xlu0.b32.end [16/16] 0.0, 128
        %v990 = vpop.trf.xlu0
        %v991 = vpop.trf.xlu0
        %v992 = vpop.trf.xlu0
        %v993 = vpop.trf.xlu0
        %v994 = vpop.trf.xlu0
        %v995 = vpop.trf.xlu0
        %v996 = vpop.trf.xlu0
        %v997 = vpop.trf.xlu0
        %v998 = vpop.trf.xlu0
        %v999 = vpop.trf.xlu0
        %v1000 = vpop.trf.xlu0
        %v1001 = vpop.trf.xlu0
        %v1002 = vpop.trf.xlu0
        %v1003 = vpop.trf.xlu0
        %v1004 = vpop.trf.xlu0
        %v1005 = vpop.trf.xlu0
        %1006 = vxpose.xlu0.b32.start [1/16] %v971, 128
        %1007 = vxpose.xlu0.b32.cont [2/16] 0.0, 128
        %1008 = vxpose.xlu0.b32.cont [3/16] 0.0, 128
        %1009 = vxpose.xlu0.b32.cont [4/16] 0.0, 128
        %1010 = vxpose.xlu0.b32.cont [5/16] 0.0, 128
        %1011 = vxpose.xlu0.b32.cont [6/16] 0.0, 128
        %1012 = vxpose.xlu0.b32.cont [7/16] 0.0, 128
        %1013 = vxpose.xlu0.b32.cont [8/16] 0.0, 128
        %1014 = vxpose.xlu0.b32.cont [9/16] 0.0, 128
        %1015 = vxpose.xlu0.b32.cont [10/16] 0.0, 128
        %1016 = vxpose.xlu0.b32.cont [11/16] 0.0, 128
        %1017 = vxpose.xlu0.b32.cont [12/16] 0.0, 128
        %1018 = vxpose.xlu0.b32.cont [13/16] 0.0, 128
        %1019 = vxpose.xlu0.b32.cont [14/16] 0.0, 128
        %1020 = vxpose.xlu0.b32.cont [15/16] 0.0, 128
        %1021 = vxpose.xlu0.b32.end [16/16] 0.0, 128
        %v1022 = vpop.trf.xlu0
        %v1023 = vpop.trf.xlu0
        %v1024 = vpop.trf.xlu0
        %v1025 = vpop.trf.xlu0
        %v1026 = vpop.trf.xlu0
        %v1027 = vpop.trf.xlu0
        %v1028 = vpop.trf.xlu0
        %v1029 = vpop.trf.xlu0
        %v1030 = vpop.trf.xlu0
        %v1031 = vpop.trf.xlu0
        %v1032 = vpop.trf.xlu0
        %v1033 = vpop.trf.xlu0
        %v1034 = vpop.trf.xlu0
        %v1035 = vpop.trf.xlu0
        %v1036 = vpop.trf.xlu0
        %v1037 = vpop.trf.xlu0
        %1038 = vxpose.xlu0.b32.start [1/16] %v972, 128
        %1039 = vxpose.xlu0.b32.cont [2/16] 0.0, 128
        %1040 = vxpose.xlu0.b32.cont [3/16] 0.0, 128
        %1041 = vxpose.xlu0.b32.cont [4/16] 0.0, 128
        %1042 = vxpose.xlu0.b32.cont [5/16] 0.0, 128
        %1043 = vxpose.xlu0.b32.cont [6/16] 0.0, 128
        %1044 = vxpose.xlu0.b32.cont [7/16] 0.0, 128
        %1045 = vxpose.xlu0.b32.cont [8/16] 0.0, 128
        %1046 = vxpose.xlu0.b32.cont [9/16] 0.0, 128
        %1047 = vxpose.xlu0.b32.cont [10/16] 0.0, 128
        %1048 = vxpose.xlu0.b32.cont [11/16] 0.0, 128
        %1049 = vxpose.xlu0.b32.cont [12/16] 0.0, 128
        %1050 = vxpose.xlu0.b32.cont [13/16] 0.0, 128
        %1051 = vxpose.xlu0.b32.cont [14/16] 0.0, 128
        %1052 = vxpose.xlu0.b32.cont [15/16] 0.0, 128
        %1053 = vxpose.xlu0.b32.end [16/16] 0.0, 128
        %v1054 = vpop.trf.xlu0
        %v1055 = vpop.trf.xlu0
        %v1056 = vpop.trf.xlu0
        %v1057 = vpop.trf.xlu0
        %v1058 = vpop.trf.xlu0
        %v1059 = vpop.trf.xlu0
        %v1060 = vpop.trf.xlu0
        %v1061 = vpop.trf.xlu0
        %v1062 = vpop.trf.xlu0
        %v1063 = vpop.trf.xlu0
        %v1064 = vpop.trf.xlu0
        %v1065 = vpop.trf.xlu0
        %v1066 = vpop.trf.xlu0
        %v1067 = vpop.trf.xlu0
        %v1068 = vpop.trf.xlu0
        %v1069 = vpop.trf.xlu0
        %1070 = vxpose.xlu0.b32.start [1/16] %v973, 128
        %1071 = vxpose.xlu0.b32.cont [2/16] 0.0, 128
        %1072 = vxpose.xlu0.b32.cont [3/16] 0.0, 128
        %1073 = vxpose.xlu0.b32.cont [4/16] 0.0, 128
        %1074 = vxpose.xlu0.b32.cont [5/16] 0.0, 128
        %1075 = vxpose.xlu0.b32.cont [6/16] 0.0, 128
        %1076 = vxpose.xlu0.b32.cont [7/16] 0.0, 128
        %1077 = vxpose.xlu0.b32.cont [8/16] 0.0, 128
        %1078 = vxpose.xlu0.b32.cont [9/16] 0.0, 128
        %1079 = vxpose.xlu0.b32.cont [10/16] 0.0, 128
        %1080 = vxpose.xlu0.b32.cont [11/16] 0.0, 128
        %1081 = vxpose.xlu0.b32.cont [12/16] 0.0, 128
        %1082 = vxpose.xlu0.b32.cont [13/16] 0.0, 128
        %1083 = vxpose.xlu0.b32.cont [14/16] 0.0, 128
        %1084 = vxpose.xlu0.b32.cont [15/16] 0.0, 128
        %1085 = vxpose.xlu0.b32.end [16/16] 0.0, 128
        %v1086 = vpop.trf.xlu0
        %v1087 = vpop.trf.xlu0
        %v1088 = vpop.trf.xlu0
        %v1089 = vpop.trf.xlu0
        %v1090 = vpop.trf.xlu0
        %v1091 = vpop.trf.xlu0
        %v1092 = vpop.trf.xlu0
        %v1093 = vpop.trf.xlu0
        %v1094 = vpop.trf.xlu0
        %v1095 = vpop.trf.xlu0
        %v1096 = vpop.trf.xlu0
        %v1097 = vpop.trf.xlu0
        %v1098 = vpop.trf.xlu0
        %v1099 = vpop.trf.xlu0
        %v1100 = vpop.trf.xlu0
        %v1101 = vpop.trf.xlu0
        %v1102 = vpack.c.bf16 %v990, %v990
        %v1103 = vpack.c.bf16 %v1022, %v1022
        %v1104 = vpack.c.bf16 %v1054, %v1054
        %v1105 = vpack.c.bf16 %v1086, %v1086
        %v1106 = vpack.c.bf16 %v936, %v936
        %v1107 = vpack.c.bf16 %v939, %v939
        %v1108 = vpack.c.bf16 %v944, %v944
        %v1109 = vpack.c.bf16 %v947, %v947
        %v1110 = vpack.c.bf16 %v952, %v952
        %v1111 = vpack.c.bf16 %v955, %v955
        %v1112 = vpack.c.bf16 %v960, %v960
        %v1113 = vpack.c.bf16 %v963, %v963
        %v1114 = vlaneseq
        %v1115 = vshrl.u32 %v1114, 7
        %v1116 = vlaneseq
        %v1117 = vand.u32 %v1116, 127
        %vm1118 = vcmp.ge.s32.totalorder %v1115, %v1117
        %v1119 = vsel %vm1118, 0.0, -1e+09
        %vm1120 = vcmask 64512
        %v1122 = vsel %vm1120, %v1102, 0
        %vm1124 = vcmask 1043456
        %v1126 = vsel %vm1124, %v1106, 0
        %1128 = vmatprep.subr.bf16.mxu0 0
        %1129 = vmatpush1.bf16.msra.mxu0 %v1126
        %1130 = vmatprep.subr.bf16.mxu0 0
        %1131 = vmatpush1.bf16.msra.mxu0 0
        %1132 = vmatprep.subr.bf16.mxu0 0
        %1133 = vmatpush1.bf16.msra.mxu0 0
        %1134 = vmatprep.subr.bf16.mxu0 0
        %1135 = vmatpush1.bf16.msra.mxu0 0
        %1136 = vmatprep.subr.bf16.mxu0 0
        %1137 = vmatpush1.bf16.msra.mxu0 0
        %1138 = vmatprep.subr.bf16.mxu0 0
        %1139 = vmatpush1.bf16.msra.mxu0 0
        %1140 = vmatprep.subr.bf16.mxu0 0
        %1141 = vmatpush1.bf16.msra.mxu0 0
        %1142 = vmatprep.subr.bf16.mxu0 0
        %1143 = vmatpush1.bf16.msra.mxu0 0
        %1144 = vmatprep.subr.bf16.mxu0 0
        %1145 = vmatpush1.bf16.msra.mxu0 0
        %1146 = vmatprep.subr.bf16.mxu0 0
        %1147 = vmatpush1.bf16.msra.mxu0 0
        %1148 = vmatprep.subr.bf16.mxu0 0
        %1149 = vmatpush1.bf16.msra.mxu0 0
        %1150 = vmatprep.subr.bf16.mxu0 0
        %1151 = vmatpush1.bf16.msra.mxu0 0
        %1152 = vmatprep.subr.bf16.mxu0 0
        %1153 = vmatpush1.bf16.msra.mxu0 0
        %1154 = vmatprep.subr.bf16.mxu0 0
        %1155 = vmatpush1.bf16.msra.mxu0 0
        %1156 = vmatprep.subr.bf16.mxu0 0
        %1157 = vmatpush1.bf16.msra.mxu0 0
        %1158 = vmatprep.subr.bf16.mxu0 0
        %1159 = vmatpush1.bf16.msra.mxu0 0
        %1160 = vmatprep.mubr.bf16.mxu0 0
        %1161 = vmatmul.mubr.bf16.gmra.mrb[0].mxu0 %v1122
        %v1162 = vpop.f32.mrb[0].mxu0
        %v1163 = vadd.f32 %v1119, %v1162
        %v1164 = vpop.f32.mrb[0].mxu0
        %v1165 = vpop.f32.mrb[0].mxu0
        %v1166 = vpop.f32.mrb[0].mxu0
        %1167 = vdwg.mxu0
        %v1169 = vsel %vm1120, %v1103, 0
        %v1172 = vsel %vm1124, %v1107, 0
        %1174 = vmatprep.subr.bf16.mxu0 0
        %1175 = vmatpush1.bf16.msra.mxu0 %v1172
        %1176 = vmatprep.subr.bf16.mxu0 0
        %1177 = vmatpush1.bf16.msra.mxu0 0
        %1178 = vmatprep.subr.bf16.mxu0 0
        %1179 = vmatpush1.bf16.msra.mxu0 0
        %1180 = vmatprep.subr.bf16.mxu0 0
        %1181 = vmatpush1.bf16.msra.mxu0 0
        %1182 = vmatprep.subr.bf16.mxu0 0
        %1183 = vmatpush1.bf16.msra.mxu0 0
        %1184 = vmatprep.subr.bf16.mxu0 0
        %1185 = vmatpush1.bf16.msra.mxu0 0
        %1186 = vmatprep.subr.bf16.mxu0 0
        %1187 = vmatpush1.bf16.msra.mxu0 0
        %1188 = vmatprep.subr.bf16.mxu0 0
        %1189 = vmatpush1.bf16.msra.mxu0 0
        %1190 = vmatprep.subr.bf16.mxu0 0
        %1191 = vmatpush1.bf16.msra.mxu0 0
        %1192 = vmatprep.subr.bf16.mxu0 0
        %1193 = vmatpush1.bf16.msra.mxu0 0
        %1194 = vmatprep.subr.bf16.mxu0 0
        %1195 = vmatpush1.bf16.msra.mxu0 0
        %1196 = vmatprep.subr.bf16.mxu0 0
        %1197 = vmatpush1.bf16.msra.mxu0 0
        %1198 = vmatprep.subr.bf16.mxu0 0
        %1199 = vmatpush1.bf16.msra.mxu0 0
        %1200 = vmatprep.subr.bf16.mxu0 0
        %1201 = vmatpush1.bf16.msra.mxu0 0
        %1202 = vmatprep.subr.bf16.mxu0 0
        %1203 = vmatpush1.bf16.msra.mxu0 0
        %1204 = vmatprep.subr.bf16.mxu0 0
        %1205 = vmatpush1.bf16.msra.mxu0 0
        %1206 = vmatprep.mubr.bf16.mxu0 0
        %1207 = vmatmul.mubr.bf16.gmra.mrb[0].mxu0 %v1169
        %v1208 = vpop.f32.mrb[0].mxu0
        %v1209 = vadd.f32 %v1119, %v1208
        %v1210 = vpop.f32.mrb[0].mxu0
        %v1211 = vpop.f32.mrb[0].mxu0
        %v1212 = vpop.f32.mrb[0].mxu0
        %1213 = vdwg.mxu0
        %v1215 = vsel %vm1120, %v1104, 0
        %v1218 = vsel %vm1124, %v1108, 0
        %1220 = vmatprep.subr.bf16.mxu0 0
        %1221 = vmatpush1.bf16.msra.mxu0 %v1218
        %1222 = vmatprep.subr.bf16.mxu0 0
        %1223 = vmatpush1.bf16.msra.mxu0 0
        %1224 = vmatprep.subr.bf16.mxu0 0
        %1225 = vmatpush1.bf16.msra.mxu0 0
        %1226 = vmatprep.subr.bf16.mxu0 0
        %1227 = vmatpush1.bf16.msra.mxu0 0
        %1228 = vmatprep.subr.bf16.mxu0 0
        %1229 = vmatpush1.bf16.msra.mxu0 0
        %1230 = vmatprep.subr.bf16.mxu0 0
        %1231 = vmatpush1.bf16.msra.mxu0 0
        %1232 = vmatprep.subr.bf16.mxu0 0
        %1233 = vmatpush1.bf16.msra.mxu0 0
        %1234 = vmatprep.subr.bf16.mxu0 0
        %1235 = vmatpush1.bf16.msra.mxu0 0
        %1236 = vmatprep.subr.bf16.mxu0 0
        %1237 = vmatpush1.bf16.msra.mxu0 0
        %1238 = vmatprep.subr.bf16.mxu0 0
        %1239 = vmatpush1.bf16.msra.mxu0 0
        %1240 = vmatprep.subr.bf16.mxu0 0
        %1241 = vmatpush1.bf16.msra.mxu0 0
        %1242 = vmatprep.subr.bf16.mxu0 0
        %1243 = vmatpush1.bf16.msra.mxu0 0
        %1244 = vmatprep.subr.bf16.mxu0 0
        %1245 = vmatpush1.bf16.msra.mxu0 0
        %1246 = vmatprep.subr.bf16.mxu0 0
        %1247 = vmatpush1.bf16.msra.mxu0 0
        %1248 = vmatprep.subr.bf16.mxu0 0
        %1249 = vmatpush1.bf16.msra.mxu0 0
        %1250 = vmatprep.subr.bf16.mxu0 0
        %1251 = vmatpush1.bf16.msra.mxu0 0
        %1252 = vmatprep.mubr.bf16.mxu0 0
        %1253 = vmatmul.mubr.bf16.gmra.mrb[0].mxu0 %v1215
        %v1254 = vpop.f32.mrb[0].mxu0
        %v1255 = vadd.f32 %v1119, %v1254
        %v1256 = vpop.f32.mrb[0].mxu0
        %v1257 = vpop.f32.mrb[0].mxu0
        %v1258 = vpop.f32.mrb[0].mxu0
        %1259 = vdwg.mxu0
        %v1261 = vsel %vm1120, %v1105, 0
        %v1264 = vsel %vm1124, %v1109, 0
        %1266 = vmatprep.subr.bf16.mxu0 0
        %1267 = vmatpush1.bf16.msra.mxu0 %v1264
        %1268 = vmatprep.subr.bf16.mxu0 0
        %1269 = vmatpush1.bf16.msra.mxu0 0
        %1270 = vmatprep.subr.bf16.mxu0 0
        %1271 = vmatpush1.bf16.msra.mxu0 0
        %1272 = vmatprep.subr.bf16.mxu0 0
        %1273 = vmatpush1.bf16.msra.mxu0 0
        %1274 = vmatprep.subr.bf16.mxu0 0
        %1275 = vmatpush1.bf16.msra.mxu0 0
        %1276 = vmatprep.subr.bf16.mxu0 0
        %1277 = vmatpush1.bf16.msra.mxu0 0
        %1278 = vmatprep.subr.bf16.mxu0 0
        %1279 = vmatpush1.bf16.msra.mxu0 0
        %1280 = vmatprep.subr.bf16.mxu0 0
        %1281 = vmatpush1.bf16.msra.mxu0 0
        %1282 = vmatprep.subr.bf16.mxu0 0
        %1283 = vmatpush1.bf16.msra.mxu0 0
        %1284 = vmatprep.subr.bf16.mxu0 0
        %1285 = vmatpush1.bf16.msra.mxu0 0
        %1286 = vmatprep.subr.bf16.mxu0 0
        %1287 = vmatpush1.bf16.msra.mxu0 0
        %1288 = vmatprep.subr.bf16.mxu0 0
        %1289 = vmatpush1.bf16.msra.mxu0 0
        %1290 = vmatprep.subr.bf16.mxu0 0
        %1291 = vmatpush1.bf16.msra.mxu0 0
        %1292 = vmatprep.subr.bf16.mxu0 0
        %1293 = vmatpush1.bf16.msra.mxu0 0
        %1294 = vmatprep.subr.bf16.mxu0 0
        %1295 = vmatpush1.bf16.msra.mxu0 0
        %1296 = vmatprep.subr.bf16.mxu0 0
        %1297 = vmatpush1.bf16.msra.mxu0 0
        %1298 = vmatprep.mubr.bf16.mxu0 0
        %1299 = vmatmul.mubr.bf16.gmra.mrb[0].mxu0 %v1261
        %v1300 = vpop.f32.mrb[0].mxu0
        %v1301 = vadd.f32 %v1119, %v1300
        %v1302 = vpop.f32.mrb[0].mxu0
        %v1303 = vpop.f32.mrb[0].mxu0
        %v1304 = vpop.f32.mrb[0].mxu0
        %1305 = vdwg.mxu0
        %v1306 = vsel %vm1120, %v1163, -inf
        %1307 = vmax.xlane.f32.xlu0 %v1306
        %v1308 = vpop.xlane.xlu0 %1307
        %v1309 = vsel %vm1120, %v1209, -inf
        %1310 = vmax.xlane.f32.xlu0 %v1309
        %v1311 = vpop.xlane.xlu0 %1310
        %v1312 = vsel %vm1120, %v1255, -inf
        %1313 = vmax.xlane.f32.xlu0 %v1312
        %v1314 = vpop.xlane.xlu0 %1313
        %v1315 = vsel %vm1120, %v1301, -inf
        %1316 = vmax.xlane.f32.xlu0 %v1315
        %v1317 = vpop.xlane.xlu0 %1316
        %v1318 = vsub.f32 %v1163, %v1308
        %v1319 = vsub.f32 %v1209, %v1311
        %v1320 = vsub.f32 %v1255, %v1314
        %v1321 = vsub.f32 %v1301, %v1317
        %v1322 = vmul.f32 %v1318, 1.442695
        %v1323 = vpow.pop %v1322
        %v1324 = vmul.f32 %v1319, 1.442695
        %v1325 = vpow.pop %v1324
        %v1326 = vmul.f32 %v1320, 1.442695
        %v1327 = vpow.pop %v1326
        %v1328 = vmul.f32 %v1321, 1.442695
        %v1329 = vpow.pop %v1328
        %v1330 = vsel %vm1120, %v1323, 0.0
        %1331 = vadd.xlane.f32.xlu0 %v1330
        %v1332 = vpop.xlane.xlu0 %1331
        %v1333 = vsel %vm1120, %v1325, 0.0
        %1334 = vadd.xlane.f32.xlu0 %v1333
        %v1335 = vpop.xlane.xlu0 %1334
        %v1336 = vsel %vm1120, %v1327, 0.0
        %1337 = vadd.xlane.f32.xlu0 %v1336
        %v1338 = vpop.xlane.xlu0 %1337
        %v1339 = vsel %vm1120, %v1329, 0.0
        %1340 = vadd.xlane.f32.xlu0 %v1339
        %v1341 = vpop.xlane.xlu0 %1340
        %v1342 = vrcp.pop %v1332
        %v1343 = vrcp.pop %v1335
        %v1344 = vrcp.pop %v1338
        %v1345 = vrcp.pop %v1341
        %v1346 = vmul.f32 %v1323, %v1342
        %v1347 = vmul.f32 %v1325, %v1343
        %v1348 = vmul.f32 %v1327, %v1344
        %v1349 = vmul.f32 %v1329, %v1345
        %v1350 = vpack.c.bf16 %v1346, %v1346
        %v1351 = vpack.c.bf16 %v1347, %v1347
        %v1352 = vpack.c.bf16 %v1348, %v1348
        %v1353 = vpack.c.bf16 %v1349, %v1349
        %v1355 = vsel %vm1120, %v1350, 0
        %v1358 = vsel %vm1120, %v1110, 0
        %1360 = vmatprep.subr.bf16.mxu0 0
        %1361 = vmatpush1.bf16.xpose.msra.mxu0 %v1358
        %1362 = vmatprep.subr.bf16.mxu0 0
        %1363 = vmatpush1.bf16.xpose.msra.mxu0 0
        %1364 = vmatprep.subr.bf16.mxu0 0
        %1365 = vmatpush1.bf16.xpose.msra.mxu0 0
        %1366 = vmatprep.subr.bf16.mxu0 0
        %1367 = vmatpush1.bf16.xpose.msra.mxu0 0
        %1368 = vmatprep.subr.bf16.mxu0 0
        %1369 = vmatpush1.bf16.xpose.msra.mxu0 0
        %1370 = vmatprep.subr.bf16.mxu0 0
        %1371 = vmatpush1.bf16.xpose.msra.mxu0 0
        %1372 = vmatprep.subr.bf16.mxu0 0
        %1373 = vmatpush1.bf16.xpose.msra.mxu0 0
        %1374 = vmatprep.subr.bf16.mxu0 0
        %1375 = vmatpush1.bf16.xpose.msra.mxu0 0
        %1376 = vmatprep.subr.bf16.mxu0 0
        %1377 = vmatpush1.bf16.xpose.msra.mxu0 0
        %1378 = vmatprep.subr.bf16.mxu0 0
        %1379 = vmatpush1.bf16.xpose.msra.mxu0 0
        %1380 = vmatprep.subr.bf16.mxu0 0
        %1381 = vmatpush1.bf16.xpose.msra.mxu0 0
        %1382 = vmatprep.subr.bf16.mxu0 0
        %1383 = vmatpush1.bf16.xpose.msra.mxu0 0
        %1384 = vmatprep.subr.bf16.mxu0 0
        %1385 = vmatpush1.bf16.xpose.msra.mxu0 0
        %1386 = vmatprep.subr.bf16.mxu0 0
        %1387 = vmatpush1.bf16.xpose.msra.mxu0 0
        %1388 = vmatprep.subr.bf16.mxu0 0
        %1389 = vmatpush1.bf16.xpose.msra.mxu0 0
        %1390 = vmatprep.subr.bf16.mxu0 0
        %1391 = vmatpush1.bf16.xpose.msra.mxu0 0
        %1392 = vmatprep.mubr.bf16.mxu0 0
        %1393 = vmatmul.mubr.bf16.gmra.mrb[0].mxu0 %v1355
        %v1394 = vpop.f32.mrb[0].mxu0
        %v1395 = vadd.f32 0.0, %v1394
        %v1396 = vpop.f32.mrb[0].mxu0
        %v1397 = vpop.f32.mrb[0].mxu0
        %v1398 = vpop.f32.mrb[0].mxu0
        %1399 = vdwg.mxu0
        %v1401 = vsel %vm1120, %v1351, 0
        %v1404 = vsel %vm1120, %v1111, 0
        %1406 = vmatprep.subr.bf16.mxu0 0
        %1407 = vmatpush1.bf16.xpose.msra.mxu0 %v1404
        %1408 = vmatprep.subr.bf16.mxu0 0
        %1409 = vmatpush1.bf16.xpose.msra.mxu0 0
        %1410 = vmatprep.subr.bf16.mxu0 0
        %1411 = vmatpush1.bf16.xpose.msra.mxu0 0
        %1412 = vmatprep.subr.bf16.mxu0 0
        %1413 = vmatpush1.bf16.xpose.msra.mxu0 0
        %1414 = vmatprep.subr.bf16.mxu0 0
        %1415 = vmatpush1.bf16.xpose.msra.mxu0 0
        %1416 = vmatprep.subr.bf16.mxu0 0
        %1417 = vmatpush1.bf16.xpose.msra.mxu0 0
        %1418 = vmatprep.subr.bf16.mxu0 0
        %1419 = vmatpush1.bf16.xpose.msra.mxu0 0
        %1420 = vmatprep.subr.bf16.mxu0 0
        %1421 = vmatpush1.bf16.xpose.msra.mxu0 0
        %1422 = vmatprep.subr.bf16.mxu0 0
        %1423 = vmatpush1.bf16.xpose.msra.mxu0 0
        %1424 = vmatprep.subr.bf16.mxu0 0
        %1425 = vmatpush1.bf16.xpose.msra.mxu0 0
        %1426 = vmatprep.subr.bf16.mxu0 0
        %1427 = vmatpush1.bf16.xpose.msra.mxu0 0
        %1428 = vmatprep.subr.bf16.mxu0 0
        %1429 = vmatpush1.bf16.xpose.msra.mxu0 0
        %1430 = vmatprep.subr.bf16.mxu0 0
        %1431 = vmatpush1.bf16.xpose.msra.mxu0 0
        %1432 = vmatprep.subr.bf16.mxu0 0
        %1433 = vmatpush1.bf16.xpose.msra.mxu0 0
        %1434 = vmatprep.subr.bf16.mxu0 0
        %1435 = vmatpush1.bf16.xpose.msra.mxu0 0
        %1436 = vmatprep.subr.bf16.mxu0 0
        %1437 = vmatpush1.bf16.xpose.msra.mxu0 0
        %1438 = vmatprep.mubr.bf16.mxu0 0
        %1439 = vmatmul.mubr.bf16.gmra.mrb[0].mxu0 %v1401
        %v1440 = vpop.f32.mrb[0].mxu0
        %v1441 = vadd.f32 0.0, %v1440
        %v1442 = vpop.f32.mrb[0].mxu0
        %v1443 = vpop.f32.mrb[0].mxu0
        %v1444 = vpop.f32.mrb[0].mxu0
        %1445 = vdwg.mxu0
        %v1447 = vsel %vm1120, %v1352, 0
        %v1450 = vsel %vm1120, %v1112, 0
        %1452 = vmatprep.subr.bf16.mxu0 0
        %1453 = vmatpush1.bf16.xpose.msra.mxu0 %v1450
        %1454 = vmatprep.subr.bf16.mxu0 0
        %1455 = vmatpush1.bf16.xpose.msra.mxu0 0
        %1456 = vmatprep.subr.bf16.mxu0 0
        %1457 = vmatpush1.bf16.xpose.msra.mxu0 0
        %1458 = vmatprep.subr.bf16.mxu0 0
        %1459 = vmatpush1.bf16.xpose.msra.mxu0 0
        %1460 = vmatprep.subr.bf16.mxu0 0
        %1461 = vmatpush1.bf16.xpose.msra.mxu0 0
        %1462 = vmatprep.subr.bf16.mxu0 0
        %1463 = vmatpush1.bf16.xpose.msra.mxu0 0
        %1464 = vmatprep.subr.bf16.mxu0 0
        %1465 = vmatpush1.bf16.xpose.msra.mxu0 0
        %1466 = vmatprep.subr.bf16.mxu0 0
        %1467 = vmatpush1.bf16.xpose.msra.mxu0 0
        %1468 = vmatprep.subr.bf16.mxu0 0
        %1469 = vmatpush1.bf16.xpose.msra.mxu0 0
        %1470 = vmatprep.subr.bf16.mxu0 0
        %1471 = vmatpush1.bf16.xpose.msra.mxu0 0
        %1472 = vmatprep.subr.bf16.mxu0 0
        %1473 = vmatpush1.bf16.xpose.msra.mxu0 0
        %1474 = vmatprep.subr.bf16.mxu0 0
        %1475 = vmatpush1.bf16.xpose.msra.mxu0 0
        %1476 = vmatprep.subr.bf16.mxu0 0
        %1477 = vmatpush1.bf16.xpose.msra.mxu0 0
        %1478 = vmatprep.subr.bf16.mxu0 0
        %1479 = vmatpush1.bf16.xpose.msra.mxu0 0
        %1480 = vmatprep.subr.bf16.mxu0 0
        %1481 = vmatpush1.bf16.xpose.msra.mxu0 0
        %1482 = vmatprep.subr.bf16.mxu0 0
        %1483 = vmatpush1.bf16.xpose.msra.mxu0 0
        %1484 = vmatprep.mubr.bf16.mxu0 0
        %1485 = vmatmul.mubr.bf16.gmra.mrb[0].mxu0 %v1447
        %v1486 = vpop.f32.mrb[0].mxu0
        %v1487 = vadd.f32 0.0, %v1486
        %v1488 = vpop.f32.mrb[0].mxu0
        %v1489 = vpop.f32.mrb[0].mxu0
        %v1490 = vpop.f32.mrb[0].mxu0
        %1491 = vdwg.mxu0
        %v1493 = vsel %vm1120, %v1353, 0
        %v1496 = vsel %vm1120, %v1113, 0
        %1498 = vmatprep.subr.bf16.mxu0 0
        %1499 = vmatpush1.bf16.xpose.msra.mxu0 %v1496
        %1500 = vmatprep.subr.bf16.mxu0 0
        %1501 = vmatpush1.bf16.xpose.msra.mxu0 0
        %1502 = vmatprep.subr.bf16.mxu0 0
        %1503 = vmatpush1.bf16.xpose.msra.mxu0 0
        %1504 = vmatprep.subr.bf16.mxu0 0
        %1505 = vmatpush1.bf16.xpose.msra.mxu0 0
        %1506 = vmatprep.subr.bf16.mxu0 0
        %1507 = vmatpush1.bf16.xpose.msra.mxu0 0
        %1508 = vmatprep.subr.bf16.mxu0 0
        %1509 = vmatpush1.bf16.xpose.msra.mxu0 0
        %1510 = vmatprep.subr.bf16.mxu0 0
        %1511 = vmatpush1.bf16.xpose.msra.mxu0 0
        %1512 = vmatprep.subr.bf16.mxu0 0
        %1513 = vmatpush1.bf16.xpose.msra.mxu0 0
        %1514 = vmatprep.subr.bf16.mxu0 0
        %1515 = vmatpush1.bf16.xpose.msra.mxu0 0
        %1516 = vmatprep.subr.bf16.mxu0 0
        %1517 = vmatpush1.bf16.xpose.msra.mxu0 0
        %1518 = vmatprep.subr.bf16.mxu0 0
        %1519 = vmatpush1.bf16.xpose.msra.mxu0 0
        %1520 = vmatprep.subr.bf16.mxu0 0
        %1521 = vmatpush1.bf16.xpose.msra.mxu0 0
        %1522 = vmatprep.subr.bf16.mxu0 0
        %1523 = vmatpush1.bf16.xpose.msra.mxu0 0
        %1524 = vmatprep.subr.bf16.mxu0 0
        %1525 = vmatpush1.bf16.xpose.msra.mxu0 0
        %1526 = vmatprep.subr.bf16.mxu0 0
        %1527 = vmatpush1.bf16.xpose.msra.mxu0 0
        %1528 = vmatprep.subr.bf16.mxu0 0
        %1529 = vmatpush1.bf16.xpose.msra.mxu0 0
        %1530 = vmatprep.mubr.bf16.mxu0 0
        %1531 = vmatmul.mubr.bf16.gmra.mrb[0].mxu0 %v1493
        %v1532 = vpop.f32.mrb[0].mxu0
        %v1533 = vadd.f32 0.0, %v1532
        %v1534 = vpop.f32.mrb[0].mxu0
        %v1535 = vpop.f32.mrb[0].mxu0
        %v1536 = vpop.f32.mrb[0].mxu0
        %1537 = vdwg.mxu0
        %v1538 = vpack.c.bf16 %v1395, %v1395
        %v1539 = vpack.c.bf16 %v1441, %v1441
        %v1540 = vpack.c.bf16 %v1487, %v1487
        %v1541 = vpack.c.bf16 %v1533, %v1533
        %v1543 = vsel %vm1120, %v1538, 0
        %v1546 = vsel %vm1124, %v966, 0
        %1548 = vmatprep.subr.bf16.mxu0 0
        %1549 = vmatpush1.bf16.msra.mxu0 %v1546
        %1550 = vmatprep.subr.bf16.mxu0 0
        %1551 = vmatpush1.bf16.msra.mxu0 0
        %1552 = vmatprep.subr.bf16.mxu0 0
        %1553 = vmatpush1.bf16.msra.mxu0 0
        %1554 = vmatprep.subr.bf16.mxu0 0
        %1555 = vmatpush1.bf16.msra.mxu0 0
        %1556 = vmatprep.subr.bf16.mxu0 0
        %1557 = vmatpush1.bf16.msra.mxu0 0
        %1558 = vmatprep.subr.bf16.mxu0 0
        %1559 = vmatpush1.bf16.msra.mxu0 0
        %1560 = vmatprep.subr.bf16.mxu0 0
        %1561 = vmatpush1.bf16.msra.mxu0 0
        %1562 = vmatprep.subr.bf16.mxu0 0
        %1563 = vmatpush1.bf16.msra.mxu0 0
        %1564 = vmatprep.subr.bf16.mxu0 0
        %1565 = vmatpush1.bf16.msra.mxu0 0
        %1566 = vmatprep.subr.bf16.mxu0 0
        %1567 = vmatpush1.bf16.msra.mxu0 0
        %1568 = vmatprep.subr.bf16.mxu0 0
        %1569 = vmatpush1.bf16.msra.mxu0 0
        %1570 = vmatprep.subr.bf16.mxu0 0
        %1571 = vmatpush1.bf16.msra.mxu0 0
        %1572 = vmatprep.subr.bf16.mxu0 0
        %1573 = vmatpush1.bf16.msra.mxu0 0
        %1574 = vmatprep.subr.bf16.mxu0 0
        %1575 = vmatpush1.bf16.msra.mxu0 0
        %1576 = vmatprep.subr.bf16.mxu0 0
        %1577 = vmatpush1.bf16.msra.mxu0 0
        %1578 = vmatprep.subr.bf16.mxu0 0
        %1579 = vmatpush1.bf16.msra.mxu0 0
        %1580 = vmatprep.mubr.bf16.mxu0 0
        %1581 = vmatmul.mubr.bf16.gmra.mrb[0].mxu0 %v1543
        %v1582 = vpop.f32.mrb[0].mxu0
        %v1583 = vadd.f32 0.0, %v1582
        %v1584 = vpop.f32.mrb[0].mxu0
        %v1585 = vpop.f32.mrb[0].mxu0
        %v1586 = vpop.f32.mrb[0].mxu0
        %1587 = vdwg.mxu0
        %v1589 = vsel %vm1120, %v1539, 0
        %v1592 = vsel %vm1124, %v967, 0
        %1594 = vmatprep.subr.bf16.mxu0 0
        %1595 = vmatpush1.bf16.msra.mxu0 %v1592
        %1596 = vmatprep.subr.bf16.mxu0 0
        %1597 = vmatpush1.bf16.msra.mxu0 0
        %1598 = vmatprep.subr.bf16.mxu0 0
        %1599 = vmatpush1.bf16.msra.mxu0 0
        %1600 = vmatprep.subr.bf16.mxu0 0
        %1601 = vmatpush1.bf16.msra.mxu0 0
        %1602 = vmatprep.subr.bf16.mxu0 0
        %1603 = vmatpush1.bf16.msra.mxu0 0
        %1604 = vmatprep.subr.bf16.mxu0 0
        %1605 = vmatpush1.bf16.msra.mxu0 0
        %1606 = vmatprep.subr.bf16.mxu0 0
        %1607 = vmatpush1.bf16.msra.mxu0 0
        %1608 = vmatprep.subr.bf16.mxu0 0
        %1609 = vmatpush1.bf16.msra.mxu0 0
        %1610 = vmatprep.subr.bf16.mxu0 0
        %1611 = vmatpush1.bf16.msra.mxu0 0
        %1612 = vmatprep.subr.bf16.mxu0 0
        %1613 = vmatpush1.bf16.msra.mxu0 0
        %1614 = vmatprep.subr.bf16.mxu0 0
        %1615 = vmatpush1.bf16.msra.mxu0 0
        %1616 = vmatprep.subr.bf16.mxu0 0
        %1617 = vmatpush1.bf16.msra.mxu0 0
        %1618 = vmatprep.subr.bf16.mxu0 0
        %1619 = vmatpush1.bf16.msra.mxu0 0
        %1620 = vmatprep.subr.bf16.mxu0 0
        %1621 = vmatpush1.bf16.msra.mxu0 0
        %1622 = vmatprep.subr.bf16.mxu0 0
        %1623 = vmatpush1.bf16.msra.mxu0 0
        %1624 = vmatprep.subr.bf16.mxu0 0
        %1625 = vmatpush1.bf16.msra.mxu0 0
        %1626 = vmatprep.mubr.bf16.mxu0 0
        %1627 = vmatmul.mubr.bf16.gmra.mrb[0].mxu0 %v1589
        %v1628 = vpop.f32.mrb[0].mxu0
        %v1629 = vadd.f32 0.0, %v1628
        %v1630 = vpop.f32.mrb[0].mxu0
        %v1631 = vpop.f32.mrb[0].mxu0
        %v1632 = vpop.f32.mrb[0].mxu0
        %1633 = vdwg.mxu0
        %v1635 = vsel %vm1120, %v1540, 0
        %v1638 = vsel %vm1124, %v968, 0
        %1640 = vmatprep.subr.bf16.mxu0 0
        %1641 = vmatpush1.bf16.msra.mxu0 %v1638
        %1642 = vmatprep.subr.bf16.mxu0 0
        %1643 = vmatpush1.bf16.msra.mxu0 0
        %1644 = vmatprep.subr.bf16.mxu0 0
        %1645 = vmatpush1.bf16.msra.mxu0 0
        %1646 = vmatprep.subr.bf16.mxu0 0
        %1647 = vmatpush1.bf16.msra.mxu0 0
        %1648 = vmatprep.subr.bf16.mxu0 0
        %1649 = vmatpush1.bf16.msra.mxu0 0
        %1650 = vmatprep.subr.bf16.mxu0 0
        %1651 = vmatpush1.bf16.msra.mxu0 0
        %1652 = vmatprep.subr.bf16.mxu0 0
        %1653 = vmatpush1.bf16.msra.mxu0 0
        %1654 = vmatprep.subr.bf16.mxu0 0
        %1655 = vmatpush1.bf16.msra.mxu0 0
        %1656 = vmatprep.subr.bf16.mxu0 0
        %1657 = vmatpush1.bf16.msra.mxu0 0
        %1658 = vmatprep.subr.bf16.mxu0 0
        %1659 = vmatpush1.bf16.msra.mxu0 0
        %1660 = vmatprep.subr.bf16.mxu0 0
        %1661 = vmatpush1.bf16.msra.mxu0 0
        %1662 = vmatprep.subr.bf16.mxu0 0
        %1663 = vmatpush1.bf16.msra.mxu0 0
        %1664 = vmatprep.subr.bf16.mxu0 0
        %1665 = vmatpush1.bf16.msra.mxu0 0
        %1666 = vmatprep.subr.bf16.mxu0 0
        %1667 = vmatpush1.bf16.msra.mxu0 0
        %1668 = vmatprep.subr.bf16.mxu0 0
        %1669 = vmatpush1.bf16.msra.mxu0 0
        %1670 = vmatprep.subr.bf16.mxu0 0
        %1671 = vmatpush1.bf16.msra.mxu0 0
        %1672 = vmatprep.mubr.bf16.mxu0 0
        %1673 = vmatmul.mubr.bf16.gmra.mrb[0].mxu0 %v1635
        %v1674 = vpop.f32.mrb[0].mxu0
        %v1675 = vadd.f32 0.0, %v1674
        %v1676 = vpop.f32.mrb[0].mxu0
        %v1677 = vpop.f32.mrb[0].mxu0
        %v1678 = vpop.f32.mrb[0].mxu0
        %1679 = vdwg.mxu0
        %v1681 = vsel %vm1120, %v1541, 0
        %v1684 = vsel %vm1124, %v969, 0
        %1686 = vmatprep.subr.bf16.mxu0 0
        %1687 = vmatpush1.bf16.msra.mxu0 %v1684
        %1688 = vmatprep.subr.bf16.mxu0 0
        %1689 = vmatpush1.bf16.msra.mxu0 0
        %1690 = vmatprep.subr.bf16.mxu0 0
        %1691 = vmatpush1.bf16.msra.mxu0 0
        %1692 = vmatprep.subr.bf16.mxu0 0
        %1693 = vmatpush1.bf16.msra.mxu0 0
        %1694 = vmatprep.subr.bf16.mxu0 0
        %1695 = vmatpush1.bf16.msra.mxu0 0
        %1696 = vmatprep.subr.bf16.mxu0 0
        %1697 = vmatpush1.bf16.msra.mxu0 0
        %1698 = vmatprep.subr.bf16.mxu0 0
        %1699 = vmatpush1.bf16.msra.mxu0 0
        %1700 = vmatprep.subr.bf16.mxu0 0
        %1701 = vmatpush1.bf16.msra.mxu0 0
        %1702 = vmatprep.subr.bf16.mxu0 0
        %1703 = vmatpush1.bf16.msra.mxu0 0
        %1704 = vmatprep.subr.bf16.mxu0 0
        %1705 = vmatpush1.bf16.msra.mxu0 0
        %1706 = vmatprep.subr.bf16.mxu0 0
        %1707 = vmatpush1.bf16.msra.mxu0 0
        %1708 = vmatprep.subr.bf16.mxu0 0
        %1709 = vmatpush1.bf16.msra.mxu0 0
        %1710 = vmatprep.subr.bf16.mxu0 0
        %1711 = vmatpush1.bf16.msra.mxu0 0
        %1712 = vmatprep.subr.bf16.mxu0 0
        %1713 = vmatpush1.bf16.msra.mxu0 0
        %1714 = vmatprep.subr.bf16.mxu0 0
        %1715 = vmatpush1.bf16.msra.mxu0 0
        %1716 = vmatprep.subr.bf16.mxu0 0
        %1717 = vmatpush1.bf16.msra.mxu0 0
        %1718 = vmatprep.mubr.bf16.mxu0 0
        %1719 = vmatmul.mubr.bf16.gmra.mrb[0].mxu0 %v1681
        %v1720 = vpop.f32.mrb[0].mxu0
        %v1721 = vadd.f32 0.0, %v1720
        %v1722 = vpop.f32.mrb[0].mxu0
        %v1723 = vpop.f32.mrb[0].mxu0
        %v1724 = vpop.f32.mrb[0].mxu0
        %1725 = vdwg.mxu0
        %v1726 = vsel %vm720, %v1583, 0.0
        %v1727 = vsel %vm720, %v1629, 0.0
        %v1728 = vadd.f32 %v1726, %v1727
        %v1729 = vsel %vm720, %v1675, 0.0
        %v1730 = vadd.f32 %v1728, %v1729
        %v1731 = vsel %vm720, %v1721, 0.0
        %v1732 = vadd.f32 %v1730, %v1731
        %v1733 = vadd.f32 %v717, %v1732
        %v1734 = vld [vmem:[%s7] sm:$0x1]
        %v1736 = vlaneseq
        %v1737 = vshrl.u32 %v1736, 7
        %v1738 = vsub.s32 0, %v1737
        %v1739 = vrot.slane %v1734, %v1738
        %v1741 = vadd.f32 %v1733, %v1739
        %v1742 = vld [vmem:[%s8] sm:$0x1]
        %v1743 = vld [vmem:[%s9] sm:$0x1]
        %v1744 = vsel %vm720, %v1741, 0.0
        %1745 = vadd.xlane.f32.xlu0 %v1744
        %v1746 = vpop.xlane.xlu0 %1745
        %v1747 = vmul.f32 %v1746, %v724
        %v1748 = vsub.f32 %v1741, %v1747
        %v1749 = vmul.f32 %v1748, %v1748
        %v1750 = vsel %vm720, %v1749, 0.0
        %1751 = vadd.xlane.f32.xlu0 %v1750
        %v1752 = vpop.xlane.xlu0 %1751
        %v1753 = vmul.f32 %v1752, %v724
        %v1754 = vadd.f32 %v1753, 1e-05
        %v1755 = vrsqrt.pop %v1754
        %v1756 = vmul.f32 %v1748, %v1755
        %v1758 = vlaneseq
        %v1759 = vshrl.u32 %v1758, 7
        %v1760 = vsub.s32 0, %v1759
        %v1761 = vrot.slane %v1742, %v1760
        %v1763 = vmul.f32 %v1756, %v1761
        %v1765 = vlaneseq
        %v1766 = vshrl.u32 %v1765, 7
        %v1767 = vsub.s32 0, %v1766
        %v1768 = vrot.slane %v1743, %v1767
        %v1770 = vadd.f32 %v1763, %v1768
        %v1771 = vpack.c.bf16 %v1770, %v1770
        %v1772 = vld [vmem:[%s715] sm:$0xff]
        %v1773 = vpack.c.bf16 %v1772, %v1772
        %v1774 = vld [vmem:[%s10] sm:$0xf]
        %v1775 = vld [vmem:[%s10 + $0x4] sm:$0xf]
        %v1776 = vld [vmem:[%s10 + $0x8] sm:$0xf]
        %v1777 = vld [vmem:[%s10 + $0xc] sm:$0xf]
        %v1778 = vld [vmem:[%s11] sm:$0xff]
        %v1779 = vld [vmem:[%s11 + $0x8] sm:$0xff]
        %v1780 = vld [vmem:[%s11 + $0x10] sm:$0xff]
        %v1781 = vld [vmem:[%s11 + $0x18] sm:$0xff]
        %1783 = vset.pattern.permute.xlu0 0
        %1784 = vperm.xlu0 %1783, %v1778
        %v1785 = vpop.permute.xlu0 %1784
        %1788 = vset.pattern.permute.xlu0 0
        %1789 = vperm.xlu0 %1788, %v1779
        %v1790 = vpop.permute.xlu0 %1789
        %1793 = vset.pattern.permute.xlu0 0
        %1794 = vperm.xlu0 %1793, %v1780
        %v1795 = vpop.permute.xlu0 %1794
        %1798 = vset.pattern.permute.xlu0 0
        %1799 = vperm.xlu0 %1798, %v1781
        %v1800 = vpop.permute.xlu0 %1799
        %v1806 = vunpack.c.l.b16 %v1774
        %v1807 = vunpack.c.l.b16 %v1775
        %v1808 = vunpack.c.l.b16 %v1776
        %v1809 = vunpack.c.l.b16 %v1777
        %v1810 = vpack.c.b16 %v1807, %v1806
        %v1811 = vpack.c.b16 %v1809, %v1808
        %v1813 = vsel %vm720, %v1810, 0
        %v1816 = vsel %vm720, %v1811, 0
        %v1819 = vsel %vm720, %v1771, 0
        %1821 = vmatprep.subr.bf16.mxu0 0
        %1822 = vmatpush1.bf16.xpose.msra.mxu0 %v1819
        %1823 = vmatprep.subr.bf16.mxu0 0
        %1824 = vmatpush1.bf16.xpose.msra.mxu0 0
        %1825 = vmatprep.subr.bf16.mxu0 0
        %1826 = vmatpush1.bf16.xpose.msra.mxu0 0
        %1827 = vmatprep.subr.bf16.mxu0 0
        %1828 = vmatpush1.bf16.xpose.msra.mxu0 0
        %1829 = vmatprep.subr.bf16.mxu0 0
        %1830 = vmatpush1.bf16.xpose.msra.mxu0 0
        %1831 = vmatprep.subr.bf16.mxu0 0
        %1832 = vmatpush1.bf16.xpose.msra.mxu0 0
        %1833 = vmatprep.subr.bf16.mxu0 0
        %1834 = vmatpush1.bf16.xpose.msra.mxu0 0
        %1835 = vmatprep.subr.bf16.mxu0 0
        %1836 = vmatpush1.bf16.xpose.msra.mxu0 0
        %1837 = vmatprep.subr.bf16.mxu0 0
        %1838 = vmatpush1.bf16.xpose.msra.mxu0 0
        %1839 = vmatprep.subr.bf16.mxu0 0
        %1840 = vmatpush1.bf16.xpose.msra.mxu0 0
        %1841 = vmatprep.subr.bf16.mxu0 0
        %1842 = vmatpush1.bf16.xpose.msra.mxu0 0
        %1843 = vmatprep.subr.bf16.mxu0 0
        %1844 = vmatpush1.bf16.xpose.msra.mxu0 0
        %1845 = vmatprep.subr.bf16.mxu0 0
        %1846 = vmatpush1.bf16.xpose.msra.mxu0 0
        %1847 = vmatprep.subr.bf16.mxu0 0
        %1848 = vmatpush1.bf16.xpose.msra.mxu0 0
        %1849 = vmatprep.subr.bf16.mxu0 0
        %1850 = vmatpush1.bf16.xpose.msra.mxu0 0
        %1851 = vmatprep.subr.bf16.mxu0 0
        %1852 = vmatpush1.bf16.xpose.msra.mxu0 0
        %1853 = vmatprep.mubr.bf16.mxu0 0
        %1854 = vmatmul.mubr.bf16.gmra.mrb[0].mxu0 %v1813
        %v1855 = vpop.f32.mrb[0].mxu0
        %v1856 = vadd.f32 %v1785, %v1855
        %v1857 = vpop.f32.mrb[0].mxu0
        %v1858 = vpop.f32.mrb[0].mxu0
        %v1859 = vadd.f32 %v1790, %v1858
        %v1860 = vpop.f32.mrb[0].mxu0
        %1861 = vmatprep.mubr.bf16.mxu0 0
        %1862 = vmatmul.mubr.bf16.gmra.mrb[0].mxu0 %v1816
        %v1863 = vpop.f32.mrb[0].mxu0
        %v1864 = vadd.f32 %v1795, %v1863
        %v1865 = vpop.f32.mrb[0].mxu0
        %v1866 = vpop.f32.mrb[0].mxu0
        %v1867 = vadd.f32 %v1800, %v1866
        %v1868 = vpop.f32.mrb[0].mxu0
        %1869 = vdwg.mxu0
        %v1870 = vld [vmem:[%s12] sm:$0xf]
        %v1871 = vld [vmem:[%s12 + $0x4] sm:$0xf]
        %v1872 = vld [vmem:[%s12 + $0x8] sm:$0xf]
        %v1873 = vld [vmem:[%s12 + $0xc] sm:$0xf]
        %v1874 = vld [vmem:[%s12 + $0x10] sm:$0xf]
        %v1875 = vld [vmem:[%s12 + $0x14] sm:$0xf]
        %v1876 = vld [vmem:[%s12 + $0x18] sm:$0xf]
        %v1877 = vld [vmem:[%s12 + $0x1c] sm:$0xf]
        %v1878 = vld [vmem:[%s13] sm:$0xff]
        %v1879 = vld [vmem:[%s13 + $0x8] sm:$0xff]
        %v1880 = vld [vmem:[%s13 + $0x10] sm:$0xff]
        %v1881 = vld [vmem:[%s13 + $0x18] sm:$0xff]
        %v1882 = vld [vmem:[%s13 + $0x20] sm:$0xff]
        %v1883 = vld [vmem:[%s13 + $0x28] sm:$0xff]
        %v1884 = vld [vmem:[%s13 + $0x30] sm:$0xff]
        %v1885 = vld [vmem:[%s13 + $0x38] sm:$0xff]
        %1887 = vset.pattern.permute.xlu0 0
        %1888 = vperm.xlu0 %1887, %v1878
        %v1889 = vpop.permute.xlu0 %1888
        %1892 = vset.pattern.permute.xlu0 0
        %1893 = vperm.xlu0 %1892, %v1879
        %v1894 = vpop.permute.xlu0 %1893
        %1897 = vset.pattern.permute.xlu0 0
        %1898 = vperm.xlu0 %1897, %v1880
        %v1899 = vpop.permute.xlu0 %1898
        %1902 = vset.pattern.permute.xlu0 0
        %1903 = vperm.xlu0 %1902, %v1881
        %v1904 = vpop.permute.xlu0 %1903
        %1907 = vset.pattern.permute.xlu0 0
        %1908 = vperm.xlu0 %1907, %v1882
        %v1909 = vpop.permute.xlu0 %1908
        %1912 = vset.pattern.permute.xlu0 0
        %1913 = vperm.xlu0 %1912, %v1883
        %v1914 = vpop.permute.xlu0 %1913
        %1917 = vset.pattern.permute.xlu0 0
        %1918 = vperm.xlu0 %1917, %v1884
        %v1919 = vpop.permute.xlu0 %1918
        %1922 = vset.pattern.permute.xlu0 0
        %1923 = vperm.xlu0 %1922, %v1885
        %v1924 = vpop.permute.xlu0 %1923
        %v1934 = vunpack.c.l.b16 %v1870
        %v1935 = vunpack.c.l.b16 %v1871
        %v1936 = vunpack.c.l.b16 %v1872
        %v1937 = vunpack.c.l.b16 %v1873
        %v1938 = vunpack.c.l.b16 %v1874
        %v1939 = vunpack.c.l.b16 %v1875
        %v1940 = vunpack.c.l.b16 %v1876
        %v1941 = vunpack.c.l.b16 %v1877
        %v1942 = vpack.c.b16 %v1935, %v1934
        %v1943 = vpack.c.b16 %v1937, %v1936
        %v1944 = vpack.c.b16 %v1939, %v1938
        %v1945 = vpack.c.b16 %v1941, %v1940
        %v1947 = vsel %vm720, %v1942, 0
        %v1950 = vsel %vm720, %v1943, 0
        %v1953 = vsel %vm720, %v1944, 0
        %v1956 = vsel %vm720, %v1945, 0
        %v1959 = vsel %vm720, %v1773, 0
        %1961 = vmatprep.subr.bf16.mxu0 0
        %1962 = vmatpush1.bf16.xpose.msra.mxu0 %v1959
        %1963 = vmatprep.subr.bf16.mxu0 0
        %1964 = vmatpush1.bf16.xpose.msra.mxu0 0
        %1965 = vmatprep.subr.bf16.mxu0 0
        %1966 = vmatpush1.bf16.xpose.msra.mxu0 0
        %1967 = vmatprep.subr.bf16.mxu0 0
        %1968 = vmatpush1.bf16.xpose.msra.mxu0 0
        %1969 = vmatprep.subr.bf16.mxu0 0
        %1970 = vmatpush1.bf16.xpose.msra.mxu0 0
        %1971 = vmatprep.subr.bf16.mxu0 0
        %1972 = vmatpush1.bf16.xpose.msra.mxu0 0
        %1973 = vmatprep.subr.bf16.mxu0 0
        %1974 = vmatpush1.bf16.xpose.msra.mxu0 0
        %1975 = vmatprep.subr.bf16.mxu0 0
        %1976 = vmatpush1.bf16.xpose.msra.mxu0 0
        %1977 = vmatprep.subr.bf16.mxu0 0
        %1978 = vmatpush1.bf16.xpose.msra.mxu0 0
        %1979 = vmatprep.subr.bf16.mxu0 0
        %1980 = vmatpush1.bf16.xpose.msra.mxu0 0
        %1981 = vmatprep.subr.bf16.mxu0 0
        %1982 = vmatpush1.bf16.xpose.msra.mxu0 0
        %1983 = vmatprep.subr.bf16.mxu0 0
        %1984 = vmatpush1.bf16.xpose.msra.mxu0 0
        %1985 = vmatprep.subr.bf16.mxu0 0
        %1986 = vmatpush1.bf16.xpose.msra.mxu0 0
        %1987 = vmatprep.subr.bf16.mxu0 0
        %1988 = vmatpush1.bf16.xpose.msra.mxu0 0
        %1989 = vmatprep.subr.bf16.mxu0 0
        %1990 = vmatpush1.bf16.xpose.msra.mxu0 0
        %1991 = vmatprep.subr.bf16.mxu0 0
        %1992 = vmatpush1.bf16.xpose.msra.mxu0 0
        %1993 = vmatprep.mubr.bf16.mxu0 0
        %1994 = vmatmul.mubr.bf16.gmra.mrb[0].mxu0 %v1947
        %v1995 = vpop.f32.mrb[0].mxu0
        %v1996 = vadd.f32 %v1889, %v1995
        %v1997 = vpop.f32.mrb[0].mxu0
        %v1998 = vpop.f32.mrb[0].mxu0
        %v1999 = vadd.f32 %v1894, %v1998
        %v2000 = vpop.f32.mrb[0].mxu0
        %2001 = vmatprep.mubr.bf16.mxu0 0
        %2002 = vmatmul.mubr.bf16.gmra.mrb[0].mxu0 %v1950
        %v2003 = vpop.f32.mrb[0].mxu0
        %v2004 = vadd.f32 %v1899, %v2003
        %v2005 = vpop.f32.mrb[0].mxu0
        %v2006 = vpop.f32.mrb[0].mxu0
        %v2007 = vadd.f32 %v1904, %v2006
        %v2008 = vpop.f32.mrb[0].mxu0
        %2009 = vmatprep.mubr.bf16.mxu0 0
        %2010 = vmatmul.mubr.bf16.gmra.mrb[0].mxu0 %v1953
        %v2011 = vpop.f32.mrb[0].mxu0
        %v2012 = vadd.f32 %v1909, %v2011
        %v2013 = vpop.f32.mrb[0].mxu0
        %v2014 = vpop.f32.mrb[0].mxu0
        %v2015 = vadd.f32 %v1914, %v2014
        %v2016 = vpop.f32.mrb[0].mxu0
        %2017 = vmatprep.mubr.bf16.mxu0 0
        %2018 = vmatmul.mubr.bf16.gmra.mrb[0].mxu0 %v1956
        %v2019 = vpop.f32.mrb[0].mxu0
        %v2020 = vadd.f32 %v1919, %v2019
        %v2021 = vpop.f32.mrb[0].mxu0
        %v2022 = vpop.f32.mrb[0].mxu0
        %v2023 = vadd.f32 %v1924, %v2022
        %v2024 = vpop.f32.mrb[0].mxu0
        %2025 = vdwg.mxu0
        %v2026 = vld [vmem:[%s14] sm:$0xf]
        %v2027 = vld [vmem:[%s14 + $0x4] sm:$0xf]
        %v2028 = vld [vmem:[%s14 + $0x8] sm:$0xf]
        %v2029 = vld [vmem:[%s14 + $0xc] sm:$0xf]
        %v2030 = vmul.f32 %v1856, 0.35355338
        %v2031 = vmul.f32 %v1859, 0.35355338
        %v2032 = vmul.f32 %v1864, 0.35355338
        %v2033 = vmul.f32 %v1867, 0.35355338
        %2034 = vxpose.xlu0.b32.start [1/16] %v2030, 128
        %2035 = vxpose.xlu0.b32.cont [2/16] 0.0, 128
        %2036 = vxpose.xlu0.b32.cont [3/16] 0.0, 128
        %2037 = vxpose.xlu0.b32.cont [4/16] 0.0, 128
        %2038 = vxpose.xlu0.b32.cont [5/16] 0.0, 128
        %2039 = vxpose.xlu0.b32.cont [6/16] 0.0, 128
        %2040 = vxpose.xlu0.b32.cont [7/16] 0.0, 128
        %2041 = vxpose.xlu0.b32.cont [8/16] 0.0, 128
        %2042 = vxpose.xlu0.b32.cont [9/16] 0.0, 128
        %2043 = vxpose.xlu0.b32.cont [10/16] 0.0, 128
        %2044 = vxpose.xlu0.b32.cont [11/16] 0.0, 128
        %2045 = vxpose.xlu0.b32.cont [12/16] 0.0, 128
        %2046 = vxpose.xlu0.b32.cont [13/16] 0.0, 128
        %2047 = vxpose.xlu0.b32.cont [14/16] 0.0, 128
        %2048 = vxpose.xlu0.b32.cont [15/16] 0.0, 128
        %2049 = vxpose.xlu0.b32.end [16/16] 0.0, 128
        %v2050 = vpop.trf.xlu0
        %v2051 = vpop.trf.xlu0
        %v2052 = vpop.trf.xlu0
        %v2053 = vpop.trf.xlu0
        %v2054 = vpop.trf.xlu0
        %v2055 = vpop.trf.xlu0
        %v2056 = vpop.trf.xlu0
        %v2057 = vpop.trf.xlu0
        %v2058 = vpop.trf.xlu0
        %v2059 = vpop.trf.xlu0
        %v2060 = vpop.trf.xlu0
        %v2061 = vpop.trf.xlu0
        %v2062 = vpop.trf.xlu0
        %v2063 = vpop.trf.xlu0
        %v2064 = vpop.trf.xlu0
        %v2065 = vpop.trf.xlu0
        %2066 = vxpose.xlu0.b32.start [1/16] %v2031, 128
        %2067 = vxpose.xlu0.b32.cont [2/16] 0.0, 128
        %2068 = vxpose.xlu0.b32.cont [3/16] 0.0, 128
        %2069 = vxpose.xlu0.b32.cont [4/16] 0.0, 128
        %2070 = vxpose.xlu0.b32.cont [5/16] 0.0, 128
        %2071 = vxpose.xlu0.b32.cont [6/16] 0.0, 128
        %2072 = vxpose.xlu0.b32.cont [7/16] 0.0, 128
        %2073 = vxpose.xlu0.b32.cont [8/16] 0.0, 128
        %2074 = vxpose.xlu0.b32.cont [9/16] 0.0, 128
        %2075 = vxpose.xlu0.b32.cont [10/16] 0.0, 128
        %2076 = vxpose.xlu0.b32.cont [11/16] 0.0, 128
        %2077 = vxpose.xlu0.b32.cont [12/16] 0.0, 128
        %2078 = vxpose.xlu0.b32.cont [13/16] 0.0, 128
        %2079 = vxpose.xlu0.b32.cont [14/16] 0.0, 128
        %2080 = vxpose.xlu0.b32.cont [15/16] 0.0, 128
        %2081 = vxpose.xlu0.b32.end [16/16] 0.0, 128
        %v2082 = vpop.trf.xlu0
        %v2083 = vpop.trf.xlu0
        %v2084 = vpop.trf.xlu0
        %v2085 = vpop.trf.xlu0
        %v2086 = vpop.trf.xlu0
        %v2087 = vpop.trf.xlu0
        %v2088 = vpop.trf.xlu0
        %v2089 = vpop.trf.xlu0
        %v2090 = vpop.trf.xlu0
        %v2091 = vpop.trf.xlu0
        %v2092 = vpop.trf.xlu0
        %v2093 = vpop.trf.xlu0
        %v2094 = vpop.trf.xlu0
        %v2095 = vpop.trf.xlu0
        %v2096 = vpop.trf.xlu0
        %v2097 = vpop.trf.xlu0
        %2098 = vxpose.xlu0.b32.start [1/16] %v2032, 128
        %2099 = vxpose.xlu0.b32.cont [2/16] 0.0, 128
        %2100 = vxpose.xlu0.b32.cont [3/16] 0.0, 128
        %2101 = vxpose.xlu0.b32.cont [4/16] 0.0, 128
        %2102 = vxpose.xlu0.b32.cont [5/16] 0.0, 128
        %2103 = vxpose.xlu0.b32.cont [6/16] 0.0, 128
        %2104 = vxpose.xlu0.b32.cont [7/16] 0.0, 128
        %2105 = vxpose.xlu0.b32.cont [8/16] 0.0, 128
        %2106 = vxpose.xlu0.b32.cont [9/16] 0.0, 128
        %2107 = vxpose.xlu0.b32.cont [10/16] 0.0, 128
        %2108 = vxpose.xlu0.b32.cont [11/16] 0.0, 128
        %2109 = vxpose.xlu0.b32.cont [12/16] 0.0, 128
        %2110 = vxpose.xlu0.b32.cont [13/16] 0.0, 128
        %2111 = vxpose.xlu0.b32.cont [14/16] 0.0, 128
        %2112 = vxpose.xlu0.b32.cont [15/16] 0.0, 128
        %2113 = vxpose.xlu0.b32.end [16/16] 0.0, 128
        %v2114 = vpop.trf.xlu0
        %v2115 = vpop.trf.xlu0
        %v2116 = vpop.trf.xlu0
        %v2117 = vpop.trf.xlu0
        %v2118 = vpop.trf.xlu0
        %v2119 = vpop.trf.xlu0
        %v2120 = vpop.trf.xlu0
        %v2121 = vpop.trf.xlu0
        %v2122 = vpop.trf.xlu0
        %v2123 = vpop.trf.xlu0
        %v2124 = vpop.trf.xlu0
        %v2125 = vpop.trf.xlu0
        %v2126 = vpop.trf.xlu0
        %v2127 = vpop.trf.xlu0
        %v2128 = vpop.trf.xlu0
        %v2129 = vpop.trf.xlu0
        %2130 = vxpose.xlu0.b32.start [1/16] %v2033, 128
        %2131 = vxpose.xlu0.b32.cont [2/16] 0.0, 128
        %2132 = vxpose.xlu0.b32.cont [3/16] 0.0, 128
        %2133 = vxpose.xlu0.b32.cont [4/16] 0.0, 128
        %2134 = vxpose.xlu0.b32.cont [5/16] 0.0, 128
        %2135 = vxpose.xlu0.b32.cont [6/16] 0.0, 128
        %2136 = vxpose.xlu0.b32.cont [7/16] 0.0, 128
        %2137 = vxpose.xlu0.b32.cont [8/16] 0.0, 128
        %2138 = vxpose.xlu0.b32.cont [9/16] 0.0, 128
        %2139 = vxpose.xlu0.b32.cont [10/16] 0.0, 128
        %2140 = vxpose.xlu0.b32.cont [11/16] 0.0, 128
        %2141 = vxpose.xlu0.b32.cont [12/16] 0.0, 128
        %2142 = vxpose.xlu0.b32.cont [13/16] 0.0, 128
        %2143 = vxpose.xlu0.b32.cont [14/16] 0.0, 128
        %2144 = vxpose.xlu0.b32.cont [15/16] 0.0, 128
        %2145 = vxpose.xlu0.b32.end [16/16] 0.0, 128
        %v2146 = vpop.trf.xlu0
        %v2147 = vpop.trf.xlu0
        %v2148 = vpop.trf.xlu0
        %v2149 = vpop.trf.xlu0
        %v2150 = vpop.trf.xlu0
        %v2151 = vpop.trf.xlu0
        %v2152 = vpop.trf.xlu0
        %v2153 = vpop.trf.xlu0
        %v2154 = vpop.trf.xlu0
        %v2155 = vpop.trf.xlu0
        %v2156 = vpop.trf.xlu0
        %v2157 = vpop.trf.xlu0
        %v2158 = vpop.trf.xlu0
        %v2159 = vpop.trf.xlu0
        %v2160 = vpop.trf.xlu0
        %v2161 = vpop.trf.xlu0
        %v2162 = vpack.c.bf16 %v2050, %v2050
        %v2163 = vpack.c.bf16 %v2082, %v2082
        %v2164 = vpack.c.bf16 %v2114, %v2114
        %v2165 = vpack.c.bf16 %v2146, %v2146
        %v2166 = vpack.c.bf16 %v1996, %v1996
        %v2167 = vpack.c.bf16 %v1999, %v1999
        %v2168 = vpack.c.bf16 %v2004, %v2004
        %v2169 = vpack.c.bf16 %v2007, %v2007
        %v2170 = vpack.c.bf16 %v2012, %v2012
        %v2171 = vpack.c.bf16 %v2015, %v2015
        %v2172 = vpack.c.bf16 %v2020, %v2020
        %v2173 = vpack.c.bf16 %v2023, %v2023
        %v2175 = vsel %vm1120, %v2162, 0
        %v2178 = vsel %vm1124, %v2166, 0
        %2180 = vmatprep.subr.bf16.mxu0 0
        %2181 = vmatpush1.bf16.msra.mxu0 %v2178
        %2182 = vmatprep.subr.bf16.mxu0 0
        %2183 = vmatpush1.bf16.msra.mxu0 0
        %2184 = vmatprep.subr.bf16.mxu0 0
        %2185 = vmatpush1.bf16.msra.mxu0 0
        %2186 = vmatprep.subr.bf16.mxu0 0
        %2187 = vmatpush1.bf16.msra.mxu0 0
        %2188 = vmatprep.subr.bf16.mxu0 0
        %2189 = vmatpush1.bf16.msra.mxu0 0
        %2190 = vmatprep.subr.bf16.mxu0 0
        %2191 = vmatpush1.bf16.msra.mxu0 0
        %2192 = vmatprep.subr.bf16.mxu0 0
        %2193 = vmatpush1.bf16.msra.mxu0 0
        %2194 = vmatprep.subr.bf16.mxu0 0
        %2195 = vmatpush1.bf16.msra.mxu0 0
        %2196 = vmatprep.subr.bf16.mxu0 0
        %2197 = vmatpush1.bf16.msra.mxu0 0
        %2198 = vmatprep.subr.bf16.mxu0 0
        %2199 = vmatpush1.bf16.msra.mxu0 0
        %2200 = vmatprep.subr.bf16.mxu0 0
        %2201 = vmatpush1.bf16.msra.mxu0 0
        %2202 = vmatprep.subr.bf16.mxu0 0
        %2203 = vmatpush1.bf16.msra.mxu0 0
        %2204 = vmatprep.subr.bf16.mxu0 0
        %2205 = vmatpush1.bf16.msra.mxu0 0
        %2206 = vmatprep.subr.bf16.mxu0 0
        %2207 = vmatpush1.bf16.msra.mxu0 0
        %2208 = vmatprep.subr.bf16.mxu0 0
        %2209 = vmatpush1.bf16.msra.mxu0 0
        %2210 = vmatprep.subr.bf16.mxu0 0
        %2211 = vmatpush1.bf16.msra.mxu0 0
        %2212 = vmatprep.mubr.bf16.mxu0 0
        %2213 = vmatmul.mubr.bf16.gmra.mrb[0].mxu0 %v2175
        %v2214 = vpop.f32.mrb[0].mxu0
        %v2215 = vadd.f32 0.0, %v2214
        %v2216 = vpop.f32.mrb[0].mxu0
        %v2217 = vpop.f32.mrb[0].mxu0
        %v2218 = vpop.f32.mrb[0].mxu0
        %2219 = vdwg.mxu0
        %v2221 = vsel %vm1120, %v2163, 0
        %v2224 = vsel %vm1124, %v2167, 0
        %2226 = vmatprep.subr.bf16.mxu0 0
        %2227 = vmatpush1.bf16.msra.mxu0 %v2224
        %2228 = vmatprep.subr.bf16.mxu0 0
        %2229 = vmatpush1.bf16.msra.mxu0 0
        %2230 = vmatprep.subr.bf16.mxu0 0
        %2231 = vmatpush1.bf16.msra.mxu0 0
        %2232 = vmatprep.subr.bf16.mxu0 0
        %2233 = vmatpush1.bf16.msra.mxu0 0
        %2234 = vmatprep.subr.bf16.mxu0 0
        %2235 = vmatpush1.bf16.msra.mxu0 0
        %2236 = vmatprep.subr.bf16.mxu0 0
        %2237 = vmatpush1.bf16.msra.mxu0 0
        %2238 = vmatprep.subr.bf16.mxu0 0
        %2239 = vmatpush1.bf16.msra.mxu0 0
        %2240 = vmatprep.subr.bf16.mxu0 0
        %2241 = vmatpush1.bf16.msra.mxu0 0
        %2242 = vmatprep.subr.bf16.mxu0 0
        %2243 = vmatpush1.bf16.msra.mxu0 0
        %2244 = vmatprep.subr.bf16.mxu0 0
        %2245 = vmatpush1.bf16.msra.mxu0 0
        %2246 = vmatprep.subr.bf16.mxu0 0
        %2247 = vmatpush1.bf16.msra.mxu0 0
        %2248 = vmatprep.subr.bf16.mxu0 0
        %2249 = vmatpush1.bf16.msra.mxu0 0
        %2250 = vmatprep.subr.bf16.mxu0 0
        %2251 = vmatpush1.bf16.msra.mxu0 0
        %2252 = vmatprep.subr.bf16.mxu0 0
        %2253 = vmatpush1.bf16.msra.mxu0 0
        %2254 = vmatprep.subr.bf16.mxu0 0
        %2255 = vmatpush1.bf16.msra.mxu0 0
        %2256 = vmatprep.subr.bf16.mxu0 0
        %2257 = vmatpush1.bf16.msra.mxu0 0
        %2258 = vmatprep.mubr.bf16.mxu0 0
        %2259 = vmatmul.mubr.bf16.gmra.mrb[0].mxu0 %v2221
        %v2260 = vpop.f32.mrb[0].mxu0
        %v2261 = vadd.f32 0.0, %v2260
        %v2262 = vpop.f32.mrb[0].mxu0
        %v2263 = vpop.f32.mrb[0].mxu0
        %v2264 = vpop.f32.mrb[0].mxu0
        %2265 = vdwg.mxu0
        %v2267 = vsel %vm1120, %v2164, 0
        %v2270 = vsel %vm1124, %v2168, 0
        %2272 = vmatprep.subr.bf16.mxu0 0
        %2273 = vmatpush1.bf16.msra.mxu0 %v2270
        %2274 = vmatprep.subr.bf16.mxu0 0
        %2275 = vmatpush1.bf16.msra.mxu0 0
        %2276 = vmatprep.subr.bf16.mxu0 0
        %2277 = vmatpush1.bf16.msra.mxu0 0
        %2278 = vmatprep.subr.bf16.mxu0 0
        %2279 = vmatpush1.bf16.msra.mxu0 0
        %2280 = vmatprep.subr.bf16.mxu0 0
        %2281 = vmatpush1.bf16.msra.mxu0 0
        %2282 = vmatprep.subr.bf16.mxu0 0
        %2283 = vmatpush1.bf16.msra.mxu0 0
        %2284 = vmatprep.subr.bf16.mxu0 0
        %2285 = vmatpush1.bf16.msra.mxu0 0
        %2286 = vmatprep.subr.bf16.mxu0 0
        %2287 = vmatpush1.bf16.msra.mxu0 0
        %2288 = vmatprep.subr.bf16.mxu0 0
        %2289 = vmatpush1.bf16.msra.mxu0 0
        %2290 = vmatprep.subr.bf16.mxu0 0
        %2291 = vmatpush1.bf16.msra.mxu0 0
        %2292 = vmatprep.subr.bf16.mxu0 0
        %2293 = vmatpush1.bf16.msra.mxu0 0
        %2294 = vmatprep.subr.bf16.mxu0 0
        %2295 = vmatpush1.bf16.msra.mxu0 0
        %2296 = vmatprep.subr.bf16.mxu0 0
        %2297 = vmatpush1.bf16.msra.mxu0 0
        %2298 = vmatprep.subr.bf16.mxu0 0
        %2299 = vmatpush1.bf16.msra.mxu0 0
        %2300 = vmatprep.subr.bf16.mxu0 0
        %2301 = vmatpush1.bf16.msra.mxu0 0
        %2302 = vmatprep.subr.bf16.mxu0 0
        %2303 = vmatpush1.bf16.msra.mxu0 0
        %2304 = vmatprep.mubr.bf16.mxu0 0
        %2305 = vmatmul.mubr.bf16.gmra.mrb[0].mxu0 %v2267
        %v2306 = vpop.f32.mrb[0].mxu0
        %v2307 = vadd.f32 0.0, %v2306
        %v2308 = vpop.f32.mrb[0].mxu0
        %v2309 = vpop.f32.mrb[0].mxu0
        %v2310 = vpop.f32.mrb[0].mxu0
        %2311 = vdwg.mxu0
        %v2313 = vsel %vm1120, %v2165, 0
        %v2316 = vsel %vm1124, %v2169, 0
        %2318 = vmatprep.subr.bf16.mxu0 0
        %2319 = vmatpush1.bf16.msra.mxu0 %v2316
        %2320 = vmatprep.subr.bf16.mxu0 0
        %2321 = vmatpush1.bf16.msra.mxu0 0
        %2322 = vmatprep.subr.bf16.mxu0 0
        %2323 = vmatpush1.bf16.msra.mxu0 0
        %2324 = vmatprep.subr.bf16.mxu0 0
        %2325 = vmatpush1.bf16.msra.mxu0 0
        %2326 = vmatprep.subr.bf16.mxu0 0
        %2327 = vmatpush1.bf16.msra.mxu0 0
        %2328 = vmatprep.subr.bf16.mxu0 0
        %2329 = vmatpush1.bf16.msra.mxu0 0
        %2330 = vmatprep.subr.bf16.mxu0 0
        %2331 = vmatpush1.bf16.msra.mxu0 0
        %2332 = vmatprep.subr.bf16.mxu0 0
        %2333 = vmatpush1.bf16.msra.mxu0 0
        %2334 = vmatprep.subr.bf16.mxu0 0
        %2335 = vmatpush1.bf16.msra.mxu0 0
        %2336 = vmatprep.subr.bf16.mxu0 0
        %2337 = vmatpush1.bf16.msra.mxu0 0
        %2338 = vmatprep.subr.bf16.mxu0 0
        %2339 = vmatpush1.bf16.msra.mxu0 0
        %2340 = vmatprep.subr.bf16.mxu0 0
        %2341 = vmatpush1.bf16.msra.mxu0 0
        %2342 = vmatprep.subr.bf16.mxu0 0
        %2343 = vmatpush1.bf16.msra.mxu0 0
        %2344 = vmatprep.subr.bf16.mxu0 0
        %2345 = vmatpush1.bf16.msra.mxu0 0
        %2346 = vmatprep.subr.bf16.mxu0 0
        %2347 = vmatpush1.bf16.msra.mxu0 0
        %2348 = vmatprep.subr.bf16.mxu0 0
        %2349 = vmatpush1.bf16.msra.mxu0 0
        %2350 = vmatprep.mubr.bf16.mxu0 0
        %2351 = vmatmul.mubr.bf16.gmra.mrb[0].mxu0 %v2313
        %v2352 = vpop.f32.mrb[0].mxu0
        %v2353 = vadd.f32 0.0, %v2352
        %v2354 = vpop.f32.mrb[0].mxu0
        %v2355 = vpop.f32.mrb[0].mxu0
        %v2356 = vpop.f32.mrb[0].mxu0
        %2357 = vdwg.mxu0
        %v2358 = vsel %vm1120, %v2215, -inf
        %2359 = vmax.xlane.f32.xlu0 %v2358
        %v2360 = vpop.xlane.xlu0 %2359
        %v2361 = vsel %vm1120, %v2261, -inf
        %2362 = vmax.xlane.f32.xlu0 %v2361
        %v2363 = vpop.xlane.xlu0 %2362
        %v2364 = vsel %vm1120, %v2307, -inf
        %2365 = vmax.xlane.f32.xlu0 %v2364
        %v2366 = vpop.xlane.xlu0 %2365
        %v2367 = vsel %vm1120, %v2353, -inf
        %2368 = vmax.xlane.f32.xlu0 %v2367
        %v2369 = vpop.xlane.xlu0 %2368
        %v2370 = vsub.f32 %v2215, %v2360
        %v2371 = vsub.f32 %v2261, %v2363
        %v2372 = vsub.f32 %v2307, %v2366
        %v2373 = vsub.f32 %v2353, %v2369
        %v2374 = vmul.f32 %v2370, 1.442695
        %v2375 = vpow.pop %v2374
        %v2376 = vmul.f32 %v2371, 1.442695
        %v2377 = vpow.pop %v2376
        %v2378 = vmul.f32 %v2372, 1.442695
        %v2379 = vpow.pop %v2378
        %v2380 = vmul.f32 %v2373, 1.442695
        %v2381 = vpow.pop %v2380
        %v2382 = vsel %vm1120, %v2375, 0.0
        %2383 = vadd.xlane.f32.xlu0 %v2382
        %v2384 = vpop.xlane.xlu0 %2383
        %v2385 = vsel %vm1120, %v2377, 0.0
        %2386 = vadd.xlane.f32.xlu0 %v2385
        %v2387 = vpop.xlane.xlu0 %2386
        %v2388 = vsel %vm1120, %v2379, 0.0
        %2389 = vadd.xlane.f32.xlu0 %v2388
        %v2390 = vpop.xlane.xlu0 %2389
        %v2391 = vsel %vm1120, %v2381, 0.0
        %2392 = vadd.xlane.f32.xlu0 %v2391
        %v2393 = vpop.xlane.xlu0 %2392
        %v2394 = vrcp.pop %v2384
        %v2395 = vrcp.pop %v2387
        %v2396 = vrcp.pop %v2390
        %v2397 = vrcp.pop %v2393
        %v2398 = vmul.f32 %v2375, %v2394
        %v2399 = vmul.f32 %v2377, %v2395
        %v2400 = vmul.f32 %v2379, %v2396
        %v2401 = vmul.f32 %v2381, %v2397
        %v2402 = vpack.c.bf16 %v2398, %v2398
        %v2403 = vpack.c.bf16 %v2399, %v2399
        %v2404 = vpack.c.bf16 %v2400, %v2400
        %v2405 = vpack.c.bf16 %v2401, %v2401
        %v2407 = vsel %vm1120, %v2402, 0
        %v2410 = vsel %vm1120, %v2170, 0
        %2412 = vmatprep.subr.bf16.mxu0 0
        %2413 = vmatpush1.bf16.xpose.msra.mxu0 %v2410
        %2414 = vmatprep.subr.bf16.mxu0 0
        %2415 = vmatpush1.bf16.xpose.msra.mxu0 0
        %2416 = vmatprep.subr.bf16.mxu0 0
        %2417 = vmatpush1.bf16.xpose.msra.mxu0 0
        %2418 = vmatprep.subr.bf16.mxu0 0
        %2419 = vmatpush1.bf16.xpose.msra.mxu0 0
        %2420 = vmatprep.subr.bf16.mxu0 0
        %2421 = vmatpush1.bf16.xpose.msra.mxu0 0
        %2422 = vmatprep.subr.bf16.mxu0 0
        %2423 = vmatpush1.bf16.xpose.msra.mxu0 0
        %2424 = vmatprep.subr.bf16.mxu0 0
        %2425 = vmatpush1.bf16.xpose.msra.mxu0 0
        %2426 = vmatprep.subr.bf16.mxu0 0
        %2427 = vmatpush1.bf16.xpose.msra.mxu0 0
        %2428 = vmatprep.subr.bf16.mxu0 0
        %2429 = vmatpush1.bf16.xpose.msra.mxu0 0
        %2430 = vmatprep.subr.bf16.mxu0 0
        %2431 = vmatpush1.bf16.xpose.msra.mxu0 0
        %2432 = vmatprep.subr.bf16.mxu0 0
        %2433 = vmatpush1.bf16.xpose.msra.mxu0 0
        %2434 = vmatprep.subr.bf16.mxu0 0
        %2435 = vmatpush1.bf16.xpose.msra.mxu0 0
        %2436 = vmatprep.subr.bf16.mxu0 0
        %2437 = vmatpush1.bf16.xpose.msra.mxu0 0
        %2438 = vmatprep.subr.bf16.mxu0 0
        %2439 = vmatpush1.bf16.xpose.msra.mxu0 0
        %2440 = vmatprep.subr.bf16.mxu0 0
        %2441 = vmatpush1.bf16.xpose.msra.mxu0 0
        %2442 = vmatprep.subr.bf16.mxu0 0
        %2443 = vmatpush1.bf16.xpose.msra.mxu0 0
        %2444 = vmatprep.mubr.bf16.mxu0 0
        %2445 = vmatmul.mubr.bf16.gmra.mrb[0].mxu0 %v2407
        %v2446 = vpop.f32.mrb[0].mxu0
        %v2447 = vadd.f32 0.0, %v2446
        %v2448 = vpop.f32.mrb[0].mxu0
        %v2449 = vpop.f32.mrb[0].mxu0
        %v2450 = vpop.f32.mrb[0].mxu0
        %2451 = vdwg.mxu0
        %v2453 = vsel %vm1120, %v2403, 0
        %v2456 = vsel %vm1120, %v2171, 0
        %2458 = vmatprep.subr.bf16.mxu0 0
        %2459 = vmatpush1.bf16.xpose.msra.mxu0 %v2456
        %2460 = vmatprep.subr.bf16.mxu0 0
        %2461 = vmatpush1.bf16.xpose.msra.mxu0 0
        %2462 = vmatprep.subr.bf16.mxu0 0
        %2463 = vmatpush1.bf16.xpose.msra.mxu0 0
        %2464 = vmatprep.subr.bf16.mxu0 0
        %2465 = vmatpush1.bf16.xpose.msra.mxu0 0
        %2466 = vmatprep.subr.bf16.mxu0 0
        %2467 = vmatpush1.bf16.xpose.msra.mxu0 0
        %2468 = vmatprep.subr.bf16.mxu0 0
        %2469 = vmatpush1.bf16.xpose.msra.mxu0 0
        %2470 = vmatprep.subr.bf16.mxu0 0
        %2471 = vmatpush1.bf16.xpose.msra.mxu0 0
        %2472 = vmatprep.subr.bf16.mxu0 0
        %2473 = vmatpush1.bf16.xpose.msra.mxu0 0
        %2474 = vmatprep.subr.bf16.mxu0 0
        %2475 = vmatpush1.bf16.xpose.msra.mxu0 0
        %2476 = vmatprep.subr.bf16.mxu0 0
        %2477 = vmatpush1.bf16.xpose.msra.mxu0 0
        %2478 = vmatprep.subr.bf16.mxu0 0
        %2479 = vmatpush1.bf16.xpose.msra.mxu0 0
        %2480 = vmatprep.subr.bf16.mxu0 0
        %2481 = vmatpush1.bf16.xpose.msra.mxu0 0
        %2482 = vmatprep.subr.bf16.mxu0 0
        %2483 = vmatpush1.bf16.xpose.msra.mxu0 0
        %2484 = vmatprep.subr.bf16.mxu0 0
        %2485 = vmatpush1.bf16.xpose.msra.mxu0 0
        %2486 = vmatprep.subr.bf16.mxu0 0
        %2487 = vmatpush1.bf16.xpose.msra.mxu0 0
        %2488 = vmatprep.subr.bf16.mxu0 0
        %2489 = vmatpush1.bf16.xpose.msra.mxu0 0
        %2490 = vmatprep.mubr.bf16.mxu0 0
        %2491 = vmatmul.mubr.bf16.gmra.mrb[0].mxu0 %v2453
        %v2492 = vpop.f32.mrb[0].mxu0
        %v2493 = vadd.f32 0.0, %v2492
        %v2494 = vpop.f32.mrb[0].mxu0
        %v2495 = vpop.f32.mrb[0].mxu0
        %v2496 = vpop.f32.mrb[0].mxu0
        %2497 = vdwg.mxu0
        %v2499 = vsel %vm1120, %v2404, 0
        %v2502 = vsel %vm1120, %v2172, 0
        %2504 = vmatprep.subr.bf16.mxu0 0
        %2505 = vmatpush1.bf16.xpose.msra.mxu0 %v2502
        %2506 = vmatprep.subr.bf16.mxu0 0
        %2507 = vmatpush1.bf16.xpose.msra.mxu0 0
        %2508 = vmatprep.subr.bf16.mxu0 0
        %2509 = vmatpush1.bf16.xpose.msra.mxu0 0
        %2510 = vmatprep.subr.bf16.mxu0 0
        %2511 = vmatpush1.bf16.xpose.msra.mxu0 0
        %2512 = vmatprep.subr.bf16.mxu0 0
        %2513 = vmatpush1.bf16.xpose.msra.mxu0 0
        %2514 = vmatprep.subr.bf16.mxu0 0
        %2515 = vmatpush1.bf16.xpose.msra.mxu0 0
        %2516 = vmatprep.subr.bf16.mxu0 0
        %2517 = vmatpush1.bf16.xpose.msra.mxu0 0
        %2518 = vmatprep.subr.bf16.mxu0 0
        %2519 = vmatpush1.bf16.xpose.msra.mxu0 0
        %2520 = vmatprep.subr.bf16.mxu0 0
        %2521 = vmatpush1.bf16.xpose.msra.mxu0 0
        %2522 = vmatprep.subr.bf16.mxu0 0
        %2523 = vmatpush1.bf16.xpose.msra.mxu0 0
        %2524 = vmatprep.subr.bf16.mxu0 0
        %2525 = vmatpush1.bf16.xpose.msra.mxu0 0
        %2526 = vmatprep.subr.bf16.mxu0 0
        %2527 = vmatpush1.bf16.xpose.msra.mxu0 0
        %2528 = vmatprep.subr.bf16.mxu0 0
        %2529 = vmatpush1.bf16.xpose.msra.mxu0 0
        %2530 = vmatprep.subr.bf16.mxu0 0
        %2531 = vmatpush1.bf16.xpose.msra.mxu0 0
        %2532 = vmatprep.subr.bf16.mxu0 0
        %2533 = vmatpush1.bf16.xpose.msra.mxu0 0
        %2534 = vmatprep.subr.bf16.mxu0 0
        %2535 = vmatpush1.bf16.xpose.msra.mxu0 0
        %2536 = vmatprep.mubr.bf16.mxu0 0
        %2537 = vmatmul.mubr.bf16.gmra.mrb[0].mxu0 %v2499
        %v2538 = vpop.f32.mrb[0].mxu0
        %v2539 = vadd.f32 0.0, %v2538
        %v2540 = vpop.f32.mrb[0].mxu0
        %v2541 = vpop.f32.mrb[0].mxu0
        %v2542 = vpop.f32.mrb[0].mxu0
        %2543 = vdwg.mxu0
        %v2545 = vsel %vm1120, %v2405, 0
        %v2548 = vsel %vm1120, %v2173, 0
        %2550 = vmatprep.subr.bf16.mxu0 0
        %2551 = vmatpush1.bf16.xpose.msra.mxu0 %v2548
        %2552 = vmatprep.subr.bf16.mxu0 0
        %2553 = vmatpush1.bf16.xpose.msra.mxu0 0
        %2554 = vmatprep.subr.bf16.mxu0 0
        %2555 = vmatpush1.bf16.xpose.msra.mxu0 0
        %2556 = vmatprep.subr.bf16.mxu0 0
        %2557 = vmatpush1.bf16.xpose.msra.mxu0 0
        %2558 = vmatprep.subr.bf16.mxu0 0
        %2559 = vmatpush1.bf16.xpose.msra.mxu0 0
        %2560 = vmatprep.subr.bf16.mxu0 0
        %2561 = vmatpush1.bf16.xpose.msra.mxu0 0
        %2562 = vmatprep.subr.bf16.mxu0 0
        %2563 = vmatpush1.bf16.xpose.msra.mxu0 0
        %2564 = vmatprep.subr.bf16.mxu0 0
        %2565 = vmatpush1.bf16.xpose.msra.mxu0 0
        %2566 = vmatprep.subr.bf16.mxu0 0
        %2567 = vmatpush1.bf16.xpose.msra.mxu0 0
        %2568 = vmatprep.subr.bf16.mxu0 0
        %2569 = vmatpush1.bf16.xpose.msra.mxu0 0
        %2570 = vmatprep.subr.bf16.mxu0 0
        %2571 = vmatpush1.bf16.xpose.msra.mxu0 0
        %2572 = vmatprep.subr.bf16.mxu0 0
        %2573 = vmatpush1.bf16.xpose.msra.mxu0 0
        %2574 = vmatprep.subr.bf16.mxu0 0
        %2575 = vmatpush1.bf16.xpose.msra.mxu0 0
        %2576 = vmatprep.subr.bf16.mxu0 0
        %2577 = vmatpush1.bf16.xpose.msra.mxu0 0
        %2578 = vmatprep.subr.bf16.mxu0 0
        %2579 = vmatpush1.bf16.xpose.msra.mxu0 0
        %2580 = vmatprep.subr.bf16.mxu0 0
        %2581 = vmatpush1.bf16.xpose.msra.mxu0 0
        %2582 = vmatprep.mubr.bf16.mxu0 0
        %2583 = vmatmul.mubr.bf16.gmra.mrb[0].mxu0 %v2545
        %v2584 = vpop.f32.mrb[0].mxu0
        %v2585 = vadd.f32 0.0, %v2584
        %v2586 = vpop.f32.mrb[0].mxu0
        %v2587 = vpop.f32.mrb[0].mxu0
        %v2588 = vpop.f32.mrb[0].mxu0
        %2589 = vdwg.mxu0
        %v2590 = vpack.c.bf16 %v2447, %v2447
        %v2591 = vpack.c.bf16 %v2493, %v2493
        %v2592 = vpack.c.bf16 %v2539, %v2539
        %v2593 = vpack.c.bf16 %v2585, %v2585
        %v2595 = vsel %vm1120, %v2590, 0
        %v2598 = vsel %vm1124, %v2026, 0
        %2600 = vmatprep.subr.bf16.mxu0 0
        %2601 = vmatpush1.bf16.msra.mxu0 %v2598
        %2602 = vmatprep.subr.bf16.mxu0 0
        %2603 = vmatpush1.bf16.msra.mxu0 0
        %2604 = vmatprep.subr.bf16.mxu0 0
        %2605 = vmatpush1.bf16.msra.mxu0 0
        %2606 = vmatprep.subr.bf16.mxu0 0
        %2607 = vmatpush1.bf16.msra.mxu0 0
        %2608 = vmatprep.subr.bf16.mxu0 0
        %2609 = vmatpush1.bf16.msra.mxu0 0
        %2610 = vmatprep.subr.bf16.mxu0 0
        %2611 = vmatpush1.bf16.msra.mxu0 0
        %2612 = vmatprep.subr.bf16.mxu0 0
        %2613 = vmatpush1.bf16.msra.mxu0 0
        %2614 = vmatprep.subr.bf16.mxu0 0
        %2615 = vmatpush1.bf16.msra.mxu0 0
        %2616 = vmatprep.subr.bf16.mxu0 0
        %2617 = vmatpush1.bf16.msra.mxu0 0
        %2618 = vmatprep.subr.bf16.mxu0 0
        %2619 = vmatpush1.bf16.msra.mxu0 0
        %2620 = vmatprep.subr.bf16.mxu0 0
        %2621 = vmatpush1.bf16.msra.mxu0 0
        %2622 = vmatprep.subr.bf16.mxu0 0
        %2623 = vmatpush1.bf16.msra.mxu0 0
        %2624 = vmatprep.subr.bf16.mxu0 0
        %2625 = vmatpush1.bf16.msra.mxu0 0
        %2626 = vmatprep.subr.bf16.mxu0 0
        %2627 = vmatpush1.bf16.msra.mxu0 0
        %2628 = vmatprep.subr.bf16.mxu0 0
        %2629 = vmatpush1.bf16.msra.mxu0 0
        %2630 = vmatprep.subr.bf16.mxu0 0
        %2631 = vmatpush1.bf16.msra.mxu0 0
        %2632 = vmatprep.mubr.bf16.mxu0 0
        %2633 = vmatmul.mubr.bf16.gmra.mrb[0].mxu0 %v2595
        %v2634 = vpop.f32.mrb[0].mxu0
        %v2635 = vadd.f32 0.0, %v2634
        %v2636 = vpop.f32.mrb[0].mxu0
        %v2637 = vpop.f32.mrb[0].mxu0
        %v2638 = vpop.f32.mrb[0].mxu0
        %2639 = vdwg.mxu0
        %v2641 = vsel %vm1120, %v2591, 0
        %v2644 = vsel %vm1124, %v2027, 0
        %2646 = vmatprep.subr.bf16.mxu0 0
        %2647 = vmatpush1.bf16.msra.mxu0 %v2644
        %2648 = vmatprep.subr.bf16.mxu0 0
        %2649 = vmatpush1.bf16.msra.mxu0 0
        %2650 = vmatprep.subr.bf16.mxu0 0
        %2651 = vmatpush1.bf16.msra.mxu0 0
        %2652 = vmatprep.subr.bf16.mxu0 0
        %2653 = vmatpush1.bf16.msra.mxu0 0
        %2654 = vmatprep.subr.bf16.mxu0 0
        %2655 = vmatpush1.bf16.msra.mxu0 0
        %2656 = vmatprep.subr.bf16.mxu0 0
        %2657 = vmatpush1.bf16.msra.mxu0 0
        %2658 = vmatprep.subr.bf16.mxu0 0
        %2659 = vmatpush1.bf16.msra.mxu0 0
        %2660 = vmatprep.subr.bf16.mxu0 0
        %2661 = vmatpush1.bf16.msra.mxu0 0
        %2662 = vmatprep.subr.bf16.mxu0 0
        %2663 = vmatpush1.bf16.msra.mxu0 0
        %2664 = vmatprep.subr.bf16.mxu0 0
        %2665 = vmatpush1.bf16.msra.mxu0 0
        %2666 = vmatprep.subr.bf16.mxu0 0
        %2667 = vmatpush1.bf16.msra.mxu0 0
        %2668 = vmatprep.subr.bf16.mxu0 0
        %2669 = vmatpush1.bf16.msra.mxu0 0
        %2670 = vmatprep.subr.bf16.mxu0 0
        %2671 = vmatpush1.bf16.msra.mxu0 0
        %2672 = vmatprep.subr.bf16.mxu0 0
        %2673 = vmatpush1.bf16.msra.mxu0 0
        %2674 = vmatprep.subr.bf16.mxu0 0
        %2675 = vmatpush1.bf16.msra.mxu0 0
        %2676 = vmatprep.subr.bf16.mxu0 0
        %2677 = vmatpush1.bf16.msra.mxu0 0
        %2678 = vmatprep.mubr.bf16.mxu0 0
        %2679 = vmatmul.mubr.bf16.gmra.mrb[0].mxu0 %v2641
        %v2680 = vpop.f32.mrb[0].mxu0
        %v2681 = vadd.f32 0.0, %v2680
        %v2682 = vpop.f32.mrb[0].mxu0
        %v2683 = vpop.f32.mrb[0].mxu0
        %v2684 = vpop.f32.mrb[0].mxu0
        %2685 = vdwg.mxu0
        %v2687 = vsel %vm1120, %v2592, 0
        %v2690 = vsel %vm1124, %v2028, 0
        %2692 = vmatprep.subr.bf16.mxu0 0
        %2693 = vmatpush1.bf16.msra.mxu0 %v2690
        %2694 = vmatprep.subr.bf16.mxu0 0
        %2695 = vmatpush1.bf16.msra.mxu0 0
        %2696 = vmatprep.subr.bf16.mxu0 0
        %2697 = vmatpush1.bf16.msra.mxu0 0
        %2698 = vmatprep.subr.bf16.mxu0 0
        %2699 = vmatpush1.bf16.msra.mxu0 0
        %2700 = vmatprep.subr.bf16.mxu0 0
        %2701 = vmatpush1.bf16.msra.mxu0 0
        %2702 = vmatprep.subr.bf16.mxu0 0
        %2703 = vmatpush1.bf16.msra.mxu0 0
        %2704 = vmatprep.subr.bf16.mxu0 0
        %2705 = vmatpush1.bf16.msra.mxu0 0
        %2706 = vmatprep.subr.bf16.mxu0 0
        %2707 = vmatpush1.bf16.msra.mxu0 0
        %2708 = vmatprep.subr.bf16.mxu0 0
        %2709 = vmatpush1.bf16.msra.mxu0 0
        %2710 = vmatprep.subr.bf16.mxu0 0
        %2711 = vmatpush1.bf16.msra.mxu0 0
        %2712 = vmatprep.subr.bf16.mxu0 0
        %2713 = vmatpush1.bf16.msra.mxu0 0
        %2714 = vmatprep.subr.bf16.mxu0 0
        %2715 = vmatpush1.bf16.msra.mxu0 0
        %2716 = vmatprep.subr.bf16.mxu0 0
        %2717 = vmatpush1.bf16.msra.mxu0 0
        %2718 = vmatprep.subr.bf16.mxu0 0
        %2719 = vmatpush1.bf16.msra.mxu0 0
        %2720 = vmatprep.subr.bf16.mxu0 0
        %2721 = vmatpush1.bf16.msra.mxu0 0
        %2722 = vmatprep.subr.bf16.mxu0 0
        %2723 = vmatpush1.bf16.msra.mxu0 0
        %2724 = vmatprep.mubr.bf16.mxu0 0
        %2725 = vmatmul.mubr.bf16.gmra.mrb[0].mxu0 %v2687
        %v2726 = vpop.f32.mrb[0].mxu0
        %v2727 = vadd.f32 0.0, %v2726
        %v2728 = vpop.f32.mrb[0].mxu0
        %v2729 = vpop.f32.mrb[0].mxu0
        %v2730 = vpop.f32.mrb[0].mxu0
        %2731 = vdwg.mxu0
        %v2733 = vsel %vm1120, %v2593, 0
        %v2736 = vsel %vm1124, %v2029, 0
        %2738 = vmatprep.subr.bf16.mxu0 0
        %2739 = vmatpush1.bf16.msra.mxu0 %v2736
        %2740 = vmatprep.subr.bf16.mxu0 0
        %2741 = vmatpush1.bf16.msra.mxu0 0
        %2742 = vmatprep.subr.bf16.mxu0 0
        %2743 = vmatpush1.bf16.msra.mxu0 0
        %2744 = vmatprep.subr.bf16.mxu0 0
        %2745 = vmatpush1.bf16.msra.mxu0 0
        %2746 = vmatprep.subr.bf16.mxu0 0
        %2747 = vmatpush1.bf16.msra.mxu0 0
        %2748 = vmatprep.subr.bf16.mxu0 0
        %2749 = vmatpush1.bf16.msra.mxu0 0
        %2750 = vmatprep.subr.bf16.mxu0 0
        %2751 = vmatpush1.bf16.msra.mxu0 0
        %2752 = vmatprep.subr.bf16.mxu0 0
        %2753 = vmatpush1.bf16.msra.mxu0 0
        %2754 = vmatprep.subr.bf16.mxu0 0
        %2755 = vmatpush1.bf16.msra.mxu0 0
        %2756 = vmatprep.subr.bf16.mxu0 0
        %2757 = vmatpush1.bf16.msra.mxu0 0
        %2758 = vmatprep.subr.bf16.mxu0 0
        %2759 = vmatpush1.bf16.msra.mxu0 0
        %2760 = vmatprep.subr.bf16.mxu0 0
        %2761 = vmatpush1.bf16.msra.mxu0 0
        %2762 = vmatprep.subr.bf16.mxu0 0
        %2763 = vmatpush1.bf16.msra.mxu0 0
        %2764 = vmatprep.subr.bf16.mxu0 0
        %2765 = vmatpush1.bf16.msra.mxu0 0
        %2766 = vmatprep.subr.bf16.mxu0 0
        %2767 = vmatpush1.bf16.msra.mxu0 0
        %2768 = vmatprep.subr.bf16.mxu0 0
        %2769 = vmatpush1.bf16.msra.mxu0 0
        %2770 = vmatprep.mubr.bf16.mxu0 0
        %2771 = vmatmul.mubr.bf16.gmra.mrb[0].mxu0 %v2733
        %v2772 = vpop.f32.mrb[0].mxu0
        %v2773 = vadd.f32 0.0, %v2772
        %v2774 = vpop.f32.mrb[0].mxu0
        %v2775 = vpop.f32.mrb[0].mxu0
        %v2776 = vpop.f32.mrb[0].mxu0
        %2777 = vdwg.mxu0
        %v2778 = vsel %vm720, %v2635, 0.0
        %v2779 = vsel %vm720, %v2681, 0.0
        %v2780 = vadd.f32 %v2778, %v2779
        %v2781 = vsel %vm720, %v2727, 0.0
        %v2782 = vadd.f32 %v2780, %v2781
        %v2783 = vsel %vm720, %v2773, 0.0
        %v2784 = vadd.f32 %v2782, %v2783
        %v2785 = vadd.f32 %v1741, %v2784
        %v2786 = vld [vmem:[%s15] sm:$0x1]
        %v2788 = vlaneseq
        %v2789 = vshrl.u32 %v2788, 7
        %v2790 = vsub.s32 0, %v2789
        %v2791 = vrot.slane %v2786, %v2790
        %v2793 = vadd.f32 %v2785, %v2791
        %v2794 = vld [vmem:[%s16] sm:$0x1]
        %v2795 = vld [vmem:[%s17] sm:$0x1]
        %v2796 = vsel %vm720, %v2793, 0.0
        %2797 = vadd.xlane.f32.xlu0 %v2796
        %v2798 = vpop.xlane.xlu0 %2797
        %v2799 = vmul.f32 %v2798, %v724
        %v2800 = vsub.f32 %v2793, %v2799
        %v2801 = vmul.f32 %v2800, %v2800
        %v2802 = vsel %vm720, %v2801, 0.0
        %2803 = vadd.xlane.f32.xlu0 %v2802
        %v2804 = vpop.xlane.xlu0 %2803
        %v2805 = vmul.f32 %v2804, %v724
        %v2806 = vadd.f32 %v2805, 1e-05
        %v2807 = vrsqrt.pop %v2806
        %v2808 = vmul.f32 %v2800, %v2807
        %v2810 = vlaneseq
        %v2811 = vshrl.u32 %v2810, 7
        %v2812 = vsub.s32 0, %v2811
        %v2813 = vrot.slane %v2794, %v2812
        %v2815 = vmul.f32 %v2808, %v2813
        %v2817 = vlaneseq
        %v2818 = vshrl.u32 %v2817, 7
        %v2819 = vsub.s32 0, %v2818
        %v2820 = vrot.slane %v2795, %v2819
        %v2822 = vadd.f32 %v2815, %v2820
        %v2823 = vpack.c.bf16 %v2822, %v2822
        %v2824 = vld [vmem:[%s18] sm:$0xf]
        %v2825 = vld [vmem:[%s18 + $0x4] sm:$0xf]
        %v2826 = vld [vmem:[%s18 + $0x8] sm:$0xf]
        %v2827 = vld [vmem:[%s18 + $0xc] sm:$0xf]
        %v2828 = vld [vmem:[%s18 + $0x10] sm:$0xf]
        %v2829 = vld [vmem:[%s18 + $0x14] sm:$0xf]
        %v2830 = vld [vmem:[%s18 + $0x18] sm:$0xf]
        %v2831 = vld [vmem:[%s18 + $0x1c] sm:$0xf]
        %v2832 = vld [vmem:[%s19] sm:$0x1]
        %v2834 = vlaneseq
        %v2835 = vshrl.u32 %v2834, 7
        %v2836 = vsub.s32 0, %v2835
        %v2837 = vrot.slane %v2832, %v2836
        %v2847 = vunpack.c.l.b16 %v2824
        %v2848 = vunpack.c.l.b16 %v2825
        %v2849 = vunpack.c.l.b16 %v2826
        %v2850 = vunpack.c.l.b16 %v2827
        %v2851 = vunpack.c.l.b16 %v2828
        %v2852 = vunpack.c.l.b16 %v2829
        %v2853 = vunpack.c.l.b16 %v2830
        %v2854 = vunpack.c.l.b16 %v2831
        %v2855 = vpack.c.b16 %v2848, %v2847
        %v2856 = vpack.c.b16 %v2850, %v2849
        %v2857 = vpack.c.b16 %v2852, %v2851
        %v2858 = vpack.c.b16 %v2854, %v2853
        %v2860 = vsel %vm720, %v2823, 0
        %v2863 = vsel %vm720, %v2855, 0
        %v2866 = vsel %vm720, %v2856, 0
        %v2869 = vsel %vm720, %v2857, 0
        %v2872 = vsel %vm720, %v2858, 0
        %2874 = vmatprep.subr.bf16.mxu0 0
        %2875 = vmatpush1.bf16.xpose.msra.mxu0 %v2863
        %2876 = vmatprep.subr.bf16.mxu0 0
        %2877 = vmatpush1.bf16.xpose.msra.mxu0 %v2866
        %2878 = vmatprep.subr.bf16.mxu0 0
        %2879 = vmatpush1.bf16.xpose.msra.mxu0 %v2869
        %2880 = vmatprep.subr.bf16.mxu0 0
        %2881 = vmatpush1.bf16.xpose.msra.mxu0 %v2872
        %2882 = vmatprep.subr.bf16.mxu0 0
        %2883 = vmatpush1.bf16.xpose.msra.mxu0 0
        %2884 = vmatprep.subr.bf16.mxu0 0
        %2885 = vmatpush1.bf16.xpose.msra.mxu0 0
        %2886 = vmatprep.subr.bf16.mxu0 0
        %2887 = vmatpush1.bf16.xpose.msra.mxu0 0
        %2888 = vmatprep.subr.bf16.mxu0 0
        %2889 = vmatpush1.bf16.xpose.msra.mxu0 0
        %2890 = vmatprep.subr.bf16.mxu0 0
        %2891 = vmatpush1.bf16.xpose.msra.mxu0 0
        %2892 = vmatprep.subr.bf16.mxu0 0
        %2893 = vmatpush1.bf16.xpose.msra.mxu0 0
        %2894 = vmatprep.subr.bf16.mxu0 0
        %2895 = vmatpush1.bf16.xpose.msra.mxu0 0
        %2896 = vmatprep.subr.bf16.mxu0 0
        %2897 = vmatpush1.bf16.xpose.msra.mxu0 0
        %2898 = vmatprep.subr.bf16.mxu0 0
        %2899 = vmatpush1.bf16.xpose.msra.mxu0 0
        %2900 = vmatprep.subr.bf16.mxu0 0
        %2901 = vmatpush1.bf16.xpose.msra.mxu0 0
        %2902 = vmatprep.subr.bf16.mxu0 0
        %2903 = vmatpush1.bf16.xpose.msra.mxu0 0
        %2904 = vmatprep.subr.bf16.mxu0 0
        %2905 = vmatpush1.bf16.xpose.msra.mxu0 0
        %2906 = vmatprep.mubr.bf16.mxu0 0
        %2907 = vmatmul.mubr.bf16.gmra.mrb[0].mxu0 %v2860
        %v2908 = vpop.f32.mrb[0].mxu0
        %v2909 = vadd.f32 %v2837, %v2908
        %v2910 = vpop.f32.mrb[0].mxu0
        %v2911 = vpop.f32.mrb[0].mxu0
        %v2912 = vpop.f32.mrb[0].mxu0
        %2913 = vdwg.mxu0
        %v2914 = vmax.f32 %v2909, 0.0
        %v2915 = vpack.c.bf16 %v2914, %v2914
        %v2916 = vld [vmem:[%s20] sm:$0xf]
        %v2917 = vld [vmem:[%s20 + $0x4] sm:$0xf]
        %v2918 = vld [vmem:[%s20 + $0x8] sm:$0xf]
        %v2919 = vld [vmem:[%s20 + $0xc] sm:$0xf]
        %v2920 = vld [vmem:[%s21] sm:$0x1]
        %v2922 = vlaneseq
        %v2923 = vshrl.u32 %v2922, 7
        %v2924 = vsub.s32 0, %v2923
        %v2925 = vrot.slane %v2920, %v2924
        %v2931 = vunpack.c.l.b16 %v2916
        %v2932 = vunpack.c.l.b16 %v2917
        %v2933 = vunpack.c.l.b16 %v2918
        %v2934 = vunpack.c.l.b16 %v2919
        %v2935 = vpack.c.b16 %v2932, %v2931
        %v2936 = vpack.c.b16 %v2934, %v2933
        %vm2937 = vcmask 523264
        %v2939 = vsel %vm2937, %v2915, 0
        %v2942 = vsel %vm2937, %v2935, 0
        %v2945 = vsel %vm2937, %v2936, 0
        %2947 = vmatprep.subr.bf16.mxu0 0
        %2948 = vmatpush1.bf16.xpose.msra.mxu0 %v2942
        %2949 = vmatprep.subr.bf16.mxu0 0
        %2950 = vmatpush1.bf16.xpose.msra.mxu0 %v2945
        %2951 = vmatprep.subr.bf16.mxu0 0
        %2952 = vmatpush1.bf16.xpose.msra.mxu0 0
        %2953 = vmatprep.subr.bf16.mxu0 0
        %2954 = vmatpush1.bf16.xpose.msra.mxu0 0
        %2955 = vmatprep.subr.bf16.mxu0 0
        %2956 = vmatpush1.bf16.xpose.msra.mxu0 0
        %2957 = vmatprep.subr.bf16.mxu0 0
        %2958 = vmatpush1.bf16.xpose.msra.mxu0 0
        %2959 = vmatprep.subr.bf16.mxu0 0
        %2960 = vmatpush1.bf16.xpose.msra.mxu0 0
        %2961 = vmatprep.subr.bf16.mxu0 0
        %2962 = vmatpush1.bf16.xpose.msra.mxu0 0
        %2963 = vmatprep.subr.bf16.mxu0 0
        %2964 = vmatpush1.bf16.xpose.msra.mxu0 0
        %2965 = vmatprep.subr.bf16.mxu0 0
        %2966 = vmatpush1.bf16.xpose.msra.mxu0 0
        %2967 = vmatprep.subr.bf16.mxu0 0
        %2968 = vmatpush1.bf16.xpose.msra.mxu0 0
        %2969 = vmatprep.subr.bf16.mxu0 0
        %2970 = vmatpush1.bf16.xpose.msra.mxu0 0
        %2971 = vmatprep.subr.bf16.mxu0 0
        %2972 = vmatpush1.bf16.xpose.msra.mxu0 0
        %2973 = vmatprep.subr.bf16.mxu0 0
        %2974 = vmatpush1.bf16.xpose.msra.mxu0 0
        %2975 = vmatprep.subr.bf16.mxu0 0
        %2976 = vmatpush1.bf16.xpose.msra.mxu0 0
        %2977 = vmatprep.subr.bf16.mxu0 0
        %2978 = vmatpush1.bf16.xpose.msra.mxu0 0
        %2979 = vmatprep.mubr.bf16.mxu0 0
        %2980 = vmatmul.mubr.bf16.gmra.mrb[0].mxu0 %v2939
        %v2981 = vpop.f32.mrb[0].mxu0
        %v2982 = vadd.f32 %v2925, %v2981
        %v2983 = vpop.f32.mrb[0].mxu0
        %v2984 = vpop.f32.mrb[0].mxu0
        %v2985 = vpop.f32.mrb[0].mxu0
        %2986 = vdwg.mxu0
        %v2987 = vadd.f32 %v2793, %v2982
        %2988 = vst.msk [vmem:[%s711] sm:$0xff] %vm720, %v2987
        %s2989 = sand.u32 %s519, 1
        %s2990 = scalar_lea.sflag [#allocation4], %s2989
        %s2991 = sand.u32 %s519, 1
        %s2992 = smul.addr %s2991, 8
        %s2993 = scalar_lea.vmem [#allocation5], %s2992
        // Predicated region
        $region113: #{tpu_custom_call.1} parent=107 // pred_check
          %p2994 = pneg %p529
        $region114: #{tpu_custom_call.1} parent=107 // pred_check_branch
          %2996 = sbr.rel (%p2994) target = $region116
        $region115: #{tpu_custom_call.1} parent=107 // pred_region
          %s2998 = ssub.s32 128, 128
          %2999 = vsyncadd %s2990, %s2998
          %s3000 = smul.addr %s39, 128
          %s3001 = scalar_lea.hbm %s22, %s3000
          %s3003 = sshll.u32 %s2993, 4
          %s3004 = int_to_ptr.vmem [resolvable:$true] %s3003
          %3006 = dma.vmem_to_hbm [thread:$0]  %s3004, 128, %s3001, %s2990
        $region116: #{tpu_custom_call.1} parent=107 // pred_fallthru
          _
      $region108: #{tpu_custom_call.1} parent=5 // pred_fallthru
        _
      %p3007 = scmp.le.s32.totalorder 2, %s34
      // Predicated region
      $region117: #{tpu_custom_call.1} parent=5 // pred_check
        %p3008 = pneg %p3007
      $region118: #{tpu_custom_call.1} parent=5 // pred_check_branch
        %3010 = sbr.rel (%p3008) target = $region120
      $region119: #{tpu_custom_call.1} parent=5 // pred_region
        %s3011 = ssub.s32 %s34, 2
        // Predicated region
        $region121: #{tpu_custom_call.1} parent=119 // pred_check
          %p3012 = pneg %p535
        $region122: #{tpu_custom_call.1} parent=119 // pred_check_branch
          %3014 = sbr.rel (%p3012) target = $region124
        $region123: #{tpu_custom_call.1} parent=119 // pred_region
          %s3015 = sand.u32 %s520, 1
          %s3016 = scalar_lea.sflag [#allocation4], %s3015
          %s3017 = sand.u32 %s520, 1
          %s3018 = smul.addr %s3017, 8
          %s3019 = scalar_lea.vmem [#allocation5], %s3018
          %3020 = dma.done %s3016, 128
        $region124: #{tpu_custom_call.1} parent=119 // pred_fallthru
          _
      $region120: #{tpu_custom_call.1} parent=5 // pred_fallthru
        _
    $region6: #{tpu_custom_call.1} parent=1 // loop_footer
      %s38 = sadd.s32 1, %s34
    $region7: #{tpu_custom_call.1} parent=1 // loop_footer_branch
      %33 = sbr.rel target = $region3
    $region8: #{tpu_custom_call.1} parent=1 // loop_exit
      _
    %3021 = vsyncpa [#allocation3], 1
    %s3022 = scalar_lea.sflag [#allocation3], 1
    %3023 = vsyncpa %s3022, 1
    %3024 = vsyncpa [#allocation4], 1
    %s3025 = scalar_lea.sflag [#allocation4], 1
    %3026 = vsyncpa %s3025, 1

</llo_original>
